<compile_context>
chip_gen: v7x
topology: tpu7x:2x2x1
jax: 0.10.0
libtpu: 0.0.40
codegen_flags: <defaults>
</compile_context>

<pallas_src>
import functools

import jax
import jax.numpy as jnp
from jax.experimental import pallas as pl
from jax.experimental.pallas import tpu as pltpu


HIDDEN = 1024
EPS = 1e-5
LANE = 128
SUBLANE = 8


# ----------------------------- Pallas kernel --------------------------------
def _fused_mlp_kernel(x_ref, w_in_ref, b_in_ref, w_h_ref, s_h_ref, b_h_ref,
                      w_out_ref, b_out_ref, o_ref, act_ref):
    blk = pl.program_id(0)
    last = pl.num_programs(0) - 1
    l0 = 2 * blk                       # first hidden-layer index of this block

    # Grid step 0 also computes the input projection: relu(bn1(fc1(x))).
    @pl.when(blk == 0)
    def _():
        a0 = jnp.dot(x_ref[...].astype(jnp.bfloat16), w_in_ref[...],
                     preferred_element_type=jnp.float32) + b_in_ref[...]
        act_ref[...] = jnp.maximum(a0, 0.0)

    res = act_ref[...]                                   # residual-block input

    # Layer 1 of the block: relu(bn(fc(res)))  (int8 weights, dequant -> bf16;
    # per-column scale applied to the (B,H) matmul output, not the weights).
    w1 = w_h_ref[0].astype(jnp.bfloat16)
    h = jnp.dot(res.astype(jnp.bfloat16), w1, preferred_element_type=jnp.float32)
    h = jnp.maximum(h * s_h_ref[l0] + b_h_ref[l0], 0.0)

    # Layer 2 of the block + residual add (x + relu(bn2(fc2(...)))).
    w2 = w_h_ref[1].astype(jnp.bfloat16)
    h = jnp.dot(h.astype(jnp.bfloat16), w2, preferred_element_type=jnp.float32)
    h = jnp.maximum(h * s_h_ref[l0 + 1] + b_h_ref[l0 + 1], 0.0)

    y = res + h
    act_ref[...] = y

    # Last grid step also computes the output projection (plain linear).
    # o_ref has a constant-index out_spec: written once here, flushed to HBM
    # after the final (sequential / 'arbitrary') grid step.
    @pl.when(blk == last)
    def _():
        out = jnp.dot(y.astype(jnp.bfloat16), w_out_ref[...],
                      preferred_element_type=jnp.float32) + b_out_ref[...]
        o_ref[...] = out.astype(o_ref.dtype)


def _fused_mlp_call(x, w_in, b_in, w_h, s_h, b_h, w_out, b_out):
    B, K = x.shape
    L, H, _ = w_h.shape
    Np = w_out.shape[1]
    num_blocks = L // 2

    wh_index = lambda blk: (blk, 0, 0)
    if num_blocks >= 3:
        # Deeper pipelining only pays off when there are enough steps to hide.
        wh_spec = pl.BlockSpec((2, H, H), wh_index, pipeline_mode=pl.Buffered(3))
    else:
        wh_spec = pl.BlockSpec((2, H, H), wh_index)

    return pl.pallas_call(
        _fused_mlp_kernel,
        out_shape=jax.ShapeDtypeStruct((B, Np), jnp.float32),
        grid_spec=pltpu.PrefetchScalarGridSpec(
            num_scalar_prefetch=0,
            grid=(num_blocks,),
            in_specs=[
                pl.BlockSpec((B, K), lambda blk: (0, 0)),        # x (resident)
                pl.BlockSpec((K, H), lambda blk: (0, 0)),        # fc1 weight bf16
                pl.BlockSpec((1, H), lambda blk: (0, 0)),        # fc1 bias f32
                wh_spec,                                         # hidden W int8 (streamed)
                pl.BlockSpec((L, 1, H), lambda blk: (0, 0, 0)),  # hidden scales (resident)
                pl.BlockSpec((L, 1, H), lambda blk: (0, 0, 0)),  # hidden biases (resident)
                pl.BlockSpec((H, Np), lambda blk: (0, 0)),       # output weight bf16
                pl.BlockSpec((1, Np), lambda blk: (0, 0)),       # output bias f32
            ],
            out_specs=pl.BlockSpec((B, Np), lambda blk: (0, 0)),
            scratch_shapes=[
                pltpu.VMEM((B, H), jnp.float32),   # activation carried across blocks
            ],
        ),
        # Block axis is a sequential dependency chain through the VMEM scratch.
        compiler_params=pltpu.CompilerParams(
            dimension_semantics=("arbitrary",)),
    )(x, w_in, b_in, w_h, s_h, b_h, w_out, b_out)


# ----------------------------- parameter setup -------------------------------
def _fold_bn(gamma, beta, running_mean, running_var):
    scale = gamma / jnp.sqrt(running_var + EPS)
    shift = beta - running_mean * scale
    return scale, shift


def _quantize_cols(w_f):
    """Symmetric per-output-column int8 quantization of an (in, out) weight."""
    qs = jnp.maximum(jnp.max(jnp.abs(w_f), axis=0), 1e-8) / 127.0
    w_q = jnp.clip(jnp.round(w_f / qs[None, :]), -127.0, 127.0).astype(jnp.int8)
    return w_q, qs.astype(jnp.float32)


def init_params(key, input_size, output_size, num_blocks):
    """PyTorch-like f32 parameters (Linear weights stored as (in, out))."""
    def linear(k, fan_in, fan_out):
        k1, k2 = jax.random.split(k)
        lim = 1.0 / jnp.sqrt(fan_in)
        w_t = jax.random.uniform(k1, (fan_in, fan_out), jnp.float32, -lim, lim)
        b = jax.random.uniform(k2, (fan_out,), jnp.float32, -lim, lim)
        return w_t, b

    def bn(k, n):
        k1, k2, k3 = jax.random.split(k, 3)
        gamma = 1.0 + 0.1 * jax.random.normal(k1, (n,), jnp.float32)
        beta = 0.1 * jax.random.normal(k2, (n,), jnp.float32)
        rmean = 0.05 * jax.random.normal(k3, (n,), jnp.float32)
        rvar = jnp.ones((n,), jnp.float32) * 1.2
        return (gamma, beta, rmean, rvar)

    keys = jax.random.split(key, 4 + num_blocks)
    params = {
        "fc1": linear(keys[0], input_size, HIDDEN),
        "bn1": bn(keys[1], HIDDEN),
        "fc2": linear(keys[2], HIDDEN, output_size),
        "blocks": [],
    }
    for i in range(num_blocks):
        bk = jax.random.split(keys[4 + i], 4)
        params["blocks"].append({
            "fc1": linear(bk[0], HIDDEN, HIDDEN),
            "bn1": bn(bk[1], HIDDEN),
            "fc2": linear(bk[2], HIDDEN, HIDDEN),
            "bn2": bn(bk[3], HIDDEN),
        })
    return params


def prepare_params(params, output_size):
    """Fold BN into weights/bias, int8-quantize the hidden 1024x1024 weights
    (per output column), stack them, cast in/out projections to bf16, and pad
    the output projection to a lane-dense 128-multiple width."""
    assert len(params["blocks"]) >= 1, "fused kernel needs num_blocks >= 1"

    # Input projection: BN folded, bf16 (tiny, stays resident).
    w1_t, b1 = params["fc1"]
    scale1, shift1 = _fold_bn(*params["bn1"])
    w_in = (w1_t * scale1[None, :]).astype(jnp.bfloat16)
    b_in = (b1 * scale1 + shift1)[None, :].astype(jnp.float32)

    # Hidden layers: BN folded into the weight, then int8 per-column quant.
    w_h, s_h, b_h = [], [], []
    for blk in params["blocks"]:
        for (w_t, b), bn_p in ((blk["fc1"], blk["bn1"]), (blk["fc2"], blk["bn2"])):
            scale, shift = _fold_bn(*bn_p)
            w_folded = w_t * scale[None, :]
            w_q, qs = _quantize_cols(w_folded)
            w_h.append(w_q)
            s_h.append(qs)
            b_h.append((b * scale + shift).astype(jnp.float32))
    w_h = jnp.stack(w_h)                 # (L, 1024, 1024) int8
    s_h = jnp.stack(s_h)[:, None, :]     # (L, 1, 1024)    f32
    b_h = jnp.stack(b_h)[:, None, :]     # (L, 1, 1024)    f32

    # Output projection: lane-padded bf16.
    w2_t, b2 = params["fc2"]
    n_pad = (-output_size) % LANE
    w_out = jnp.pad(w2_t, ((0, 0), (0, n_pad))).astype(jnp.bfloat16)
    b_out = jnp.pad(b2, (0, n_pad))[None, :].astype(jnp.float32)

    return dict(w_in=w_in, b_in=b_in, w_h=w_h, s_h=s_h, b_h=b_h,
                w_out=w_out, b_out=b_out)


# ----------------------------- model forward ---------------------------------
@functools.partial(jax.jit, static_argnames=("output_size",))
def model_forward(fp, x, output_size):
    B = x.shape[0]
    b_pad = (-B) % SUBLANE
    xp = jnp.pad(x, ((0, b_pad), (0, 0))) if b_pad else x
    out = _fused_mlp_call(xp, fp["w_in"], fp["b_in"], fp["w_h"], fp["s_h"],
                          fp["b_h"], fp["w_out"], fp["b_out"])
    return out[:B, :output_size]


# Pure-JAX reference using the SAME prepared (BN-folded, int8) weights and the
# same op ordering — validates kernel plumbing to tight tolerance.
def model_forward_prepared_ref(fp, x, output_size):
    def mm(a, w):
        return jnp.dot(a.astype(jnp.bfloat16), w.astype(jnp.bfloat16),
                       preferred_element_type=jnp.float32)

    h = jax.nn.relu(mm(x, fp["w_in"]) + fp["b_in"])
    L = fp["w_h"].shape[0]
    for l0 in range(0, L, 2):
        res = h
        o = jax.nn.relu(mm(h, fp["w_h"][l0]) * fp["s_h"][l0] + fp["b_h"][l0])
        o = jax.nn.relu(mm(o, fp["w_h"][l0 + 1]) * fp["s_h"][l0 + 1] + fp["b_h"][l0 + 1])
        h = res + o
    out = mm(h, fp["w_out"]) + fp["b_out"]
    return out[:, :output_size]


# Full-precision, un-folded reference of the original PyTorch module (eval) —
# validates BN folding, residual placement and quantization error bound.
def model_forward_f32_ref(params, x):
    def bn_eval(h, bn_p):
        gamma, beta, mean, var = bn_p
        return (h - mean) * (gamma / jnp.sqrt(var + EPS)) + beta

    def lin(h, p):
        w_t, b = p
        return jnp.dot(h, w_t) + b

    h = jax.nn.relu(bn_eval(lin(x, params["fc1"]), params["bn1"]))
    for blk in params["blocks"]:
        o = jax.nn.relu(bn_eval(lin(h, blk["fc1"]), blk["bn1"]))
        o = jax.nn.relu(bn_eval(lin(o, blk["fc2"]), blk["bn2"]))
        h = h + o                          # x + out, as in ResidualBlock.forward
    return lin(h, params["fc2"])


# ----------------------------------- main -------------------------------------
if __name__ == "__main__":
    key = jax.random.PRNGKey(0)
    kx, kp = jax.random.split(key)

    batch = 8
    input_size = 32    # 16 joints x 2D
    output_size = 48   # 16 joints x 3D
    num_blocks = 2

    x = jax.random.normal(kx, (batch, input_size), jnp.float32)
    raw_params = init_params(kp, input_size, output_size, num_blocks)
    fp = prepare_params(raw_params, output_size)

    y = jax.block_until_ready(model_forward(fp, x, output_size))
    assert y.shape == (batch, output_size)

    # (1) Plumbing check: identical prepared weights + op ordering.
    y_prep = model_forward_prepared_ref(fp, x, output_size)
    assert jnp.allclose(y, y_prep, atol=2e-3, rtol=2e-3), "mismatch vs prepared ref"

    # (2) Semantic check vs the f32 un-folded PyTorch-equivalent reference
    #     (int8 weights + bf16 matmuls keep relative error ~1-2%).
    y_f32 = model_forward_f32_ref(raw_params, x)
    rel_err = jnp.linalg.norm(y - y_f32) / jnp.linalg.norm(y_f32)
    assert rel_err < 0.05, f"semantic mismatch vs f32 reference: rel_err={rel_err}"

    print("KERNEL_OK")
</pallas_src>

<mosaic_0001>
module attributes {stable_mosaic.version = 11 : i64} {
  func.func @_fused_mlp_kernel(%arg0: i32, %arg1: memref<8x32xf32, #tpu.memory_space<vmem>>, %arg2: memref<32x1024xbf16, #tpu.memory_space<vmem>>, %arg3: memref<1x1024xf32, #tpu.memory_space<vmem>>, %arg4: memref<2x1024x1024xi8, #tpu.memory_space<vmem>>, %arg5: memref<4x1x1024xf32, #tpu.memory_space<vmem>>, %arg6: memref<4x1x1024xf32, #tpu.memory_space<vmem>>, %arg7: memref<1024x128xbf16, #tpu.memory_space<vmem>>, %arg8: memref<1x128xf32, #tpu.memory_space<vmem>>, %arg9: memref<8x128xf32, #tpu.memory_space<vmem>>, %arg10: memref<8x1024xf32, #tpu.memory_space<vmem>>) attributes {dimension_semantics = [#tpu.dimension_semantics<arbitrary>], iteration_bounds = array<i64: 2>, scalar_prefetch = 0 : i64, scratch_operands = 1 : i64, tpu.core_type = #tpu.core_type<tc>, window_params = [{pipeline_mode = #tpu.pipeline_mode<synchronous>, transform_indices = @transform_0, window_bounds = array<i64: 8, 32>}, {pipeline_mode = #tpu.pipeline_mode<synchronous>, transform_indices = @transform_1, window_bounds = array<i64: 32, 1024>}, {pipeline_mode = #tpu.pipeline_mode<synchronous>, transform_indices = @transform_2, window_bounds = array<i64: 1, 1024>}, {transform_indices = @transform_3, window_bounds = array<i64: 2, 1024, 1024>}, {pipeline_mode = #tpu.pipeline_mode<synchronous>, transform_indices = @transform_4, window_bounds = array<i64: 4, 1, 1024>}, {pipeline_mode = #tpu.pipeline_mode<synchronous>, transform_indices = @transform_5, window_bounds = array<i64: 4, 1, 1024>}, {pipeline_mode = #tpu.pipeline_mode<synchronous>, transform_indices = @transform_6, window_bounds = array<i64: 1024, 128>}, {pipeline_mode = #tpu.pipeline_mode<synchronous>, transform_indices = @transform_7, window_bounds = array<i64: 1, 128>}, {pipeline_mode = #tpu.pipeline_mode<synchronous>, transform_indices = @transform_8, window_bounds = array<i64: 8, 128>}]} {
    %c2_i32 = arith.constant 2 : i32
    %0 = arith.muli %c2_i32, %arg0 : i32
    %c0_i32 = arith.constant 0 : i32
    %1 = arith.cmpi eq, %arg0, %c0_i32 : i32
    %2 = arith.extui %1 : i1 to i32
    %c0_i32_0 = arith.constant 0 : i32
    %3 = arith.cmpi ne, %2, %c0_i32_0 : i32
    scf.if %3 {
      %c0_23 = arith.constant 0 : index
      %c0_24 = arith.constant 0 : index
      %46 = vector.load %arg1[%c0_23, %c0_24] : memref<8x32xf32, #tpu.memory_space<vmem>>, vector<8x32xf32>
      %47 = arith.truncf %46 : vector<8x32xf32> to vector<8x32xbf16>
      %c0_25 = arith.constant 0 : index
      %c0_26 = arith.constant 0 : index
      %48 = vector.load %arg2[%c0_25, %c0_26] : memref<32x1024xbf16, #tpu.memory_space<vmem>>, vector<32x1024xbf16>
      %cst_27 = arith.constant dense<0.000000e+00> : vector<8x1024xf32>
      %49 = tpu.matmul %47, %48, %cst_27 {dimension_numbers = #tpu.dot_dimension_numbers<[1], [0], [0], [1], [0, 0, 1, 1], [], []>} : vector<8x32xbf16>, vector<32x1024xbf16>, vector<8x1024xf32> -> vector<8x1024xf32>
      %c0_28 = arith.constant 0 : index
      %c0_29 = arith.constant 0 : index
      %50 = vector.load %arg3[%c0_28, %c0_29] : memref<1x1024xf32, #tpu.memory_space<vmem>>, vector<1x1024xf32>
      %51 = vector.broadcast %50 : vector<1x1024xf32> to vector<8x1024xf32>
      %52 = arith.addf %49, %51 : vector<8x1024xf32>
      %cst_30 = arith.constant 0.000000e+00 : f32
      %53 = vector.broadcast %cst_30 : f32 to vector<8x1024xf32>
      %54 = arith.maximumf %52, %53 : vector<8x1024xf32>
      %c0_31 = arith.constant 0 : index
      %c0_32 = arith.constant 0 : index
      %55 = vector.load %arg10[%c0_31, %c0_32] : memref<8x1024xf32, #tpu.memory_space<vmem>>, vector<8x1024xf32>
      tpu.vector_store %arg10[%c0_31, %c0_32], %54 {strides = array<i32>} : memref<8x1024xf32, #tpu.memory_space<vmem>>, vector<8x1024xf32>,
    } else {
    }
    %c0 = arith.constant 0 : index
    %c0_1 = arith.constant 0 : index
    %4 = vector.load %arg10[%c0, %c0_1] : memref<8x1024xf32, #tpu.memory_space<vmem>>, vector<8x1024xf32>
    %c0_2 = arith.constant 0 : index
    %c0_3 = arith.constant 0 : index
    %c0_4 = arith.constant 0 : index
    %5 = vector.load %arg4[%c0_2, %c0_3, %c0_4] : memref<2x1024x1024xi8, #tpu.memory_space<vmem>>, vector<1x1024x1024xi8>
    %6 = vector.shape_cast %5 : vector<1x1024x1024xi8> to vector<1024x1024xi8>
    %7 = arith.sitofp %6 : vector<1024x1024xi8> to vector<1024x1024xbf16>
    %8 = arith.truncf %4 : vector<8x1024xf32> to vector<8x1024xbf16>
    %cst = arith.constant dense<0.000000e+00> : vector<8x1024xf32>
    %9 = tpu.matmul %8, %7, %cst {dimension_numbers = #tpu.dot_dimension_numbers<[1], [0], [0], [1], [0, 0, 1, 1], [], []>} : vector<8x1024xbf16>, vector<1024x1024xbf16>, vector<8x1024xf32> -> vector<8x1024xf32>
    %10 = arith.index_cast %0 : i32 to index
    %c0_5 = arith.constant 0 : index
    %c0_6 = arith.constant 0 : index
    %11 = vector.load %arg5[%10, %c0_5, %c0_6] : memref<4x1x1024xf32, #tpu.memory_space<vmem>>, vector<1x1x1024xf32>
    %12 = vector.shape_cast %11 : vector<1x1x1024xf32> to vector<1x1024xf32>
    %13 = vector.broadcast %12 : vector<1x1024xf32> to vector<8x1024xf32>
    %14 = arith.mulf %9, %13 : vector<8x1024xf32>
    %15 = arith.index_cast %0 : i32 to index
    %c0_7 = arith.constant 0 : index
    %c0_8 = arith.constant 0 : index
    %16 = vector.load %arg6[%15, %c0_7, %c0_8] : memref<4x1x1024xf32, #tpu.memory_space<vmem>>, vector<1x1x1024xf32>
    %17 = vector.shape_cast %16 : vector<1x1x1024xf32> to vector<1x1024xf32>
    %18 = vector.broadcast %17 : vector<1x1024xf32> to vector<8x1024xf32>
    %19 = arith.addf %14, %18 : vector<8x1024xf32>
    %cst_9 = arith.constant 0.000000e+00 : f32
    %20 = vector.broadcast %cst_9 : f32 to vector<8x1024xf32>
    %21 = arith.maximumf %19, %20 : vector<8x1024xf32>
    %c1 = arith.constant 1 : index
    %c0_10 = arith.constant 0 : index
    %c0_11 = arith.constant 0 : index
    %22 = vector.load %arg4[%c1, %c0_10, %c0_11] : memref<2x1024x1024xi8, #tpu.memory_space<vmem>>, vector<1x1024x1024xi8>
    %23 = vector.shape_cast %22 : vector<1x1024x1024xi8> to vector<1024x1024xi8>
    %24 = arith.sitofp %23 : vector<1024x1024xi8> to vector<1024x1024xbf16>
    %25 = arith.truncf %21 : vector<8x1024xf32> to vector<8x1024xbf16>
    %cst_12 = arith.constant dense<0.000000e+00> : vector<8x1024xf32>
    %26 = tpu.matmul %25, %24, %cst_12 {dimension_numbers = #tpu.dot_dimension_numbers<[1], [0], [0], [1], [0, 0, 1, 1], [], []>} : vector<8x1024xbf16>, vector<1024x1024xbf16>, vector<8x1024xf32> -> vector<8x1024xf32>
    %c1_i32 = arith.constant 1 : i32
    %27 = arith.addi %0, %c1_i32 : i32
    %28 = arith.index_cast %27 : i32 to index
    %c0_13 = arith.constant 0 : index
    %c0_14 = arith.constant 0 : index
    %29 = vector.load %arg5[%28, %c0_13, %c0_14] : memref<4x1x1024xf32, #tpu.memory_space<vmem>>, vector<1x1x1024xf32>
    %30 = vector.shape_cast %29 : vector<1x1x1024xf32> to vector<1x1024xf32>
    %31 = vector.broadcast %30 : vector<1x1024xf32> to vector<8x1024xf32>
    %32 = arith.mulf %26, %31 : vector<8x1024xf32>
    %c1_i32_15 = arith.constant 1 : i32
    %33 = arith.addi %0, %c1_i32_15 : i32
    %34 = arith.index_cast %33 : i32 to index
    %c0_16 = arith.constant 0 : index
    %c0_17 = arith.constant 0 : index
    %35 = vector.load %arg6[%34, %c0_16, %c0_17] : memref<4x1x1024xf32, #tpu.memory_space<vmem>>, vector<1x1x1024xf32>
    %36 = vector.shape_cast %35 : vector<1x1x1024xf32> to vector<1x1024xf32>
    %37 = vector.broadcast %36 : vector<1x1024xf32> to vector<8x1024xf32>
    %38 = arith.addf %32, %37 : vector<8x1024xf32>
    %cst_18 = arith.constant 0.000000e+00 : f32
    %39 = vector.broadcast %cst_18 : f32 to vector<8x1024xf32>
    %40 = arith.maximumf %38, %39 : vector<8x1024xf32>
    %41 = arith.addf %4, %40 : vector<8x1024xf32>
    %c0_19 = arith.constant 0 : index
    %c0_20 = arith.constant 0 : index
    %42 = vector.load %arg10[%c0_19, %c0_20] : memref<8x1024xf32, #tpu.memory_space<vmem>>, vector<8x1024xf32>
    tpu.vector_store %arg10[%c0_19, %c0_20], %41 {strides = array<i32>} : memref<8x1024xf32, #tpu.memory_space<vmem>>, vector<8x1024xf32>,
    %c1_i32_21 = arith.constant 1 : i32
    %43 = arith.cmpi eq, %arg0, %c1_i32_21 : i32
    %44 = arith.extui %43 : i1 to i32
    %c0_i32_22 = arith.constant 0 : i32
    %45 = arith.cmpi ne, %44, %c0_i32_22 : i32
    scf.if %45 {
      %46 = arith.truncf %41 : vector<8x1024xf32> to vector<8x1024xbf16>
      %c0_23 = arith.constant 0 : index
      %c0_24 = arith.constant 0 : index
      %47 = vector.load %arg7[%c0_23, %c0_24] : memref<1024x128xbf16, #tpu.memory_space<vmem>>, vector<1024x128xbf16>
      %cst_25 = arith.constant dense<0.000000e+00> : vector<8x128xf32>
      %48 = tpu.matmul %46, %47, %cst_25 {dimension_numbers = #tpu.dot_dimension_numbers<[1], [0], [0], [1], [0, 0, 1, 1], [], []>} : vector<8x1024xbf16>, vector<1024x128xbf16>, vector<8x128xf32> -> vector<8x128xf32>
      %c0_26 = arith.constant 0 : index
      %c0_27 = arith.constant 0 : index
      %49 = vector.load %arg8[%c0_26, %c0_27] : memref<1x128xf32, #tpu.memory_space<vmem>>, vector<1x128xf32>
      %50 = vector.broadcast %49 : vector<1x128xf32> to vector<8x128xf32>
      %51 = arith.addf %48, %50 : vector<8x128xf32>
      %c0_28 = arith.constant 0 : index
      %c0_29 = arith.constant 0 : index
      %52 = vector.load %arg9[%c0_28, %c0_29] : memref<8x128xf32, #tpu.memory_space<vmem>>, vector<8x128xf32>
      tpu.vector_store %arg9[%c0_28, %c0_29], %51 {strides = array<i32>} : memref<8x128xf32, #tpu.memory_space<vmem>>, vector<8x128xf32>,
    } else {
    }
    return
  }
  func.func @transform_0(%arg0: i32) -> (i32, i32) {
    %c0_i32 = arith.constant 0 : i32
    %c0_i32_0 = arith.constant 0 : i32
    %c0_i32_1 = arith.constant 0 : i32
    return %c0_i32, %c0_i32_0 : i32, i32
  }
  func.func @transform_1(%arg0: i32) -> (i32, i32) {
    %c0_i32 = arith.constant 0 : i32
    %c0_i32_0 = arith.constant 0 : i32
    %c0_i32_1 = arith.constant 0 : i32
    return %c0_i32, %c0_i32_0 : i32, i32
  }
  func.func @transform_2(%arg0: i32) -> (i32, i32) {
    %c0_i32 = arith.constant 0 : i32
    %c0_i32_0 = arith.constant 0 : i32
    %c0_i32_1 = arith.constant 0 : i32
    return %c0_i32, %c0_i32_0 : i32, i32
  }
  func.func @transform_3(%arg0: i32) -> (i32, i32, i32) {
    %c0_i32 = arith.constant 0 : i32
    %c0_i32_0 = arith.constant 0 : i32
    %c0_i32_1 = arith.constant 0 : i32
    return %arg0, %c0_i32, %c0_i32_0 : i32, i32, i32
  }
  func.func @transform_4(%arg0: i32) -> (i32, i32, i32) {
    %c0_i32 = arith.constant 0 : i32
    %c0_i32_0 = arith.constant 0 : i32
    %c0_i32_1 = arith.constant 0 : i32
    %c0_i32_2 = arith.constant 0 : i32
    return %c0_i32, %c0_i32_0, %c0_i32_1 : i32, i32, i32
  }
  func.func @transform_5(%arg0: i32) -> (i32, i32, i32) {
    %c0_i32 = arith.constant 0 : i32
    %c0_i32_0 = arith.constant 0 : i32
    %c0_i32_1 = arith.constant 0 : i32
    %c0_i32_2 = arith.constant 0 : i32
    return %c0_i32, %c0_i32_0, %c0_i32_1 : i32, i32, i32
  }
  func.func @transform_6(%arg0: i32) -> (i32, i32) {
    %c0_i32 = arith.constant 0 : i32
    %c0_i32_0 = arith.constant 0 : i32
    %c0_i32_1 = arith.constant 0 : i32
    return %c0_i32, %c0_i32_0 : i32, i32
  }
  func.func @transform_7(%arg0: i32) -> (i32, i32) {
    %c0_i32 = arith.constant 0 : i32
    %c0_i32_0 = arith.constant 0 : i32
    %c0_i32_1 = arith.constant 0 : i32
    return %c0_i32, %c0_i32_0 : i32, i32
  }
  func.func @transform_8(%arg0: i32) -> (i32, i32) {
    %c0_i32 = arith.constant 0 : i32
    %c0_i32_0 = arith.constant 0 : i32
    %c0_i32_1 = arith.constant 0 : i32
    return %c0_i32, %c0_i32_0 : i32, i32
  }
}

</mosaic_0001>

<llo_original>
// kernel: model_forward.1
$region0: #{model_forward.1}
  #allocation0 [shape = 'u32[]', space=smem, size = 0x4, offset = 0x4, fixed_abs, tag = 'smem constant byte address 0x4 - core index']
  #allocation1 [shape = 'u32[144,128]{1,0:T(1,128)}', space=vmem, size = 0x12000, scoped, tag = 'internal scratch']
  #allocation2 [shape = 'f32[8,1024]{1,0:T(8,128)}', space=vmem, size = 0x8000, scoped, tag = 'scratch operand']
  %s0 = inlined_call_operand.hbm [shape: f32[8,32], index: 0, kind: input, shape index: {}]
  %s1 = inlined_call_operand.hbm [shape: bf16[32,1024], index: 1, kind: input, shape index: {}]
  %s2 = inlined_call_operand.hbm [shape: f32[1,1024], index: 2, kind: input, shape index: {}]
  %s3 = inlined_call_operand.hbm [shape: s8[4,1024,1024], index: 3, kind: input, shape index: {}]
  %s4 = inlined_call_operand.hbm [shape: f32[4,1,1024], index: 4, kind: input, shape index: {}]
  %s5 = inlined_call_operand.hbm [shape: f32[4,1,1024], index: 5, kind: input, shape index: {}]
  %s6 = inlined_call_operand.hbm [shape: bf16[1024,128], index: 6, kind: input, shape index: {}]
  %s7 = inlined_call_operand.hbm [shape: f32[1,128], index: 7, kind: input, shape index: {}]
  %s8 = inlined_call_operand.hbm [shape: f32[8,128], index: 8, kind: output, shape index: {}]
  %s9 = sld [smem:[#allocation0]]
  $region105: #{model_forward.1} parent=0
    _
  %s11 = ssub.s32 1, %s9
  %s12 = scalar_select 0, %s11, %s9
  $region1: #{model_forward.1} parent=0
    #allocation3 [shape = 'u8[4096]{0}', space=vmem, size = 0x1000, scoped, tag = 'input window, operand 0, single buffered']
    #allocation4 [shape = 's32[2]{0}', space=sflag, size = 0x8, scoped, tag = 'scoped memory for model_forward.1']
    #allocation5 [shape = 's32[2]{0}', space=sflag, size = 0x8, scoped, tag = 'scoped memory for model_forward.1']
    #allocation6 [shape = 'u8[65536]{0}', space=vmem, size = 0x10000, scoped, tag = 'input window, operand 1, single buffered']
    #allocation7 [shape = 's32[1]{0}', space=sflag, size = 0x4, scoped, tag = 'scoped memory for model_forward.1']
    #allocation8 [shape = 'u8[4096]{0}', space=vmem, size = 0x1000, scoped, tag = 'input window, operand 2, single buffered']
    #allocation9 [shape = 'u8[4194304]{0}', space=vmem, size = 0x400000, scoped, tag = 'input window, operand 3']
    #allocation10 [shape = 's32[2]{0}', space=sflag, size = 0x8, scoped, tag = 'scoped memory for model_forward.1']
    #allocation11 [shape = 'u8[16384]{0}', space=vmem, size = 0x4000, scoped, tag = 'input window, operand 4, single buffered']
    #allocation12 [shape = 'u8[16384]{0}', space=vmem, size = 0x4000, scoped, tag = 'input window, operand 5, single buffered']
    #allocation13 [shape = 's32[1]{0}', space=sflag, size = 0x4, scoped, tag = 'scoped memory for model_forward.1']
    #allocation14 [shape = 'u8[262144]{0}', space=vmem, size = 0x40000, scoped, tag = 'input window, operand 6, single buffered']
    #allocation15 [shape = 'u8[512]{0}', space=vmem, size = 0x400, scoped, tag = 'input window, operand 7, single buffered']
    #allocation16 [shape = 's32[1]{0}', space=sflag, size = 0x4, scoped, tag = 'scoped memory for model_forward.1']
    #allocation17 [shape = 'u8[4096]{0}', space=vmem, size = 0x1000, scoped, tag = 'output window, operand 0, single buffered']
    %13 = vsyncpa [#allocation4], 0
    %14 = vsyncpa [#allocation7], 0
    %15 = vsyncpa [#allocation10], 0
    %s16 = scalar_lea.sflag [#allocation10], 1
    %17 = vsyncpa %s16, 0
    %18 = vsyncpa [#allocation13], 0
    %19 = vsyncpa [#allocation16], 0
    %20 = vsyncpa [#allocation5], 0
    loop: start=0, step=1, limit=4
    $region2: #{model_forward.1} parent=1 // loop_pre_header
      _
    $region3: #{model_forward.1} parent=1 // loop_header
      %s22 = sphi 0, %s26
      %p23 = scmp.ge.s32.totalorder %s22, 4
      %s30 = sphi 0, %s30
      %s32 = sphi 0, %s30
      %s33 = sphi 0, %s32
      %s47 = sphi 0, %s33
      %s51 = sphi 0, %s51
      %s53 = sphi 0, %s51
      %s54 = sphi 0, %s53
      %s68 = sphi 0, %s54
      %s72 = sphi 0, %s72
      %s74 = sphi 0, %s72
      %s75 = sphi 0, %s74
      %s89 = sphi 0, %s75
      %s95 = sphi 0, %s97
      %s98 = sphi 0, %s95
      %s99 = sphi 0, %s98
      %s115 = sphi 0, %s99
      %s119 = sphi 0, %s119
      %s121 = sphi 0, %s119
      %s122 = sphi 0, %s121
      %s136 = sphi 0, %s122
      %s140 = sphi 0, %s140
      %s142 = sphi 0, %s140
      %s143 = sphi 0, %s142
      %s157 = sphi 0, %s143
      %s161 = sphi 0, %s161
      %s163 = sphi 0, %s161
      %s164 = sphi 0, %s163
      %s178 = sphi 0, %s164
      %s182 = sphi 0, %s182
      %s184 = sphi 0, %s182
      %s185 = sphi 0, %s184
      %s199 = sphi 0, %s185
      %s203 = sphi 0, %s203
      %s205 = sphi 0, %s203
      %s206 = sphi 0, %s205
      %s220 = sphi 0, %s206
    $region4: #{model_forward.1} parent=1 // loop_header_branch
      %25 = sbr.rel (%p23) target = $region8
    $region5: #{model_forward.1} parent=1 // loop_body
      %s27 = ssub.s32 %s22, 1
      %s28 = ssub.s32 %s22, 2
      %s29 = sadd.s32 %s22, 1
      %s31 = sadd.s32 %s30, 1
      %p34 = scmp.eq.s32.totalorder %s22, 1
      %p35 = scmp.ne.s32.totalorder %s30, %s32
      %p36 = scmp.eq.s32.totalorder %s22, 0
      %p37 = por %p35, %p36
      %p38 = scmp.ne.s32.totalorder %s30, %s32
      %p39 = scmp.eq.s32.totalorder %s27, 1
      %p40 = por %p38, %p39
      %p41 = scmp.ne.s32.totalorder %s32, %s33
      %p42 = scmp.eq.s32.totalorder %s27, 0
      %p43 = por %p41, %p42
      %p44 = scmp.ne.s32.totalorder %s32, %s33
      %p45 = scmp.eq.s32.totalorder %s28, 1
      %p46 = por %p44, %p45
      %p48 = scmp.ne.s32.totalorder %s33, %s47
      %p49 = scmp.eq.s32.totalorder %s28, 0
      %p50 = por %p48, %p49
      %s52 = sadd.s32 %s51, 1
      %p55 = scmp.eq.s32.totalorder %s22, 1
      %p56 = scmp.ne.s32.totalorder %s51, %s53
      %p57 = scmp.eq.s32.totalorder %s22, 0
      %p58 = por %p56, %p57
      %p59 = scmp.ne.s32.totalorder %s51, %s53
      %p60 = scmp.eq.s32.totalorder %s27, 1
      %p61 = por %p59, %p60
      %p62 = scmp.ne.s32.totalorder %s53, %s54
      %p63 = scmp.eq.s32.totalorder %s27, 0
      %p64 = por %p62, %p63
      %p65 = scmp.ne.s32.totalorder %s53, %s54
      %p66 = scmp.eq.s32.totalorder %s28, 1
      %p67 = por %p65, %p66
      %p69 = scmp.ne.s32.totalorder %s54, %s68
      %p70 = scmp.eq.s32.totalorder %s28, 0
      %p71 = por %p69, %p70
      %s73 = sadd.s32 %s72, 1
      %p76 = scmp.eq.s32.totalorder %s22, 1
      %p77 = scmp.ne.s32.totalorder %s72, %s74
      %p78 = scmp.eq.s32.totalorder %s22, 0
      %p79 = por %p77, %p78
      %p80 = scmp.ne.s32.totalorder %s72, %s74
      %p81 = scmp.eq.s32.totalorder %s27, 1
      %p82 = por %p80, %p81
      %p83 = scmp.ne.s32.totalorder %s74, %s75
      %p84 = scmp.eq.s32.totalorder %s27, 0
      %p85 = por %p83, %p84
      %p86 = scmp.ne.s32.totalorder %s74, %s75
      %p87 = scmp.eq.s32.totalorder %s28, 1
      %p88 = por %p86, %p87
      %p90 = scmp.ne.s32.totalorder %s75, %s89
      %p91 = scmp.eq.s32.totalorder %s28, 0
      %p92 = por %p90, %p91
      %s93 = ssub.s32 %s22, %s29
      %p94 = scmp.eq.s32.totalorder %s93, 0
      %s96 = sadd.s32 %s95, 1
      %s97 = scalar_select %p94, %s95, %s96
      %p100 = pneg %p94
      %p101 = scmp.eq.s32.totalorder %s22, 1
      %p102 = por %p100, %p101
      %p103 = scmp.ne.s32.totalorder %s95, %s98
      %p104 = scmp.eq.s32.totalorder %s22, 0
      %p105 = por %p103, %p104
      %p106 = scmp.ne.s32.totalorder %s95, %s98
      %p107 = scmp.eq.s32.totalorder %s27, 1
      %p108 = por %p106, %p107
      %p109 = scmp.ne.s32.totalorder %s98, %s99
      %p110 = scmp.eq.s32.totalorder %s27, 0
      %p111 = por %p109, %p110
      %p112 = scmp.ne.s32.totalorder %s98, %s99
      %p113 = scmp.eq.s32.totalorder %s28, 1
      %p114 = por %p112, %p113
      %p116 = scmp.ne.s32.totalorder %s99, %s115
      %p117 = scmp.eq.s32.totalorder %s28, 0
      %p118 = por %p116, %p117
      %s120 = sadd.s32 %s119, 1
      %p123 = scmp.eq.s32.totalorder %s22, 1
      %p124 = scmp.ne.s32.totalorder %s119, %s121
      %p125 = scmp.eq.s32.totalorder %s22, 0
      %p126 = por %p124, %p125
      %p127 = scmp.ne.s32.totalorder %s119, %s121
      %p128 = scmp.eq.s32.totalorder %s27, 1
      %p129 = por %p127, %p128
      %p130 = scmp.ne.s32.totalorder %s121, %s122
      %p131 = scmp.eq.s32.totalorder %s27, 0
      %p132 = por %p130, %p131
      %p133 = scmp.ne.s32.totalorder %s121, %s122
      %p134 = scmp.eq.s32.totalorder %s28, 1
      %p135 = por %p133, %p134
      %p137 = scmp.ne.s32.totalorder %s122, %s136
      %p138 = scmp.eq.s32.totalorder %s28, 0
      %p139 = por %p137, %p138
      %s141 = sadd.s32 %s140, 1
      %p144 = scmp.eq.s32.totalorder %s22, 1
      %p145 = scmp.ne.s32.totalorder %s140, %s142
      %p146 = scmp.eq.s32.totalorder %s22, 0
      %p147 = por %p145, %p146
      %p148 = scmp.ne.s32.totalorder %s140, %s142
      %p149 = scmp.eq.s32.totalorder %s27, 1
      %p150 = por %p148, %p149
      %p151 = scmp.ne.s32.totalorder %s142, %s143
      %p152 = scmp.eq.s32.totalorder %s27, 0
      %p153 = por %p151, %p152
      %p154 = scmp.ne.s32.totalorder %s142, %s143
      %p155 = scmp.eq.s32.totalorder %s28, 1
      %p156 = por %p154, %p155
      %p158 = scmp.ne.s32.totalorder %s143, %s157
      %p159 = scmp.eq.s32.totalorder %s28, 0
      %p160 = por %p158, %p159
      %s162 = sadd.s32 %s161, 1
      %p165 = scmp.eq.s32.totalorder %s22, 1
      %p166 = scmp.ne.s32.totalorder %s161, %s163
      %p167 = scmp.eq.s32.totalorder %s22, 0
      %p168 = por %p166, %p167
      %p169 = scmp.ne.s32.totalorder %s161, %s163
      %p170 = scmp.eq.s32.totalorder %s27, 1
      %p171 = por %p169, %p170
      %p172 = scmp.ne.s32.totalorder %s163, %s164
      %p173 = scmp.eq.s32.totalorder %s27, 0
      %p174 = por %p172, %p173
      %p175 = scmp.ne.s32.totalorder %s163, %s164
      %p176 = scmp.eq.s32.totalorder %s28, 1
      %p177 = por %p175, %p176
      %p179 = scmp.ne.s32.totalorder %s164, %s178
      %p180 = scmp.eq.s32.totalorder %s28, 0
      %p181 = por %p179, %p180
      %s183 = sadd.s32 %s182, 1
      %p186 = scmp.eq.s32.totalorder %s22, 1
      %p187 = scmp.ne.s32.totalorder %s182, %s184
      %p188 = scmp.eq.s32.totalorder %s22, 0
      %p189 = por %p187, %p188
      %p190 = scmp.ne.s32.totalorder %s182, %s184
      %p191 = scmp.eq.s32.totalorder %s27, 1
      %p192 = por %p190, %p191
      %p193 = scmp.ne.s32.totalorder %s184, %s185
      %p194 = scmp.eq.s32.totalorder %s27, 0
      %p195 = por %p193, %p194
      %p196 = scmp.ne.s32.totalorder %s184, %s185
      %p197 = scmp.eq.s32.totalorder %s28, 1
      %p198 = por %p196, %p197
      %p200 = scmp.ne.s32.totalorder %s185, %s199
      %p201 = scmp.eq.s32.totalorder %s28, 0
      %p202 = por %p200, %p201
      %s204 = sadd.s32 %s203, 1
      %p207 = scmp.eq.s32.totalorder %s22, 1
      %p208 = scmp.ne.s32.totalorder %s203, %s205
      %p209 = scmp.eq.s32.totalorder %s22, 0
      %p210 = por %p208, %p209
      %p211 = scmp.ne.s32.totalorder %s203, %s205
      %p212 = scmp.eq.s32.totalorder %s27, 1
      %p213 = por %p211, %p212
      %p214 = scmp.ne.s32.totalorder %s205, %s206
      %p215 = scmp.eq.s32.totalorder %s27, 0
      %p216 = por %p214, %p215
      %p217 = scmp.ne.s32.totalorder %s205, %s206
      %p218 = scmp.eq.s32.totalorder %s28, 1
      %p219 = por %p217, %p218
      %p221 = scmp.ne.s32.totalorder %s206, %s220
      %p222 = scmp.eq.s32.totalorder %s28, 0
      %p223 = por %p221, %p222
      %p224 = scmp.le.s32.totalorder 1, %s22
      %p225 = scmp.lt.s32.totalorder %s22, 3
      %p226 = pnand %p224, %p225
      %p227 = pneg %p226
      // Predicated region
      $region9: #{model_forward.1} parent=5 // pred_check
        _
      $region10: #{model_forward.1} parent=5 // pred_check_branch
        %229 = sbr.rel (%p226) target = $region12
      $region11: #{model_forward.1} parent=5 // pred_region
        %s230 = ssub.s32 %s22, 1
        // Predicated region
        $region13: #{model_forward.1} parent=11 // pred_check
          %p231 = pneg %p43
        $region14: #{model_forward.1} parent=11 // pred_check_branch
          %233 = sbr.rel (%p231) target = $region16
        $region15: #{model_forward.1} parent=11 // pred_region
          %s235 = ssub.s32 128, 128
          %236 = vsyncadd [#allocation4], %s235
          %s238 = sshll.u32 [#allocation3], 4
          %s239 = int_to_ptr.vmem [resolvable:$true] %s238
          %241 = dma.hbm_to_vmem [thread:$0]  %s0, 128, %s239, [#allocation4]
        $region16: #{model_forward.1} parent=11 // pred_fallthru
          _
        // Predicated region
        $region17: #{model_forward.1} parent=11 // pred_check
          %p242 = pneg %p64
        $region18: #{model_forward.1} parent=11 // pred_check_branch
          %244 = sbr.rel (%p242) target = $region20
        $region19: #{model_forward.1} parent=11 // pred_region
          %s246 = ssub.s32 2048, 2048
          %247 = vsyncadd [#allocation7], %s246
          %s248 = sshll.u32 [#allocation6], 4
          %s249 = int_to_ptr.vmem [resolvable:$true] %s248
          %254 = dma.hbm_to_vmem [thread:$0]  %s1, 2048, %s249, [#allocation7], 512, 512, 32
        $region20: #{model_forward.1} parent=11 // pred_fallthru
          _
        // Predicated region
        $region21: #{model_forward.1} parent=11 // pred_check
          %p255 = pneg %p85
        $region22: #{model_forward.1} parent=11 // pred_check_branch
          %257 = sbr.rel (%p255) target = $region24
        $region23: #{model_forward.1} parent=11 // pred_region
          %s259 = ssub.s32 128, 128
          %260 = vsyncadd [#allocation7], %s259
          %s262 = sshll.u32 [#allocation8], 4
          %s263 = int_to_ptr.vmem [resolvable:$true] %s262
          %265 = dma.hbm_to_vmem [thread:$0]  %s2, 128, %s263, [#allocation7]
        $region24: #{model_forward.1} parent=11 // pred_fallthru
          _
        // Predicated region
        $region25: #{model_forward.1} parent=11 // pred_check
          %p266 = pneg %p132
        $region26: #{model_forward.1} parent=11 // pred_check_branch
          %268 = sbr.rel (%p266) target = $region28
        $region27: #{model_forward.1} parent=11 // pred_region
          %s270 = ssub.s32 512, 512
          %271 = vsyncadd [#allocation10], %s270
          %s272 = sshll.u32 [#allocation11], 4
          %s273 = int_to_ptr.vmem [resolvable:$true] %s272
          %278 = dma.hbm_to_vmem [thread:$0]  %s4, 512, %s273, [#allocation10], 128, 128, 8
        $region28: #{model_forward.1} parent=11 // pred_fallthru
          _
        // Predicated region
        $region29: #{model_forward.1} parent=11 // pred_check
          %p279 = pneg %p153
        $region30: #{model_forward.1} parent=11 // pred_check_branch
          %281 = sbr.rel (%p279) target = $region32
        $region31: #{model_forward.1} parent=11 // pred_region
          %s283 = ssub.s32 512, 512
          %284 = vsyncadd [#allocation13], %s283
          %s285 = sshll.u32 [#allocation12], 4
          %s286 = int_to_ptr.vmem [resolvable:$true] %s285
          %291 = dma.hbm_to_vmem [thread:$0]  %s5, 512, %s286, [#allocation13], 128, 128, 8
        $region32: #{model_forward.1} parent=11 // pred_fallthru
          _
        // Predicated region
        $region33: #{model_forward.1} parent=11 // pred_check
          %p292 = pneg %p174
        $region34: #{model_forward.1} parent=11 // pred_check_branch
          %294 = sbr.rel (%p292) target = $region36
        $region35: #{model_forward.1} parent=11 // pred_region
          %s296 = ssub.s32 8192, 8192
          %297 = vsyncadd [#allocation13], %s296
          %s298 = sshll.u32 [#allocation14], 4
          %s299 = int_to_ptr.vmem [resolvable:$true] %s298
          %304 = dma.hbm_to_vmem [thread:$0]  %s6, 8192, %s299, [#allocation13], 64, 64, 4
        $region36: #{model_forward.1} parent=11 // pred_fallthru
          _
        // Predicated region
        $region37: #{model_forward.1} parent=11 // pred_check
          %p305 = pneg %p195
        $region38: #{model_forward.1} parent=11 // pred_check_branch
          %307 = sbr.rel (%p305) target = $region40
        $region39: #{model_forward.1} parent=11 // pred_region
          %s309 = ssub.s32 16, 16
          %310 = vsyncadd [#allocation16], %s309
          %s312 = sshll.u32 [#allocation15], 4
          %s313 = int_to_ptr.vmem [resolvable:$true] %s312
          %315 = dma.hbm_to_vmem [thread:$0]  %s7, 16, %s313, [#allocation16]
        $region40: #{model_forward.1} parent=11 // pred_fallthru
          _
      $region12: #{model_forward.1} parent=5 // pred_fallthru
        _
      %p316 = scmp.lt.s32.totalorder %s22, 2
      // Predicated region
      $region41: #{model_forward.1} parent=5 // pred_check
        %p317 = pneg %p316
      $region42: #{model_forward.1} parent=5 // pred_check_branch
        %319 = sbr.rel (%p317) target = $region44
      $region43: #{model_forward.1} parent=5 // pred_region
        // Predicated region
        $region45: #{model_forward.1} parent=43 // pred_check
          %p320 = pneg %p105
        $region46: #{model_forward.1} parent=43 // pred_check_branch
          %322 = sbr.rel (%p320) target = $region48
        $region47: #{model_forward.1} parent=43 // pred_region
          %s323 = sand.u32 %s22, 1
          %s324 = scalar_lea.sflag [#allocation10], %s323
          %s325 = sand.u32 %s95, 1
          %s326 = smul.addr %s325, 4096
          %s327 = scalar_lea.vmem [#allocation9], %s326
          %s328 = smul.u32 2, %s22
          %s330 = ssub.s32 65536, 65536
          %331 = vsyncadd %s324, %s330
          %s332 = smul.addr %s328, 256
          %s333 = smul.addr %s332, 128
          %s334 = scalar_lea.hbm %s3, %s333
          %s335 = sshll.u32 %s327, 4
          %s336 = int_to_ptr.vmem [resolvable:$true] %s335
          %341 = dma.hbm_to_vmem [thread:$0]  %s334, 65536, %s336, %s324, 1024, 1024, 64
        $region48: #{model_forward.1} parent=43 // pred_fallthru
          _
      $region44: #{model_forward.1} parent=5 // pred_fallthru
        _
      %p342 = scmp.le.s32.totalorder 1, %s22
      %p343 = scmp.lt.s32.totalorder %s22, 3
      %p344 = pnand %p342, %p343
      %p345 = pneg %p344
      // Predicated region
      $region49: #{model_forward.1} parent=5 // pred_check
        _
      $region50: #{model_forward.1} parent=5 // pred_check_branch
        %347 = sbr.rel (%p344) target = $region52
      $region51: #{model_forward.1} parent=5 // pred_region
        %s348 = ssub.s32 %s22, 1
        // Predicated region
        $region53: #{model_forward.1} parent=51 // pred_check
          %p349 = pneg %p43
        $region54: #{model_forward.1} parent=51 // pred_check_branch
          %351 = sbr.rel (%p349) target = $region56
        $region55: #{model_forward.1} parent=51 // pred_region
          %352 = dma.done [#allocation4], 128
        $region56: #{model_forward.1} parent=51 // pred_fallthru
          _
        // Predicated region
        $region57: #{model_forward.1} parent=51 // pred_check
          %p353 = pneg %p64
        $region58: #{model_forward.1} parent=51 // pred_check_branch
          %355 = sbr.rel (%p353) target = $region60
        $region59: #{model_forward.1} parent=51 // pred_region
          %356 = dma.done [#allocation7], 2048
        $region60: #{model_forward.1} parent=51 // pred_fallthru
          _
        // Predicated region
        $region61: #{model_forward.1} parent=51 // pred_check
          %p357 = pneg %p85
        $region62: #{model_forward.1} parent=51 // pred_check_branch
          %359 = sbr.rel (%p357) target = $region64
        $region63: #{model_forward.1} parent=51 // pred_region
          %360 = dma.done [#allocation7], 128
        $region64: #{model_forward.1} parent=51 // pred_fallthru
          _
        %s361 = sand.u32 %s27, 1
        %s362 = scalar_lea.sflag [#allocation10], %s361
        %s363 = sand.u32 %s98, 1
        %s364 = smul.addr %s363, 4096
        %s365 = scalar_lea.vmem [#allocation9], %s364
        // Predicated region
        $region65: #{model_forward.1} parent=51 // pred_check
          %p366 = pneg %p111
        $region66: #{model_forward.1} parent=51 // pred_check_branch
          %368 = sbr.rel (%p366) target = $region68
        $region67: #{model_forward.1} parent=51 // pred_region
          %369 = dma.done %s362, 65536
        $region68: #{model_forward.1} parent=51 // pred_fallthru
          _
        // Predicated region
        $region69: #{model_forward.1} parent=51 // pred_check
          %p370 = pneg %p132
        $region70: #{model_forward.1} parent=51 // pred_check_branch
          %372 = sbr.rel (%p370) target = $region72
        $region71: #{model_forward.1} parent=51 // pred_region
          %373 = dma.done [#allocation10], 512
        $region72: #{model_forward.1} parent=51 // pred_fallthru
          _
        // Predicated region
        $region73: #{model_forward.1} parent=51 // pred_check
          %p374 = pneg %p153
        $region74: #{model_forward.1} parent=51 // pred_check_branch
          %376 = sbr.rel (%p374) target = $region76
        $region75: #{model_forward.1} parent=51 // pred_region
          %377 = dma.done [#allocation13], 512
        $region76: #{model_forward.1} parent=51 // pred_fallthru
          _
        // Predicated region
        $region77: #{model_forward.1} parent=51 // pred_check
          %p378 = pneg %p174
        $region78: #{model_forward.1} parent=51 // pred_check_branch
          %380 = sbr.rel (%p378) target = $region80
        $region79: #{model_forward.1} parent=51 // pred_region
          %381 = dma.done [#allocation13], 8192
        $region80: #{model_forward.1} parent=51 // pred_fallthru
          _
        // Predicated region
        $region81: #{model_forward.1} parent=51 // pred_check
          %p382 = pneg %p195
        $region82: #{model_forward.1} parent=51 // pred_check_branch
          %384 = sbr.rel (%p382) target = $region84
        $region83: #{model_forward.1} parent=51 // pred_region
          %385 = dma.done [#allocation16], 16
        $region84: #{model_forward.1} parent=51 // pred_fallthru
          _
        %p386 = pneg %p43
        %p387 = pneg %p40
        %p388 = pneg %p64
        %p389 = pneg %p61
        %p390 = pneg %p85
        %p391 = pneg %p82
        %s392 = sand.u32 %s27, 1
        %s393 = scalar_lea.sflag [#allocation10], %s392
        %s394 = sand.u32 %s98, 1
        %s395 = smul.addr %s394, 4096
        %s396 = scalar_lea.vmem [#allocation9], %s395
        %p397 = pneg %p111
        %p398 = pneg %p108
        %p399 = pneg %p132
        %p400 = pneg %p129
        %p401 = pneg %p153
        %p402 = pneg %p150
        %p403 = pneg %p174
        %p404 = pneg %p171
        %p405 = pneg %p195
        %p406 = pneg %p192
        %p407 = pneg %p216
        %p408 = pneg %p213
        %s409 = smul.u32 2, %s27
        %s411 = smul.u32 %s27, 2
        %p412 = scmp.eq.s32.totalorder %s27, 0
        // Predicated region
        $region85: #{model_forward.1} parent=51 // pred_check
          %p413 = pneg %p412
        $region86: #{model_forward.1} parent=51 // pred_check_branch
          %415 = sbr.rel (%p413) target = $region88
        $region87: #{model_forward.1} parent=51 // pred_region
          %v416 = vld [vmem:[#allocation3] sm:$0xff]
          %v417 = vpack.c.bf16 %v416, %v416
          %v418 = vld [vmem:[#allocation6] sm:$0xff]
          %v419 = vld [vmem:[#allocation6 + $0x8] sm:$0xff]
          %v420 = vld [vmem:[#allocation6 + $0x10] sm:$0xff]
          %v421 = vld [vmem:[#allocation6 + $0x18] sm:$0xff]
          %v422 = vld [vmem:[#allocation6 + $0x20] sm:$0xff]
          %v423 = vld [vmem:[#allocation6 + $0x28] sm:$0xff]
          %v424 = vld [vmem:[#allocation6 + $0x30] sm:$0xff]
          %v425 = vld [vmem:[#allocation6 + $0x38] sm:$0xff]
          %v426 = vld [vmem:[#allocation6 + $0x40] sm:$0xff]
          %v427 = vld [vmem:[#allocation6 + $0x48] sm:$0xff]
          %v428 = vld [vmem:[#allocation6 + $0x50] sm:$0xff]
          %v429 = vld [vmem:[#allocation6 + $0x58] sm:$0xff]
          %v430 = vld [vmem:[#allocation6 + $0x60] sm:$0xff]
          %v431 = vld [vmem:[#allocation6 + $0x68] sm:$0xff]
          %v432 = vld [vmem:[#allocation6 + $0x70] sm:$0xff]
          %v433 = vld [vmem:[#allocation6 + $0x78] sm:$0xff]
          %v434 = vld [vmem:[#allocation8] sm:$0xff]
          %v436 = vlaneseq
          %v437 = vshrl.u32 %v436, 7
          %v438 = vsub.s32 0, %v437
          %v439 = vrot.slane %v434, %v438
          %v440 = vlaneseq
          %v441 = vshrl.u32 %v440, 7
          %v442 = vsub.s32 1, %v441
          %v443 = vrot.slane %v434, %v442
          %v444 = vlaneseq
          %v445 = vshrl.u32 %v444, 7
          %v446 = vsub.s32 2, %v445
          %v447 = vrot.slane %v434, %v446
          %v448 = vlaneseq
          %v449 = vshrl.u32 %v448, 7
          %v450 = vsub.s32 3, %v449
          %v451 = vrot.slane %v434, %v450
          %v452 = vlaneseq
          %v453 = vshrl.u32 %v452, 7
          %v454 = vsub.s32 4, %v453
          %v455 = vrot.slane %v434, %v454
          %v456 = vlaneseq
          %v457 = vshrl.u32 %v456, 7
          %v458 = vsub.s32 5, %v457
          %v459 = vrot.slane %v434, %v458
          %v460 = vlaneseq
          %v461 = vshrl.u32 %v460, 7
          %v462 = vsub.s32 6, %v461
          %v463 = vrot.slane %v434, %v462
          %v464 = vlaneseq
          %v465 = vshrl.u32 %v464, 7
          %v466 = vsub.s32 7, %v465
          %v467 = vrot.slane %v434, %v466
          %v492 = vunpack.c.l.b16 %v418
          %v493 = vunpack.c.h.b16 %v418
          %v494 = vunpack.c.l.b16 %v419
          %v495 = vunpack.c.h.b16 %v419
          %v496 = vunpack.c.l.b16 %v420
          %v497 = vunpack.c.h.b16 %v420
          %v498 = vunpack.c.l.b16 %v421
          %v499 = vunpack.c.h.b16 %v421
          %v500 = vunpack.c.l.b16 %v422
          %v501 = vunpack.c.h.b16 %v422
          %v502 = vunpack.c.l.b16 %v423
          %v503 = vunpack.c.h.b16 %v423
          %v504 = vunpack.c.l.b16 %v424
          %v505 = vunpack.c.h.b16 %v424
          %v506 = vunpack.c.l.b16 %v425
          %v507 = vunpack.c.h.b16 %v425
          %v508 = vunpack.c.l.b16 %v426
          %v509 = vunpack.c.h.b16 %v426
          %v510 = vunpack.c.l.b16 %v427
          %v511 = vunpack.c.h.b16 %v427
          %v512 = vunpack.c.l.b16 %v428
          %v513 = vunpack.c.h.b16 %v428
          %v514 = vunpack.c.l.b16 %v429
          %v515 = vunpack.c.h.b16 %v429
          %v516 = vunpack.c.l.b16 %v430
          %v517 = vunpack.c.h.b16 %v430
          %v518 = vunpack.c.l.b16 %v431
          %v519 = vunpack.c.h.b16 %v431
          %v520 = vunpack.c.l.b16 %v432
          %v521 = vunpack.c.h.b16 %v432
          %v522 = vunpack.c.l.b16 %v433
          %v523 = vunpack.c.h.b16 %v433
          %v524 = vpack.c.b16 %v500, %v492
          %v525 = vpack.c.b16 %v501, %v493
          %v526 = vpack.c.b16 %v502, %v494
          %v527 = vpack.c.b16 %v503, %v495
          %v528 = vpack.c.b16 %v504, %v496
          %v529 = vpack.c.b16 %v505, %v497
          %v530 = vpack.c.b16 %v506, %v498
          %v531 = vpack.c.b16 %v507, %v499
          %v532 = vpack.c.b16 %v516, %v508
          %v533 = vpack.c.b16 %v517, %v509
          %v534 = vpack.c.b16 %v518, %v510
          %v535 = vpack.c.b16 %v519, %v511
          %v536 = vpack.c.b16 %v520, %v512
          %v537 = vpack.c.b16 %v521, %v513
          %v538 = vpack.c.b16 %v522, %v514
          %v539 = vpack.c.b16 %v523, %v515
          %vm556 = vcmask 261120
          %v558 = vsel %vm556, %v417, 0
          %560 = vmatprep.subr.bf16.mxu0 %v525
          %561 = vmatpush1.bf16.msra.mxu0 %v524
          %562 = vmatprep.subr.bf16.mxu0 %v533
          %563 = vmatpush1.bf16.msra.mxu0 %v532
          %564 = vmatprep.subr.bf16.mxu0 0
          %565 = vmatpush1.bf16.msra.mxu0 0
          %566 = vmatprep.subr.bf16.mxu0 0
          %567 = vmatpush1.bf16.msra.mxu0 0
          %568 = vmatprep.subr.bf16.mxu0 0
          %569 = vmatpush1.bf16.msra.mxu0 0
          %570 = vmatprep.subr.bf16.mxu0 0
          %571 = vmatpush1.bf16.msra.mxu0 0
          %572 = vmatprep.subr.bf16.mxu0 0
          %573 = vmatpush1.bf16.msra.mxu0 0
          %574 = vmatprep.subr.bf16.mxu0 0
          %575 = vmatpush1.bf16.msra.mxu0 0
          %576 = vmatprep.subr.bf16.mxu0 0
          %577 = vmatpush1.bf16.msra.mxu0 0
          %578 = vmatprep.subr.bf16.mxu0 0
          %579 = vmatpush1.bf16.msra.mxu0 0
          %580 = vmatprep.subr.bf16.mxu0 0
          %581 = vmatpush1.bf16.msra.mxu0 0
          %582 = vmatprep.subr.bf16.mxu0 0
          %583 = vmatpush1.bf16.msra.mxu0 0
          %584 = vmatprep.subr.bf16.mxu0 0
          %585 = vmatpush1.bf16.msra.mxu0 0
          %586 = vmatprep.subr.bf16.mxu0 0
          %587 = vmatpush1.bf16.msra.mxu0 0
          %588 = vmatprep.subr.bf16.mxu0 0
          %589 = vmatpush1.bf16.msra.mxu0 0
          %590 = vmatprep.subr.bf16.mxu0 0
          %591 = vmatpush1.bf16.msra.mxu0 0
          %592 = vmatprep.mubr.bf16.mxu0 0
          %593 = vmatmul.mubr.bf16.gmra.mrb[0].mxu0 %v558
          %v594 = vpop.f32.mrb[0].mxu0
          %v595 = vadd.f32 %v439, %v594
          %v596 = vpop.f32.mrb[0].mxu0
          %v597 = vadd.f32 %v443, %v596
          %v598 = vpop.f32.mrb[0].mxu0
          %v599 = vpop.f32.mrb[0].mxu0
          %600 = vdwg.mxu0
          %601 = vmatprep.subr.bf16.mxu0 %v527
          %602 = vmatpush1.bf16.msra.mxu0 %v526
          %603 = vmatprep.subr.bf16.mxu0 %v535
          %604 = vmatpush1.bf16.msra.mxu0 %v534
          %605 = vmatprep.subr.bf16.mxu0 0
          %606 = vmatpush1.bf16.msra.mxu0 0
          %607 = vmatprep.subr.bf16.mxu0 0
          %608 = vmatpush1.bf16.msra.mxu0 0
          %609 = vmatprep.subr.bf16.mxu0 0
          %610 = vmatpush1.bf16.msra.mxu0 0
          %611 = vmatprep.subr.bf16.mxu0 0
          %612 = vmatpush1.bf16.msra.mxu0 0
          %613 = vmatprep.subr.bf16.mxu0 0
          %614 = vmatpush1.bf16.msra.mxu0 0
          %615 = vmatprep.subr.bf16.mxu0 0
          %616 = vmatpush1.bf16.msra.mxu0 0
          %617 = vmatprep.subr.bf16.mxu0 0
          %618 = vmatpush1.bf16.msra.mxu0 0
          %619 = vmatprep.subr.bf16.mxu0 0
          %620 = vmatpush1.bf16.msra.mxu0 0
          %621 = vmatprep.subr.bf16.mxu0 0
          %622 = vmatpush1.bf16.msra.mxu0 0
          %623 = vmatprep.subr.bf16.mxu0 0
          %624 = vmatpush1.bf16.msra.mxu0 0
          %625 = vmatprep.subr.bf16.mxu0 0
          %626 = vmatpush1.bf16.msra.mxu0 0
          %627 = vmatprep.subr.bf16.mxu0 0
          %628 = vmatpush1.bf16.msra.mxu0 0
          %629 = vmatprep.subr.bf16.mxu0 0
          %630 = vmatpush1.bf16.msra.mxu0 0
          %631 = vmatprep.subr.bf16.mxu0 0
          %632 = vmatpush1.bf16.msra.mxu0 0
          %633 = vmatprep.mubr.bf16.mxu0 0
          %634 = vmatmul.mubr.bf16.gmra.mrb[0].mxu0 %v558
          %v635 = vpop.f32.mrb[0].mxu0
          %v636 = vadd.f32 %v447, %v635
          %v637 = vpop.f32.mrb[0].mxu0
          %v638 = vadd.f32 %v451, %v637
          %v639 = vpop.f32.mrb[0].mxu0
          %v640 = vpop.f32.mrb[0].mxu0
          %641 = vdwg.mxu0
          %642 = vmatprep.subr.bf16.mxu0 %v529
          %643 = vmatpush1.bf16.msra.mxu0 %v528
          %644 = vmatprep.subr.bf16.mxu0 %v537
          %645 = vmatpush1.bf16.msra.mxu0 %v536
          %646 = vmatprep.subr.bf16.mxu0 0
          %647 = vmatpush1.bf16.msra.mxu0 0
          %648 = vmatprep.subr.bf16.mxu0 0
          %649 = vmatpush1.bf16.msra.mxu0 0
          %650 = vmatprep.subr.bf16.mxu0 0
          %651 = vmatpush1.bf16.msra.mxu0 0
          %652 = vmatprep.subr.bf16.mxu0 0
          %653 = vmatpush1.bf16.msra.mxu0 0
          %654 = vmatprep.subr.bf16.mxu0 0
          %655 = vmatpush1.bf16.msra.mxu0 0
          %656 = vmatprep.subr.bf16.mxu0 0
          %657 = vmatpush1.bf16.msra.mxu0 0
          %658 = vmatprep.subr.bf16.mxu0 0
          %659 = vmatpush1.bf16.msra.mxu0 0
          %660 = vmatprep.subr.bf16.mxu0 0
          %661 = vmatpush1.bf16.msra.mxu0 0
          %662 = vmatprep.subr.bf16.mxu0 0
          %663 = vmatpush1.bf16.msra.mxu0 0
          %664 = vmatprep.subr.bf16.mxu0 0
          %665 = vmatpush1.bf16.msra.mxu0 0
          %666 = vmatprep.subr.bf16.mxu0 0
          %667 = vmatpush1.bf16.msra.mxu0 0
          %668 = vmatprep.subr.bf16.mxu0 0
          %669 = vmatpush1.bf16.msra.mxu0 0
          %670 = vmatprep.subr.bf16.mxu0 0
          %671 = vmatpush1.bf16.msra.mxu0 0
          %672 = vmatprep.subr.bf16.mxu0 0
          %673 = vmatpush1.bf16.msra.mxu0 0
          %674 = vmatprep.mubr.bf16.mxu0 0
          %675 = vmatmul.mubr.bf16.gmra.mrb[0].mxu0 %v558
          %v676 = vpop.f32.mrb[0].mxu0
          %v677 = vadd.f32 %v455, %v676
          %v678 = vpop.f32.mrb[0].mxu0
          %v679 = vadd.f32 %v459, %v678
          %v680 = vpop.f32.mrb[0].mxu0
          %v681 = vpop.f32.mrb[0].mxu0
          %682 = vdwg.mxu0
          %683 = vmatprep.subr.bf16.mxu0 %v531
          %684 = vmatpush1.bf16.msra.mxu0 %v530
          %685 = vmatprep.subr.bf16.mxu0 %v539
          %686 = vmatpush1.bf16.msra.mxu0 %v538
          %687 = vmatprep.subr.bf16.mxu0 0
          %688 = vmatpush1.bf16.msra.mxu0 0
          %689 = vmatprep.subr.bf16.mxu0 0
          %690 = vmatpush1.bf16.msra.mxu0 0
          %691 = vmatprep.subr.bf16.mxu0 0
          %692 = vmatpush1.bf16.msra.mxu0 0
          %693 = vmatprep.subr.bf16.mxu0 0
          %694 = vmatpush1.bf16.msra.mxu0 0
          %695 = vmatprep.subr.bf16.mxu0 0
          %696 = vmatpush1.bf16.msra.mxu0 0
          %697 = vmatprep.subr.bf16.mxu0 0
          %698 = vmatpush1.bf16.msra.mxu0 0
          %699 = vmatprep.subr.bf16.mxu0 0
          %700 = vmatpush1.bf16.msra.mxu0 0
          %701 = vmatprep.subr.bf16.mxu0 0
          %702 = vmatpush1.bf16.msra.mxu0 0
          %703 = vmatprep.subr.bf16.mxu0 0
          %704 = vmatpush1.bf16.msra.mxu0 0
          %705 = vmatprep.subr.bf16.mxu0 0
          %706 = vmatpush1.bf16.msra.mxu0 0
          %707 = vmatprep.subr.bf16.mxu0 0
          %708 = vmatpush1.bf16.msra.mxu0 0
          %709 = vmatprep.subr.bf16.mxu0 0
          %710 = vmatpush1.bf16.msra.mxu0 0
          %711 = vmatprep.subr.bf16.mxu0 0
          %712 = vmatpush1.bf16.msra.mxu0 0
          %713 = vmatprep.subr.bf16.mxu0 0
          %714 = vmatpush1.bf16.msra.mxu0 0
          %715 = vmatprep.mubr.bf16.mxu0 0
          %716 = vmatmul.mubr.bf16.gmra.mrb[0].mxu0 %v558
          %v717 = vpop.f32.mrb[0].mxu0
          %v718 = vadd.f32 %v463, %v717
          %v719 = vpop.f32.mrb[0].mxu0
          %v720 = vadd.f32 %v467, %v719
          %v721 = vpop.f32.mrb[0].mxu0
          %v722 = vpop.f32.mrb[0].mxu0
          %723 = vdwg.mxu0
          %v724 = vmax.f32 %v595, 0.0
          %v725 = vmax.f32 %v597, 0.0
          %v726 = vmax.f32 %v636, 0.0
          %v727 = vmax.f32 %v638, 0.0
          %v728 = vmax.f32 %v677, 0.0
          %v729 = vmax.f32 %v679, 0.0
          %v730 = vmax.f32 %v718, 0.0
          %v731 = vmax.f32 %v720, 0.0
          %732 = vst [vmem:[#allocation2] sm:$0xff] %v724
          %733 = vst [vmem:[#allocation2 + $0x8] sm:$0xff] %v725
          %734 = vst [vmem:[#allocation2 + $0x10] sm:$0xff] %v726
          %735 = vst [vmem:[#allocation2 + $0x18] sm:$0xff] %v727
          %736 = vst [vmem:[#allocation2 + $0x20] sm:$0xff] %v728
          %737 = vst [vmem:[#allocation2 + $0x28] sm:$0xff] %v729
          %738 = vst [vmem:[#allocation2 + $0x30] sm:$0xff] %v730
          %739 = vst [vmem:[#allocation2 + $0x38] sm:$0xff] %v731
        $region88: #{model_forward.1} parent=51 // pred_fallthru
          _
        %v740 = vld [vmem:[#allocation2] sm:$0xff]
        %v741 = vld [vmem:[#allocation2 + $0x8] sm:$0xff]
        %v742 = vld [vmem:[#allocation2 + $0x10] sm:$0xff]
        %v743 = vld [vmem:[#allocation2 + $0x18] sm:$0xff]
        %v744 = vld [vmem:[#allocation2 + $0x20] sm:$0xff]
        %v745 = vld [vmem:[#allocation2 + $0x28] sm:$0xff]
        %v746 = vld [vmem:[#allocation2 + $0x30] sm:$0xff]
        %v747 = vld [vmem:[#allocation2 + $0x38] sm:$0xff]
        %v748 = vld [vmem:[%s365] sm:$0xff]
        %v749 = vld [vmem:[%s365 + $0x8] sm:$0xff]
        %v750 = vld [vmem:[%s365 + $0x10] sm:$0xff]
        %v751 = vld [vmem:[%s365 + $0x18] sm:$0xff]
        %v752 = vld [vmem:[%s365 + $0x20] sm:$0xff]
        %v753 = vld [vmem:[%s365 + $0x28] sm:$0xff]
        %v754 = vld [vmem:[%s365 + $0x30] sm:$0xff]
        %v755 = vld [vmem:[%s365 + $0x38] sm:$0xff]
        %v756 = vld [vmem:[%s365 + $0x40] sm:$0xff]
        %v757 = vld [vmem:[%s365 + $0x48] sm:$0xff]
        %v758 = vld [vmem:[%s365 + $0x50] sm:$0xff]
        %v759 = vld [vmem:[%s365 + $0x58] sm:$0xff]
        %v760 = vld [vmem:[%s365 + $0x60] sm:$0xff]
        %v761 = vld [vmem:[%s365 + $0x68] sm:$0xff]
        %v762 = vld [vmem:[%s365 + $0x70] sm:$0xff]
        %v763 = vld [vmem:[%s365 + $0x78] sm:$0xff]
        %v764 = vld [vmem:[%s365 + $0x80] sm:$0xff]
        %v765 = vld [vmem:[%s365 + $0x88] sm:$0xff]
        %v766 = vld [vmem:[%s365 + $0x90] sm:$0xff]
        %v767 = vld [vmem:[%s365 + $0x98] sm:$0xff]
        %v768 = vld [vmem:[%s365 + $0xa0] sm:$0xff]
        %v769 = vld [vmem:[%s365 + $0xa8] sm:$0xff]
        %v770 = vld [vmem:[%s365 + $0xb0] sm:$0xff]
        %v771 = vld [vmem:[%s365 + $0xb8] sm:$0xff]
        %v772 = vld [vmem:[%s365 + $0xc0] sm:$0xff]
        %v773 = vld [vmem:[%s365 + $0xc8] sm:$0xff]
        %v774 = vld [vmem:[%s365 + $0xd0] sm:$0xff]
        %v775 = vld [vmem:[%s365 + $0xd8] sm:$0xff]
        %v776 = vld [vmem:[%s365 + $0xe0] sm:$0xff]
        %v777 = vld [vmem:[%s365 + $0xe8] sm:$0xff]
        %v778 = vld [vmem:[%s365 + $0xf0] sm:$0xff]
        %v779 = vld [vmem:[%s365 + $0xf8] sm:$0xff]
        %v780 = vld [vmem:[%s365 + $0x100] sm:$0xff]
        %v781 = vld [vmem:[%s365 + $0x108] sm:$0xff]
        %v782 = vld [vmem:[%s365 + $0x110] sm:$0xff]
        %v783 = vld [vmem:[%s365 + $0x118] sm:$0xff]
        %v784 = vld [vmem:[%s365 + $0x120] sm:$0xff]
        %v785 = vld [vmem:[%s365 + $0x128] sm:$0xff]
        %v786 = vld [vmem:[%s365 + $0x130] sm:$0xff]
        %v787 = vld [vmem:[%s365 + $0x138] sm:$0xff]
        %v788 = vld [vmem:[%s365 + $0x140] sm:$0xff]
        %v789 = vld [vmem:[%s365 + $0x148] sm:$0xff]
        %v790 = vld [vmem:[%s365 + $0x150] sm:$0xff]
        %v791 = vld [vmem:[%s365 + $0x158] sm:$0xff]
        %v792 = vld [vmem:[%s365 + $0x160] sm:$0xff]
        %v793 = vld [vmem:[%s365 + $0x168] sm:$0xff]
        %v794 = vld [vmem:[%s365 + $0x170] sm:$0xff]
        %v795 = vld [vmem:[%s365 + $0x178] sm:$0xff]
        %v796 = vld [vmem:[%s365 + $0x180] sm:$0xff]
        %v797 = vld [vmem:[%s365 + $0x188] sm:$0xff]
        %v798 = vld [vmem:[%s365 + $0x190] sm:$0xff]
        %v799 = vld [vmem:[%s365 + $0x198] sm:$0xff]
        %v800 = vld [vmem:[%s365 + $0x1a0] sm:$0xff]
        %v801 = vld [vmem:[%s365 + $0x1a8] sm:$0xff]
        %v802 = vld [vmem:[%s365 + $0x1b0] sm:$0xff]
        %v803 = vld [vmem:[%s365 + $0x1b8] sm:$0xff]
        %v804 = vld [vmem:[%s365 + $0x1c0] sm:$0xff]
        %v805 = vld [vmem:[%s365 + $0x1c8] sm:$0xff]
        %v806 = vld [vmem:[%s365 + $0x1d0] sm:$0xff]
        %v807 = vld [vmem:[%s365 + $0x1d8] sm:$0xff]
        %v808 = vld [vmem:[%s365 + $0x1e0] sm:$0xff]
        %v809 = vld [vmem:[%s365 + $0x1e8] sm:$0xff]
        %v810 = vld [vmem:[%s365 + $0x1f0] sm:$0xff]
        %v811 = vld [vmem:[%s365 + $0x1f8] sm:$0xff]
        %v812 = vld [vmem:[%s365 + $0x200] sm:$0xff]
        %v813 = vld [vmem:[%s365 + $0x208] sm:$0xff]
        %v814 = vld [vmem:[%s365 + $0x210] sm:$0xff]
        %v815 = vld [vmem:[%s365 + $0x218] sm:$0xff]
        %v816 = vld [vmem:[%s365 + $0x220] sm:$0xff]
        %v817 = vld [vmem:[%s365 + $0x228] sm:$0xff]
        %v818 = vld [vmem:[%s365 + $0x230] sm:$0xff]
        %v819 = vld [vmem:[%s365 + $0x238] sm:$0xff]
        %v820 = vld [vmem:[%s365 + $0x240] sm:$0xff]
        %v821 = vld [vmem:[%s365 + $0x248] sm:$0xff]
        %v822 = vld [vmem:[%s365 + $0x250] sm:$0xff]
        %v823 = vld [vmem:[%s365 + $0x258] sm:$0xff]
        %v824 = vld [vmem:[%s365 + $0x260] sm:$0xff]
        %v825 = vld [vmem:[%s365 + $0x268] sm:$0xff]
        %v826 = vld [vmem:[%s365 + $0x270] sm:$0xff]
        %v827 = vld [vmem:[%s365 + $0x278] sm:$0xff]
        %v828 = vld [vmem:[%s365 + $0x280] sm:$0xff]
        %v829 = vld [vmem:[%s365 + $0x288] sm:$0xff]
        %v830 = vld [vmem:[%s365 + $0x290] sm:$0xff]
        %v831 = vld [vmem:[%s365 + $0x298] sm:$0xff]
        %v832 = vld [vmem:[%s365 + $0x2a0] sm:$0xff]
        %v833 = vld [vmem:[%s365 + $0x2a8] sm:$0xff]
        %v834 = vld [vmem:[%s365 + $0x2b0] sm:$0xff]
        %v835 = vld [vmem:[%s365 + $0x2b8] sm:$0xff]
        %v836 = vld [vmem:[%s365 + $0x2c0] sm:$0xff]
        %v837 = vld [vmem:[%s365 + $0x2c8] sm:$0xff]
        %v838 = vld [vmem:[%s365 + $0x2d0] sm:$0xff]
        %v839 = vld [vmem:[%s365 + $0x2d8] sm:$0xff]
        %v840 = vld [vmem:[%s365 + $0x2e0] sm:$0xff]
        %v841 = vld [vmem:[%s365 + $0x2e8] sm:$0xff]
        %v842 = vld [vmem:[%s365 + $0x2f0] sm:$0xff]
        %v843 = vld [vmem:[%s365 + $0x2f8] sm:$0xff]
        %v844 = vld [vmem:[%s365 + $0x300] sm:$0xff]
        %v845 = vld [vmem:[%s365 + $0x308] sm:$0xff]
        %v846 = vld [vmem:[%s365 + $0x310] sm:$0xff]
        %v847 = vld [vmem:[%s365 + $0x318] sm:$0xff]
        %v848 = vld [vmem:[%s365 + $0x320] sm:$0xff]
        %v849 = vld [vmem:[%s365 + $0x328] sm:$0xff]
        %v850 = vld [vmem:[%s365 + $0x330] sm:$0xff]
        %v851 = vld [vmem:[%s365 + $0x338] sm:$0xff]
        %v852 = vld [vmem:[%s365 + $0x340] sm:$0xff]
        %v853 = vld [vmem:[%s365 + $0x348] sm:$0xff]
        %v854 = vld [vmem:[%s365 + $0x350] sm:$0xff]
        %v855 = vld [vmem:[%s365 + $0x358] sm:$0xff]
        %v856 = vld [vmem:[%s365 + $0x360] sm:$0xff]
        %v857 = vld [vmem:[%s365 + $0x368] sm:$0xff]
        %v858 = vld [vmem:[%s365 + $0x370] sm:$0xff]
        %v859 = vld [vmem:[%s365 + $0x378] sm:$0xff]
        %v860 = vld [vmem:[%s365 + $0x380] sm:$0xff]
        %v861 = vld [vmem:[%s365 + $0x388] sm:$0xff]
        %v862 = vld [vmem:[%s365 + $0x390] sm:$0xff]
        %v863 = vld [vmem:[%s365 + $0x398] sm:$0xff]
        %v864 = vld [vmem:[%s365 + $0x3a0] sm:$0xff]
        %v865 = vld [vmem:[%s365 + $0x3a8] sm:$0xff]
        %v866 = vld [vmem:[%s365 + $0x3b0] sm:$0xff]
        %v867 = vld [vmem:[%s365 + $0x3b8] sm:$0xff]
        %v868 = vld [vmem:[%s365 + $0x3c0] sm:$0xff]
        %v869 = vld [vmem:[%s365 + $0x3c8] sm:$0xff]
        %v870 = vld [vmem:[%s365 + $0x3d0] sm:$0xff]
        %v871 = vld [vmem:[%s365 + $0x3d8] sm:$0xff]
        %v872 = vld [vmem:[%s365 + $0x3e0] sm:$0xff]
        %v873 = vld [vmem:[%s365 + $0x3e8] sm:$0xff]
        %v874 = vld [vmem:[%s365 + $0x3f0] sm:$0xff]
        %v875 = vld [vmem:[%s365 + $0x3f8] sm:$0xff]
        %v876 = vld [vmem:[%s365 + $0x400] sm:$0xff]
        %v877 = vld [vmem:[%s365 + $0x408] sm:$0xff]
        %v878 = vld [vmem:[%s365 + $0x410] sm:$0xff]
        %v879 = vld [vmem:[%s365 + $0x418] sm:$0xff]
        %v880 = vld [vmem:[%s365 + $0x420] sm:$0xff]
        %v881 = vld [vmem:[%s365 + $0x428] sm:$0xff]
        %v882 = vld [vmem:[%s365 + $0x430] sm:$0xff]
        %v883 = vld [vmem:[%s365 + $0x438] sm:$0xff]
        %v884 = vld [vmem:[%s365 + $0x440] sm:$0xff]
        %v885 = vld [vmem:[%s365 + $0x448] sm:$0xff]
        %v886 = vld [vmem:[%s365 + $0x450] sm:$0xff]
        %v887 = vld [vmem:[%s365 + $0x458] sm:$0xff]
        %v888 = vld [vmem:[%s365 + $0x460] sm:$0xff]
        %v889 = vld [vmem:[%s365 + $0x468] sm:$0xff]
        %v890 = vld [vmem:[%s365 + $0x470] sm:$0xff]
        %v891 = vld [vmem:[%s365 + $0x478] sm:$0xff]
        %v892 = vld [vmem:[%s365 + $0x480] sm:$0xff]
        %v893 = vld [vmem:[%s365 + $0x488] sm:$0xff]
        %v894 = vld [vmem:[%s365 + $0x490] sm:$0xff]
        %v895 = vld [vmem:[%s365 + $0x498] sm:$0xff]
        %v896 = vld [vmem:[%s365 + $0x4a0] sm:$0xff]
        %v897 = vld [vmem:[%s365 + $0x4a8] sm:$0xff]
        %v898 = vld [vmem:[%s365 + $0x4b0] sm:$0xff]
        %v899 = vld [vmem:[%s365 + $0x4b8] sm:$0xff]
        %v900 = vld [vmem:[%s365 + $0x4c0] sm:$0xff]
        %v901 = vld [vmem:[%s365 + $0x4c8] sm:$0xff]
        %v902 = vld [vmem:[%s365 + $0x4d0] sm:$0xff]
        %v903 = vld [vmem:[%s365 + $0x4d8] sm:$0xff]
        %v904 = vld [vmem:[%s365 + $0x4e0] sm:$0xff]
        %v905 = vld [vmem:[%s365 + $0x4e8] sm:$0xff]
        %v906 = vld [vmem:[%s365 + $0x4f0] sm:$0xff]
        %v907 = vld [vmem:[%s365 + $0x4f8] sm:$0xff]
        %v908 = vld [vmem:[%s365 + $0x500] sm:$0xff]
        %v909 = vld [vmem:[%s365 + $0x508] sm:$0xff]
        %v910 = vld [vmem:[%s365 + $0x510] sm:$0xff]
        %v911 = vld [vmem:[%s365 + $0x518] sm:$0xff]
        %v912 = vld [vmem:[%s365 + $0x520] sm:$0xff]
        %v913 = vld [vmem:[%s365 + $0x528] sm:$0xff]
        %v914 = vld [vmem:[%s365 + $0x530] sm:$0xff]
        %v915 = vld [vmem:[%s365 + $0x538] sm:$0xff]
        %v916 = vld [vmem:[%s365 + $0x540] sm:$0xff]
        %v917 = vld [vmem:[%s365 + $0x548] sm:$0xff]
        %v918 = vld [vmem:[%s365 + $0x550] sm:$0xff]
        %v919 = vld [vmem:[%s365 + $0x558] sm:$0xff]
        %v920 = vld [vmem:[%s365 + $0x560] sm:$0xff]
        %v921 = vld [vmem:[%s365 + $0x568] sm:$0xff]
        %v922 = vld [vmem:[%s365 + $0x570] sm:$0xff]
        %v923 = vld [vmem:[%s365 + $0x578] sm:$0xff]
        %v924 = vld [vmem:[%s365 + $0x580] sm:$0xff]
        %v925 = vld [vmem:[%s365 + $0x588] sm:$0xff]
        %v926 = vld [vmem:[%s365 + $0x590] sm:$0xff]
        %v927 = vld [vmem:[%s365 + $0x598] sm:$0xff]
        %v928 = vld [vmem:[%s365 + $0x5a0] sm:$0xff]
        %v929 = vld [vmem:[%s365 + $0x5a8] sm:$0xff]
        %v930 = vld [vmem:[%s365 + $0x5b0] sm:$0xff]
        %v931 = vld [vmem:[%s365 + $0x5b8] sm:$0xff]
        %v932 = vld [vmem:[%s365 + $0x5c0] sm:$0xff]
        %v933 = vld [vmem:[%s365 + $0x5c8] sm:$0xff]
        %v934 = vld [vmem:[%s365 + $0x5d0] sm:$0xff]
        %v935 = vld [vmem:[%s365 + $0x5d8] sm:$0xff]
        %v936 = vld [vmem:[%s365 + $0x5e0] sm:$0xff]
        %v937 = vld [vmem:[%s365 + $0x5e8] sm:$0xff]
        %v938 = vld [vmem:[%s365 + $0x5f0] sm:$0xff]
        %v939 = vld [vmem:[%s365 + $0x5f8] sm:$0xff]
        %v940 = vld [vmem:[%s365 + $0x600] sm:$0xff]
        %v941 = vld [vmem:[%s365 + $0x608] sm:$0xff]
        %v942 = vld [vmem:[%s365 + $0x610] sm:$0xff]
        %v943 = vld [vmem:[%s365 + $0x618] sm:$0xff]
        %v944 = vld [vmem:[%s365 + $0x620] sm:$0xff]
        %v945 = vld [vmem:[%s365 + $0x628] sm:$0xff]
        %v946 = vld [vmem:[%s365 + $0x630] sm:$0xff]
        %v947 = vld [vmem:[%s365 + $0x638] sm:$0xff]
        %v948 = vld [vmem:[%s365 + $0x640] sm:$0xff]
        %v949 = vld [vmem:[%s365 + $0x648] sm:$0xff]
        %v950 = vld [vmem:[%s365 + $0x650] sm:$0xff]
        %v951 = vld [vmem:[%s365 + $0x658] sm:$0xff]
        %v952 = vld [vmem:[%s365 + $0x660] sm:$0xff]
        %v953 = vld [vmem:[%s365 + $0x668] sm:$0xff]
        %v954 = vld [vmem:[%s365 + $0x670] sm:$0xff]
        %v955 = vld [vmem:[%s365 + $0x678] sm:$0xff]
        %v956 = vld [vmem:[%s365 + $0x680] sm:$0xff]
        %v957 = vld [vmem:[%s365 + $0x688] sm:$0xff]
        %v958 = vld [vmem:[%s365 + $0x690] sm:$0xff]
        %v959 = vld [vmem:[%s365 + $0x698] sm:$0xff]
        %v960 = vld [vmem:[%s365 + $0x6a0] sm:$0xff]
        %v961 = vld [vmem:[%s365 + $0x6a8] sm:$0xff]
        %v962 = vld [vmem:[%s365 + $0x6b0] sm:$0xff]
        %v963 = vld [vmem:[%s365 + $0x6b8] sm:$0xff]
        %v964 = vld [vmem:[%s365 + $0x6c0] sm:$0xff]
        %v965 = vld [vmem:[%s365 + $0x6c8] sm:$0xff]
        %v966 = vld [vmem:[%s365 + $0x6d0] sm:$0xff]
        %v967 = vld [vmem:[%s365 + $0x6d8] sm:$0xff]
        %v968 = vld [vmem:[%s365 + $0x6e0] sm:$0xff]
        %v969 = vld [vmem:[%s365 + $0x6e8] sm:$0xff]
        %v970 = vld [vmem:[%s365 + $0x6f0] sm:$0xff]
        %v971 = vld [vmem:[%s365 + $0x6f8] sm:$0xff]
        %v972 = vld [vmem:[%s365 + $0x700] sm:$0xff]
        %v973 = vld [vmem:[%s365 + $0x708] sm:$0xff]
        %v974 = vld [vmem:[%s365 + $0x710] sm:$0xff]
        %v975 = vld [vmem:[%s365 + $0x718] sm:$0xff]
        %v976 = vld [vmem:[%s365 + $0x720] sm:$0xff]
        %v977 = vld [vmem:[%s365 + $0x728] sm:$0xff]
        %v978 = vld [vmem:[%s365 + $0x730] sm:$0xff]
        %v979 = vld [vmem:[%s365 + $0x738] sm:$0xff]
        %v980 = vld [vmem:[%s365 + $0x740] sm:$0xff]
        %v981 = vld [vmem:[%s365 + $0x748] sm:$0xff]
        %v982 = vld [vmem:[%s365 + $0x750] sm:$0xff]
        %v983 = vld [vmem:[%s365 + $0x758] sm:$0xff]
        %v984 = vld [vmem:[%s365 + $0x760] sm:$0xff]
        %v985 = vld [vmem:[%s365 + $0x768] sm:$0xff]
        %v986 = vld [vmem:[%s365 + $0x770] sm:$0xff]
        %v987 = vld [vmem:[%s365 + $0x778] sm:$0xff]
        %v988 = vld [vmem:[%s365 + $0x780] sm:$0xff]
        %v989 = vld [vmem:[%s365 + $0x788] sm:$0xff]
        %v990 = vld [vmem:[%s365 + $0x790] sm:$0xff]
        %v991 = vld [vmem:[%s365 + $0x798] sm:$0xff]
        %v992 = vld [vmem:[%s365 + $0x7a0] sm:$0xff]
        %v993 = vld [vmem:[%s365 + $0x7a8] sm:$0xff]
        %v994 = vld [vmem:[%s365 + $0x7b0] sm:$0xff]
        %v995 = vld [vmem:[%s365 + $0x7b8] sm:$0xff]
        %v996 = vld [vmem:[%s365 + $0x7c0] sm:$0xff]
        %v997 = vld [vmem:[%s365 + $0x7c8] sm:$0xff]
        %v998 = vld [vmem:[%s365 + $0x7d0] sm:$0xff]
        %v999 = vld [vmem:[%s365 + $0x7d8] sm:$0xff]
        %v1000 = vld [vmem:[%s365 + $0x7e0] sm:$0xff]
        %v1001 = vld [vmem:[%s365 + $0x7e8] sm:$0xff]
        %v1002 = vld [vmem:[%s365 + $0x7f0] sm:$0xff]
        %v1003 = vld [vmem:[%s365 + $0x7f8] sm:$0xff]
        %v1004 = vunpack.c.l.s8.bf16 %v748
        %v1005 = vunpack.c.l.s8.bf16 %v749
        %v1006 = vunpack.c.l.s8.bf16 %v750
        %v1007 = vunpack.c.l.s8.bf16 %v751
        %v1008 = vunpack.c.l.s8.bf16 %v752
        %v1009 = vunpack.c.l.s8.bf16 %v753
        %v1010 = vunpack.c.l.s8.bf16 %v754
        %v1011 = vunpack.c.l.s8.bf16 %v755
        %v1012 = vunpack.c.h.s8.bf16 %v748
        %v1013 = vunpack.c.h.s8.bf16 %v749
        %v1014 = vunpack.c.h.s8.bf16 %v750
        %v1015 = vunpack.c.h.s8.bf16 %v751
        %v1016 = vunpack.c.h.s8.bf16 %v752
        %v1017 = vunpack.c.h.s8.bf16 %v753
        %v1018 = vunpack.c.h.s8.bf16 %v754
        %v1019 = vunpack.c.h.s8.bf16 %v755
        %v1020 = vunpack.c.l.s8.bf16 %v756
        %v1021 = vunpack.c.l.s8.bf16 %v757
        %v1022 = vunpack.c.l.s8.bf16 %v758
        %v1023 = vunpack.c.l.s8.bf16 %v759
        %v1024 = vunpack.c.l.s8.bf16 %v760
        %v1025 = vunpack.c.l.s8.bf16 %v761
        %v1026 = vunpack.c.l.s8.bf16 %v762
        %v1027 = vunpack.c.l.s8.bf16 %v763
        %v1028 = vunpack.c.h.s8.bf16 %v756
        %v1029 = vunpack.c.h.s8.bf16 %v757
        %v1030 = vunpack.c.h.s8.bf16 %v758
        %v1031 = vunpack.c.h.s8.bf16 %v759
        %v1032 = vunpack.c.h.s8.bf16 %v760
        %v1033 = vunpack.c.h.s8.bf16 %v761
        %v1034 = vunpack.c.h.s8.bf16 %v762
        %v1035 = vunpack.c.h.s8.bf16 %v763
        %v1036 = vunpack.c.l.s8.bf16 %v764
        %v1037 = vunpack.c.l.s8.bf16 %v765
        %v1038 = vunpack.c.l.s8.bf16 %v766
        %v1039 = vunpack.c.l.s8.bf16 %v767
        %v1040 = vunpack.c.l.s8.bf16 %v768
        %v1041 = vunpack.c.l.s8.bf16 %v769
        %v1042 = vunpack.c.l.s8.bf16 %v770
        %v1043 = vunpack.c.l.s8.bf16 %v771
        %v1044 = vunpack.c.h.s8.bf16 %v764
        %v1045 = vunpack.c.h.s8.bf16 %v765
        %v1046 = vunpack.c.h.s8.bf16 %v766
        %v1047 = vunpack.c.h.s8.bf16 %v767
        %v1048 = vunpack.c.h.s8.bf16 %v768
        %v1049 = vunpack.c.h.s8.bf16 %v769
        %v1050 = vunpack.c.h.s8.bf16 %v770
        %v1051 = vunpack.c.h.s8.bf16 %v771
        %v1052 = vunpack.c.l.s8.bf16 %v772
        %v1053 = vunpack.c.l.s8.bf16 %v773
        %v1054 = vunpack.c.l.s8.bf16 %v774
        %v1055 = vunpack.c.l.s8.bf16 %v775
        %v1056 = vunpack.c.l.s8.bf16 %v776
        %v1057 = vunpack.c.l.s8.bf16 %v777
        %v1058 = vunpack.c.l.s8.bf16 %v778
        %v1059 = vunpack.c.l.s8.bf16 %v779
        %v1060 = vunpack.c.h.s8.bf16 %v772
        %v1061 = vunpack.c.h.s8.bf16 %v773
        %v1062 = vunpack.c.h.s8.bf16 %v774
        %v1063 = vunpack.c.h.s8.bf16 %v775
        %v1064 = vunpack.c.h.s8.bf16 %v776
        %v1065 = vunpack.c.h.s8.bf16 %v777
        %v1066 = vunpack.c.h.s8.bf16 %v778
        %v1067 = vunpack.c.h.s8.bf16 %v779
        %v1068 = vunpack.c.l.s8.bf16 %v780
        %v1069 = vunpack.c.l.s8.bf16 %v781
        %v1070 = vunpack.c.l.s8.bf16 %v782
        %v1071 = vunpack.c.l.s8.bf16 %v783
        %v1072 = vunpack.c.l.s8.bf16 %v784
        %v1073 = vunpack.c.l.s8.bf16 %v785
        %v1074 = vunpack.c.l.s8.bf16 %v786
        %v1075 = vunpack.c.l.s8.bf16 %v787
        %v1076 = vunpack.c.h.s8.bf16 %v780
        %v1077 = vunpack.c.h.s8.bf16 %v781
        %v1078 = vunpack.c.h.s8.bf16 %v782
        %v1079 = vunpack.c.h.s8.bf16 %v783
        %v1080 = vunpack.c.h.s8.bf16 %v784
        %v1081 = vunpack.c.h.s8.bf16 %v785
        %v1082 = vunpack.c.h.s8.bf16 %v786
        %v1083 = vunpack.c.h.s8.bf16 %v787
        %v1084 = vunpack.c.l.s8.bf16 %v788
        %v1085 = vunpack.c.l.s8.bf16 %v789
        %v1086 = vunpack.c.l.s8.bf16 %v790
        %v1087 = vunpack.c.l.s8.bf16 %v791
        %v1088 = vunpack.c.l.s8.bf16 %v792
        %v1089 = vunpack.c.l.s8.bf16 %v793
        %v1090 = vunpack.c.l.s8.bf16 %v794
        %v1091 = vunpack.c.l.s8.bf16 %v795
        %v1092 = vunpack.c.h.s8.bf16 %v788
        %v1093 = vunpack.c.h.s8.bf16 %v789
        %v1094 = vunpack.c.h.s8.bf16 %v790
        %v1095 = vunpack.c.h.s8.bf16 %v791
        %v1096 = vunpack.c.h.s8.bf16 %v792
        %v1097 = vunpack.c.h.s8.bf16 %v793
        %v1098 = vunpack.c.h.s8.bf16 %v794
        %v1099 = vunpack.c.h.s8.bf16 %v795
        %v1100 = vunpack.c.l.s8.bf16 %v796
        %v1101 = vunpack.c.l.s8.bf16 %v797
        %v1102 = vunpack.c.l.s8.bf16 %v798
        %v1103 = vunpack.c.l.s8.bf16 %v799
        %v1104 = vunpack.c.l.s8.bf16 %v800
        %v1105 = vunpack.c.l.s8.bf16 %v801
        %v1106 = vunpack.c.l.s8.bf16 %v802
        %v1107 = vunpack.c.l.s8.bf16 %v803
        %v1108 = vunpack.c.h.s8.bf16 %v796
        %v1109 = vunpack.c.h.s8.bf16 %v797
        %v1110 = vunpack.c.h.s8.bf16 %v798
        %v1111 = vunpack.c.h.s8.bf16 %v799
        %v1112 = vunpack.c.h.s8.bf16 %v800
        %v1113 = vunpack.c.h.s8.bf16 %v801
        %v1114 = vunpack.c.h.s8.bf16 %v802
        %v1115 = vunpack.c.h.s8.bf16 %v803
        %v1116 = vunpack.c.l.s8.bf16 %v804
        %v1117 = vunpack.c.l.s8.bf16 %v805
        %v1118 = vunpack.c.l.s8.bf16 %v806
        %v1119 = vunpack.c.l.s8.bf16 %v807
        %v1120 = vunpack.c.l.s8.bf16 %v808
        %v1121 = vunpack.c.l.s8.bf16 %v809
        %v1122 = vunpack.c.l.s8.bf16 %v810
        %v1123 = vunpack.c.l.s8.bf16 %v811
        %v1124 = vunpack.c.h.s8.bf16 %v804
        %v1125 = vunpack.c.h.s8.bf16 %v805
        %v1126 = vunpack.c.h.s8.bf16 %v806
        %v1127 = vunpack.c.h.s8.bf16 %v807
        %v1128 = vunpack.c.h.s8.bf16 %v808
        %v1129 = vunpack.c.h.s8.bf16 %v809
        %v1130 = vunpack.c.h.s8.bf16 %v810
        %v1131 = vunpack.c.h.s8.bf16 %v811
        %v1132 = vunpack.c.l.s8.bf16 %v812
        %v1133 = vunpack.c.l.s8.bf16 %v813
        %v1134 = vunpack.c.l.s8.bf16 %v814
        %v1135 = vunpack.c.l.s8.bf16 %v815
        %v1136 = vunpack.c.l.s8.bf16 %v816
        %v1137 = vunpack.c.l.s8.bf16 %v817
        %v1138 = vunpack.c.l.s8.bf16 %v818
        %v1139 = vunpack.c.l.s8.bf16 %v819
        %v1140 = vunpack.c.h.s8.bf16 %v812
        %v1141 = vunpack.c.h.s8.bf16 %v813
        %v1142 = vunpack.c.h.s8.bf16 %v814
        %v1143 = vunpack.c.h.s8.bf16 %v815
        %v1144 = vunpack.c.h.s8.bf16 %v816
        %v1145 = vunpack.c.h.s8.bf16 %v817
        %v1146 = vunpack.c.h.s8.bf16 %v818
        %v1147 = vunpack.c.h.s8.bf16 %v819
        %v1148 = vunpack.c.l.s8.bf16 %v820
        %v1149 = vunpack.c.l.s8.bf16 %v821
        %v1150 = vunpack.c.l.s8.bf16 %v822
        %v1151 = vunpack.c.l.s8.bf16 %v823
        %v1152 = vunpack.c.l.s8.bf16 %v824
        %v1153 = vunpack.c.l.s8.bf16 %v825
        %v1154 = vunpack.c.l.s8.bf16 %v826
        %v1155 = vunpack.c.l.s8.bf16 %v827
        %v1156 = vunpack.c.h.s8.bf16 %v820
        %v1157 = vunpack.c.h.s8.bf16 %v821
        %v1158 = vunpack.c.h.s8.bf16 %v822
        %v1159 = vunpack.c.h.s8.bf16 %v823
        %v1160 = vunpack.c.h.s8.bf16 %v824
        %v1161 = vunpack.c.h.s8.bf16 %v825
        %v1162 = vunpack.c.h.s8.bf16 %v826
        %v1163 = vunpack.c.h.s8.bf16 %v827
        %v1164 = vunpack.c.l.s8.bf16 %v828
        %v1165 = vunpack.c.l.s8.bf16 %v829
        %v1166 = vunpack.c.l.s8.bf16 %v830
        %v1167 = vunpack.c.l.s8.bf16 %v831
        %v1168 = vunpack.c.l.s8.bf16 %v832
        %v1169 = vunpack.c.l.s8.bf16 %v833
        %v1170 = vunpack.c.l.s8.bf16 %v834
        %v1171 = vunpack.c.l.s8.bf16 %v835
        %v1172 = vunpack.c.h.s8.bf16 %v828
        %v1173 = vunpack.c.h.s8.bf16 %v829
        %v1174 = vunpack.c.h.s8.bf16 %v830
        %v1175 = vunpack.c.h.s8.bf16 %v831
        %v1176 = vunpack.c.h.s8.bf16 %v832
        %v1177 = vunpack.c.h.s8.bf16 %v833
        %v1178 = vunpack.c.h.s8.bf16 %v834
        %v1179 = vunpack.c.h.s8.bf16 %v835
        %v1180 = vunpack.c.l.s8.bf16 %v836
        %v1181 = vunpack.c.l.s8.bf16 %v837
        %v1182 = vunpack.c.l.s8.bf16 %v838
        %v1183 = vunpack.c.l.s8.bf16 %v839
        %v1184 = vunpack.c.l.s8.bf16 %v840
        %v1185 = vunpack.c.l.s8.bf16 %v841
        %v1186 = vunpack.c.l.s8.bf16 %v842
        %v1187 = vunpack.c.l.s8.bf16 %v843
        %v1188 = vunpack.c.h.s8.bf16 %v836
        %v1189 = vunpack.c.h.s8.bf16 %v837
        %v1190 = vunpack.c.h.s8.bf16 %v838
        %v1191 = vunpack.c.h.s8.bf16 %v839
        %v1192 = vunpack.c.h.s8.bf16 %v840
        %v1193 = vunpack.c.h.s8.bf16 %v841
        %v1194 = vunpack.c.h.s8.bf16 %v842
        %v1195 = vunpack.c.h.s8.bf16 %v843
        %v1196 = vunpack.c.l.s8.bf16 %v844
        %v1197 = vunpack.c.l.s8.bf16 %v845
        %v1198 = vunpack.c.l.s8.bf16 %v846
        %v1199 = vunpack.c.l.s8.bf16 %v847
        %v1200 = vunpack.c.l.s8.bf16 %v848
        %v1201 = vunpack.c.l.s8.bf16 %v849
        %v1202 = vunpack.c.l.s8.bf16 %v850
        %v1203 = vunpack.c.l.s8.bf16 %v851
        %v1204 = vunpack.c.h.s8.bf16 %v844
        %v1205 = vunpack.c.h.s8.bf16 %v845
        %v1206 = vunpack.c.h.s8.bf16 %v846
        %v1207 = vunpack.c.h.s8.bf16 %v847
        %v1208 = vunpack.c.h.s8.bf16 %v848
        %v1209 = vunpack.c.h.s8.bf16 %v849
        %v1210 = vunpack.c.h.s8.bf16 %v850
        %v1211 = vunpack.c.h.s8.bf16 %v851
        %v1212 = vunpack.c.l.s8.bf16 %v852
        %v1213 = vunpack.c.l.s8.bf16 %v853
        %v1214 = vunpack.c.l.s8.bf16 %v854
        %v1215 = vunpack.c.l.s8.bf16 %v855
        %v1216 = vunpack.c.l.s8.bf16 %v856
        %v1217 = vunpack.c.l.s8.bf16 %v857
        %v1218 = vunpack.c.l.s8.bf16 %v858
        %v1219 = vunpack.c.l.s8.bf16 %v859
        %v1220 = vunpack.c.h.s8.bf16 %v852
        %v1221 = vunpack.c.h.s8.bf16 %v853
        %v1222 = vunpack.c.h.s8.bf16 %v854
        %v1223 = vunpack.c.h.s8.bf16 %v855
        %v1224 = vunpack.c.h.s8.bf16 %v856
        %v1225 = vunpack.c.h.s8.bf16 %v857
        %v1226 = vunpack.c.h.s8.bf16 %v858
        %v1227 = vunpack.c.h.s8.bf16 %v859
        %v1228 = vunpack.c.l.s8.bf16 %v860
        %v1229 = vunpack.c.l.s8.bf16 %v861
        %v1230 = vunpack.c.l.s8.bf16 %v862
        %v1231 = vunpack.c.l.s8.bf16 %v863
        %v1232 = vunpack.c.l.s8.bf16 %v864
        %v1233 = vunpack.c.l.s8.bf16 %v865
        %v1234 = vunpack.c.l.s8.bf16 %v866
        %v1235 = vunpack.c.l.s8.bf16 %v867
        %v1236 = vunpack.c.h.s8.bf16 %v860
        %v1237 = vunpack.c.h.s8.bf16 %v861
        %v1238 = vunpack.c.h.s8.bf16 %v862
        %v1239 = vunpack.c.h.s8.bf16 %v863
        %v1240 = vunpack.c.h.s8.bf16 %v864
        %v1241 = vunpack.c.h.s8.bf16 %v865
        %v1242 = vunpack.c.h.s8.bf16 %v866
        %v1243 = vunpack.c.h.s8.bf16 %v867
        %v1244 = vunpack.c.l.s8.bf16 %v868
        %v1245 = vunpack.c.l.s8.bf16 %v869
        %v1246 = vunpack.c.l.s8.bf16 %v870
        %v1247 = vunpack.c.l.s8.bf16 %v871
        %v1248 = vunpack.c.l.s8.bf16 %v872
        %v1249 = vunpack.c.l.s8.bf16 %v873
        %v1250 = vunpack.c.l.s8.bf16 %v874
        %v1251 = vunpack.c.l.s8.bf16 %v875
        %v1252 = vunpack.c.h.s8.bf16 %v868
        %v1253 = vunpack.c.h.s8.bf16 %v869
        %v1254 = vunpack.c.h.s8.bf16 %v870
        %v1255 = vunpack.c.h.s8.bf16 %v871
        %v1256 = vunpack.c.h.s8.bf16 %v872
        %v1257 = vunpack.c.h.s8.bf16 %v873
        %v1258 = vunpack.c.h.s8.bf16 %v874
        %v1259 = vunpack.c.h.s8.bf16 %v875
        %v1260 = vunpack.c.l.s8.bf16 %v876
        %v1261 = vunpack.c.l.s8.bf16 %v877
        %v1262 = vunpack.c.l.s8.bf16 %v878
        %v1263 = vunpack.c.l.s8.bf16 %v879
        %v1264 = vunpack.c.l.s8.bf16 %v880
        %v1265 = vunpack.c.l.s8.bf16 %v881
        %v1266 = vunpack.c.l.s8.bf16 %v882
        %v1267 = vunpack.c.l.s8.bf16 %v883
        %v1268 = vunpack.c.h.s8.bf16 %v876
        %v1269 = vunpack.c.h.s8.bf16 %v877
        %v1270 = vunpack.c.h.s8.bf16 %v878
        %v1271 = vunpack.c.h.s8.bf16 %v879
        %v1272 = vunpack.c.h.s8.bf16 %v880
        %v1273 = vunpack.c.h.s8.bf16 %v881
        %v1274 = vunpack.c.h.s8.bf16 %v882
        %v1275 = vunpack.c.h.s8.bf16 %v883
        %v1276 = vunpack.c.l.s8.bf16 %v884
        %v1277 = vunpack.c.l.s8.bf16 %v885
        %v1278 = vunpack.c.l.s8.bf16 %v886
        %v1279 = vunpack.c.l.s8.bf16 %v887
        %v1280 = vunpack.c.l.s8.bf16 %v888
        %v1281 = vunpack.c.l.s8.bf16 %v889
        %v1282 = vunpack.c.l.s8.bf16 %v890
        %v1283 = vunpack.c.l.s8.bf16 %v891
        %v1284 = vunpack.c.h.s8.bf16 %v884
        %v1285 = vunpack.c.h.s8.bf16 %v885
        %v1286 = vunpack.c.h.s8.bf16 %v886
        %v1287 = vunpack.c.h.s8.bf16 %v887
        %v1288 = vunpack.c.h.s8.bf16 %v888
        %v1289 = vunpack.c.h.s8.bf16 %v889
        %v1290 = vunpack.c.h.s8.bf16 %v890
        %v1291 = vunpack.c.h.s8.bf16 %v891
        %v1292 = vunpack.c.l.s8.bf16 %v892
        %v1293 = vunpack.c.l.s8.bf16 %v893
        %v1294 = vunpack.c.l.s8.bf16 %v894
        %v1295 = vunpack.c.l.s8.bf16 %v895
        %v1296 = vunpack.c.l.s8.bf16 %v896
        %v1297 = vunpack.c.l.s8.bf16 %v897
        %v1298 = vunpack.c.l.s8.bf16 %v898
        %v1299 = vunpack.c.l.s8.bf16 %v899
        %v1300 = vunpack.c.h.s8.bf16 %v892
        %v1301 = vunpack.c.h.s8.bf16 %v893
        %v1302 = vunpack.c.h.s8.bf16 %v894
        %v1303 = vunpack.c.h.s8.bf16 %v895
        %v1304 = vunpack.c.h.s8.bf16 %v896
        %v1305 = vunpack.c.h.s8.bf16 %v897
        %v1306 = vunpack.c.h.s8.bf16 %v898
        %v1307 = vunpack.c.h.s8.bf16 %v899
        %v1308 = vunpack.c.l.s8.bf16 %v900
        %v1309 = vunpack.c.l.s8.bf16 %v901
        %v1310 = vunpack.c.l.s8.bf16 %v902
        %v1311 = vunpack.c.l.s8.bf16 %v903
        %v1312 = vunpack.c.l.s8.bf16 %v904
        %v1313 = vunpack.c.l.s8.bf16 %v905
        %v1314 = vunpack.c.l.s8.bf16 %v906
        %v1315 = vunpack.c.l.s8.bf16 %v907
        %v1316 = vunpack.c.h.s8.bf16 %v900
        %v1317 = vunpack.c.h.s8.bf16 %v901
        %v1318 = vunpack.c.h.s8.bf16 %v902
        %v1319 = vunpack.c.h.s8.bf16 %v903
        %v1320 = vunpack.c.h.s8.bf16 %v904
        %v1321 = vunpack.c.h.s8.bf16 %v905
        %v1322 = vunpack.c.h.s8.bf16 %v906
        %v1323 = vunpack.c.h.s8.bf16 %v907
        %v1324 = vunpack.c.l.s8.bf16 %v908
        %v1325 = vunpack.c.l.s8.bf16 %v909
        %v1326 = vunpack.c.l.s8.bf16 %v910
        %v1327 = vunpack.c.l.s8.bf16 %v911
        %v1328 = vunpack.c.l.s8.bf16 %v912
        %v1329 = vunpack.c.l.s8.bf16 %v913
        %v1330 = vunpack.c.l.s8.bf16 %v914
        %v1331 = vunpack.c.l.s8.bf16 %v915
        %v1332 = vunpack.c.h.s8.bf16 %v908
        %v1333 = vunpack.c.h.s8.bf16 %v909
        %v1334 = vunpack.c.h.s8.bf16 %v910
        %v1335 = vunpack.c.h.s8.bf16 %v911
        %v1336 = vunpack.c.h.s8.bf16 %v912
        %v1337 = vunpack.c.h.s8.bf16 %v913
        %v1338 = vunpack.c.h.s8.bf16 %v914
        %v1339 = vunpack.c.h.s8.bf16 %v915
        %v1340 = vunpack.c.l.s8.bf16 %v916
        %v1341 = vunpack.c.l.s8.bf16 %v917
        %v1342 = vunpack.c.l.s8.bf16 %v918
        %v1343 = vunpack.c.l.s8.bf16 %v919
        %v1344 = vunpack.c.l.s8.bf16 %v920
        %v1345 = vunpack.c.l.s8.bf16 %v921
        %v1346 = vunpack.c.l.s8.bf16 %v922
        %v1347 = vunpack.c.l.s8.bf16 %v923
        %v1348 = vunpack.c.h.s8.bf16 %v916
        %v1349 = vunpack.c.h.s8.bf16 %v917
        %v1350 = vunpack.c.h.s8.bf16 %v918
        %v1351 = vunpack.c.h.s8.bf16 %v919
        %v1352 = vunpack.c.h.s8.bf16 %v920
        %v1353 = vunpack.c.h.s8.bf16 %v921
        %v1354 = vunpack.c.h.s8.bf16 %v922
        %v1355 = vunpack.c.h.s8.bf16 %v923
        %v1356 = vunpack.c.l.s8.bf16 %v924
        %v1357 = vunpack.c.l.s8.bf16 %v925
        %v1358 = vunpack.c.l.s8.bf16 %v926
        %v1359 = vunpack.c.l.s8.bf16 %v927
        %v1360 = vunpack.c.l.s8.bf16 %v928
        %v1361 = vunpack.c.l.s8.bf16 %v929
        %v1362 = vunpack.c.l.s8.bf16 %v930
        %v1363 = vunpack.c.l.s8.bf16 %v931
        %v1364 = vunpack.c.h.s8.bf16 %v924
        %v1365 = vunpack.c.h.s8.bf16 %v925
        %v1366 = vunpack.c.h.s8.bf16 %v926
        %v1367 = vunpack.c.h.s8.bf16 %v927
        %v1368 = vunpack.c.h.s8.bf16 %v928
        %v1369 = vunpack.c.h.s8.bf16 %v929
        %v1370 = vunpack.c.h.s8.bf16 %v930
        %v1371 = vunpack.c.h.s8.bf16 %v931
        %v1372 = vunpack.c.l.s8.bf16 %v932
        %v1373 = vunpack.c.l.s8.bf16 %v933
        %v1374 = vunpack.c.l.s8.bf16 %v934
        %v1375 = vunpack.c.l.s8.bf16 %v935
        %v1376 = vunpack.c.l.s8.bf16 %v936
        %v1377 = vunpack.c.l.s8.bf16 %v937
        %v1378 = vunpack.c.l.s8.bf16 %v938
        %v1379 = vunpack.c.l.s8.bf16 %v939
        %v1380 = vunpack.c.h.s8.bf16 %v932
        %v1381 = vunpack.c.h.s8.bf16 %v933
        %v1382 = vunpack.c.h.s8.bf16 %v934
        %v1383 = vunpack.c.h.s8.bf16 %v935
        %v1384 = vunpack.c.h.s8.bf16 %v936
        %v1385 = vunpack.c.h.s8.bf16 %v937
        %v1386 = vunpack.c.h.s8.bf16 %v938
        %v1387 = vunpack.c.h.s8.bf16 %v939
        %v1388 = vunpack.c.l.s8.bf16 %v940
        %v1389 = vunpack.c.l.s8.bf16 %v941
        %v1390 = vunpack.c.l.s8.bf16 %v942
        %v1391 = vunpack.c.l.s8.bf16 %v943
        %v1392 = vunpack.c.l.s8.bf16 %v944
        %v1393 = vunpack.c.l.s8.bf16 %v945
        %v1394 = vunpack.c.l.s8.bf16 %v946
        %v1395 = vunpack.c.l.s8.bf16 %v947
        %v1396 = vunpack.c.h.s8.bf16 %v940
        %v1397 = vunpack.c.h.s8.bf16 %v941
        %v1398 = vunpack.c.h.s8.bf16 %v942
        %v1399 = vunpack.c.h.s8.bf16 %v943
        %v1400 = vunpack.c.h.s8.bf16 %v944
        %v1401 = vunpack.c.h.s8.bf16 %v945
        %v1402 = vunpack.c.h.s8.bf16 %v946
        %v1403 = vunpack.c.h.s8.bf16 %v947
        %v1404 = vunpack.c.l.s8.bf16 %v948
        %v1405 = vunpack.c.l.s8.bf16 %v949
        %v1406 = vunpack.c.l.s8.bf16 %v950
        %v1407 = vunpack.c.l.s8.bf16 %v951
        %v1408 = vunpack.c.l.s8.bf16 %v952
        %v1409 = vunpack.c.l.s8.bf16 %v953
        %v1410 = vunpack.c.l.s8.bf16 %v954
        %v1411 = vunpack.c.l.s8.bf16 %v955
        %v1412 = vunpack.c.h.s8.bf16 %v948
        %v1413 = vunpack.c.h.s8.bf16 %v949
        %v1414 = vunpack.c.h.s8.bf16 %v950
        %v1415 = vunpack.c.h.s8.bf16 %v951
        %v1416 = vunpack.c.h.s8.bf16 %v952
        %v1417 = vunpack.c.h.s8.bf16 %v953
        %v1418 = vunpack.c.h.s8.bf16 %v954
        %v1419 = vunpack.c.h.s8.bf16 %v955
        %v1420 = vunpack.c.l.s8.bf16 %v956
        %v1421 = vunpack.c.l.s8.bf16 %v957
        %v1422 = vunpack.c.l.s8.bf16 %v958
        %v1423 = vunpack.c.l.s8.bf16 %v959
        %v1424 = vunpack.c.l.s8.bf16 %v960
        %v1425 = vunpack.c.l.s8.bf16 %v961
        %v1426 = vunpack.c.l.s8.bf16 %v962
        %v1427 = vunpack.c.l.s8.bf16 %v963
        %v1428 = vunpack.c.h.s8.bf16 %v956
        %v1429 = vunpack.c.h.s8.bf16 %v957
        %v1430 = vunpack.c.h.s8.bf16 %v958
        %v1431 = vunpack.c.h.s8.bf16 %v959
        %v1432 = vunpack.c.h.s8.bf16 %v960
        %v1433 = vunpack.c.h.s8.bf16 %v961
        %v1434 = vunpack.c.h.s8.bf16 %v962
        %v1435 = vunpack.c.h.s8.bf16 %v963
        %v1436 = vunpack.c.l.s8.bf16 %v964
        %v1437 = vunpack.c.l.s8.bf16 %v965
        %v1438 = vunpack.c.l.s8.bf16 %v966
        %v1439 = vunpack.c.l.s8.bf16 %v967
        %v1440 = vunpack.c.l.s8.bf16 %v968
        %v1441 = vunpack.c.l.s8.bf16 %v969
        %v1442 = vunpack.c.l.s8.bf16 %v970
        %v1443 = vunpack.c.l.s8.bf16 %v971
        %v1444 = vunpack.c.h.s8.bf16 %v964
        %v1445 = vunpack.c.h.s8.bf16 %v965
        %v1446 = vunpack.c.h.s8.bf16 %v966
        %v1447 = vunpack.c.h.s8.bf16 %v967
        %v1448 = vunpack.c.h.s8.bf16 %v968
        %v1449 = vunpack.c.h.s8.bf16 %v969
        %v1450 = vunpack.c.h.s8.bf16 %v970
        %v1451 = vunpack.c.h.s8.bf16 %v971
        %v1452 = vunpack.c.l.s8.bf16 %v972
        %v1453 = vunpack.c.l.s8.bf16 %v973
        %v1454 = vunpack.c.l.s8.bf16 %v974
        %v1455 = vunpack.c.l.s8.bf16 %v975
        %v1456 = vunpack.c.l.s8.bf16 %v976
        %v1457 = vunpack.c.l.s8.bf16 %v977
        %v1458 = vunpack.c.l.s8.bf16 %v978
        %v1459 = vunpack.c.l.s8.bf16 %v979
        %v1460 = vunpack.c.h.s8.bf16 %v972
        %v1461 = vunpack.c.h.s8.bf16 %v973
        %v1462 = vunpack.c.h.s8.bf16 %v974
        %v1463 = vunpack.c.h.s8.bf16 %v975
        %v1464 = vunpack.c.h.s8.bf16 %v976
        %v1465 = vunpack.c.h.s8.bf16 %v977
        %v1466 = vunpack.c.h.s8.bf16 %v978
        %v1467 = vunpack.c.h.s8.bf16 %v979
        %v1468 = vunpack.c.l.s8.bf16 %v980
        %v1469 = vunpack.c.l.s8.bf16 %v981
        %v1470 = vunpack.c.l.s8.bf16 %v982
        %v1471 = vunpack.c.l.s8.bf16 %v983
        %v1472 = vunpack.c.l.s8.bf16 %v984
        %v1473 = vunpack.c.l.s8.bf16 %v985
        %v1474 = vunpack.c.l.s8.bf16 %v986
        %v1475 = vunpack.c.l.s8.bf16 %v987
        %v1476 = vunpack.c.h.s8.bf16 %v980
        %v1477 = vunpack.c.h.s8.bf16 %v981
        %v1478 = vunpack.c.h.s8.bf16 %v982
        %v1479 = vunpack.c.h.s8.bf16 %v983
        %v1480 = vunpack.c.h.s8.bf16 %v984
        %v1481 = vunpack.c.h.s8.bf16 %v985
        %v1482 = vunpack.c.h.s8.bf16 %v986
        %v1483 = vunpack.c.h.s8.bf16 %v987
        %v1484 = vunpack.c.l.s8.bf16 %v988
        %v1485 = vunpack.c.l.s8.bf16 %v989
        %v1486 = vunpack.c.l.s8.bf16 %v990
        %v1487 = vunpack.c.l.s8.bf16 %v991
        %v1488 = vunpack.c.l.s8.bf16 %v992
        %v1489 = vunpack.c.l.s8.bf16 %v993
        %v1490 = vunpack.c.l.s8.bf16 %v994
        %v1491 = vunpack.c.l.s8.bf16 %v995
        %v1492 = vunpack.c.h.s8.bf16 %v988
        %v1493 = vunpack.c.h.s8.bf16 %v989
        %v1494 = vunpack.c.h.s8.bf16 %v990
        %v1495 = vunpack.c.h.s8.bf16 %v991
        %v1496 = vunpack.c.h.s8.bf16 %v992
        %v1497 = vunpack.c.h.s8.bf16 %v993
        %v1498 = vunpack.c.h.s8.bf16 %v994
        %v1499 = vunpack.c.h.s8.bf16 %v995
        %v1500 = vunpack.c.l.s8.bf16 %v996
        %v1501 = vunpack.c.l.s8.bf16 %v997
        %v1502 = vunpack.c.l.s8.bf16 %v998
        %v1503 = vunpack.c.l.s8.bf16 %v999
        %v1504 = vunpack.c.l.s8.bf16 %v1000
        %v1505 = vunpack.c.l.s8.bf16 %v1001
        %v1506 = vunpack.c.l.s8.bf16 %v1002
        %v1507 = vunpack.c.l.s8.bf16 %v1003
        %v1508 = vunpack.c.h.s8.bf16 %v996
        %v1509 = vunpack.c.h.s8.bf16 %v997
        %v1510 = vunpack.c.h.s8.bf16 %v998
        %v1511 = vunpack.c.h.s8.bf16 %v999
        %v1512 = vunpack.c.h.s8.bf16 %v1000
        %v1513 = vunpack.c.h.s8.bf16 %v1001
        %v1514 = vunpack.c.h.s8.bf16 %v1002
        %v1515 = vunpack.c.h.s8.bf16 %v1003
        %v1516 = vpack.c.bf16 %v740, %v740
        %v1517 = vpack.c.bf16 %v741, %v741
        %v1518 = vpack.c.bf16 %v742, %v742
        %v1519 = vpack.c.bf16 %v743, %v743
        %v1520 = vpack.c.bf16 %v744, %v744
        %v1521 = vpack.c.bf16 %v745, %v745
        %v1522 = vpack.c.bf16 %v746, %v746
        %v1523 = vpack.c.bf16 %v747, %v747
        %1524 = vmatprep.subr.bf16.mxu0 %v1005
        %1525 = vmatpush1.bf16.msra.mxu0 %v1004
        %1526 = vmatprep.subr.bf16.mxu0 %v1013
        %1527 = vmatpush1.bf16.msra.mxu0 %v1012
        %1528 = vmatprep.subr.bf16.mxu0 %v1021
        %1529 = vmatpush1.bf16.msra.mxu0 %v1020
        %1530 = vmatprep.subr.bf16.mxu0 %v1029
        %1531 = vmatpush1.bf16.msra.mxu0 %v1028
        %1532 = vmatprep.subr.bf16.mxu0 %v1037
        %1533 = vmatpush1.bf16.msra.mxu0 %v1036
        %1534 = vmatprep.subr.bf16.mxu0 %v1045
        %1535 = vmatpush1.bf16.msra.mxu0 %v1044
        %1536 = vmatprep.subr.bf16.mxu0 %v1053
        %1537 = vmatpush1.bf16.msra.mxu0 %v1052
        %1538 = vmatprep.subr.bf16.mxu0 %v1061
        %1539 = vmatpush1.bf16.msra.mxu0 %v1060
        %1540 = vmatprep.subr.bf16.mxu0 %v1069
        %1541 = vmatpush1.bf16.msra.mxu0 %v1068
        %1542 = vmatprep.subr.bf16.mxu0 %v1077
        %1543 = vmatpush1.bf16.msra.mxu0 %v1076
        %1544 = vmatprep.subr.bf16.mxu0 %v1085
        %1545 = vmatpush1.bf16.msra.mxu0 %v1084
        %1546 = vmatprep.subr.bf16.mxu0 %v1093
        %1547 = vmatpush1.bf16.msra.mxu0 %v1092
        %1548 = vmatprep.subr.bf16.mxu0 %v1101
        %1549 = vmatpush1.bf16.msra.mxu0 %v1100
        %1550 = vmatprep.subr.bf16.mxu0 %v1109
        %1551 = vmatpush1.bf16.msra.mxu0 %v1108
        %1552 = vmatprep.subr.bf16.mxu0 %v1117
        %1553 = vmatpush1.bf16.msra.mxu0 %v1116
        %1554 = vmatprep.subr.bf16.mxu0 %v1125
        %1555 = vmatpush1.bf16.msra.mxu0 %v1124
        %1556 = vmatprep.mubr.bf16.mxu0 %v1517
        %1557 = vmatmul.mubr.bf16.gmra.mrb[0].mxu0 %v1516
        %v1558 = vpop.f32.mrb[0].mxu0
        %v1559 = vadd.f32 0.0, %v1558
        %v1560 = vpop.f32.mrb[0].mxu0
        %v1561 = vadd.f32 0.0, %v1560
        %v1562 = vpop.f32.mrb[0].mxu0
        %v1563 = vpop.f32.mrb[0].mxu0
        %1564 = vdwg.mxu0
        %1565 = vmatprep.subr.bf16.mxu0 %v1133
        %1566 = vmatpush1.bf16.msra.mxu0 %v1132
        %1567 = vmatprep.subr.bf16.mxu0 %v1141
        %1568 = vmatpush1.bf16.msra.mxu0 %v1140
        %1569 = vmatprep.subr.bf16.mxu0 %v1149
        %1570 = vmatpush1.bf16.msra.mxu0 %v1148
        %1571 = vmatprep.subr.bf16.mxu0 %v1157
        %1572 = vmatpush1.bf16.msra.mxu0 %v1156
        %1573 = vmatprep.subr.bf16.mxu0 %v1165
        %1574 = vmatpush1.bf16.msra.mxu0 %v1164
        %1575 = vmatprep.subr.bf16.mxu0 %v1173
        %1576 = vmatpush1.bf16.msra.mxu0 %v1172
        %1577 = vmatprep.subr.bf16.mxu0 %v1181
        %1578 = vmatpush1.bf16.msra.mxu0 %v1180
        %1579 = vmatprep.subr.bf16.mxu0 %v1189
        %1580 = vmatpush1.bf16.msra.mxu0 %v1188
        %1581 = vmatprep.subr.bf16.mxu0 %v1197
        %1582 = vmatpush1.bf16.msra.mxu0 %v1196
        %1583 = vmatprep.subr.bf16.mxu0 %v1205
        %1584 = vmatpush1.bf16.msra.mxu0 %v1204
        %1585 = vmatprep.subr.bf16.mxu0 %v1213
        %1586 = vmatpush1.bf16.msra.mxu0 %v1212
        %1587 = vmatprep.subr.bf16.mxu0 %v1221
        %1588 = vmatpush1.bf16.msra.mxu0 %v1220
        %1589 = vmatprep.subr.bf16.mxu0 %v1229
        %1590 = vmatpush1.bf16.msra.mxu0 %v1228
        %1591 = vmatprep.subr.bf16.mxu0 %v1237
        %1592 = vmatpush1.bf16.msra.mxu0 %v1236
        %1593 = vmatprep.subr.bf16.mxu0 %v1245
        %1594 = vmatpush1.bf16.msra.mxu0 %v1244
        %1595 = vmatprep.subr.bf16.mxu0 %v1253
        %1596 = vmatpush1.bf16.msra.mxu0 %v1252
        %1597 = vmatprep.mubr.bf16.mxu0 %v1519
        %1598 = vmatmul.mubr.bf16.gmra.mrb[0].mxu0 %v1518
        %v1599 = vpop.f32.mrb[0].mxu0
        %v1600 = vadd.f32 %v1559, %v1599
        %v1601 = vpop.f32.mrb[0].mxu0
        %v1602 = vadd.f32 %v1561, %v1601
        %v1603 = vpop.f32.mrb[0].mxu0
        %v1604 = vpop.f32.mrb[0].mxu0
        %1605 = vdwg.mxu0
        %1606 = vmatprep.subr.bf16.mxu0 %v1261
        %1607 = vmatpush1.bf16.msra.mxu0 %v1260
        %1608 = vmatprep.subr.bf16.mxu0 %v1269
        %1609 = vmatpush1.bf16.msra.mxu0 %v1268
        %1610 = vmatprep.subr.bf16.mxu0 %v1277
        %1611 = vmatpush1.bf16.msra.mxu0 %v1276
        %1612 = vmatprep.subr.bf16.mxu0 %v1285
        %1613 = vmatpush1.bf16.msra.mxu0 %v1284
        %1614 = vmatprep.subr.bf16.mxu0 %v1293
        %1615 = vmatpush1.bf16.msra.mxu0 %v1292
        %1616 = vmatprep.subr.bf16.mxu0 %v1301
        %1617 = vmatpush1.bf16.msra.mxu0 %v1300
        %1618 = vmatprep.subr.bf16.mxu0 %v1309
        %1619 = vmatpush1.bf16.msra.mxu0 %v1308
        %1620 = vmatprep.subr.bf16.mxu0 %v1317
        %1621 = vmatpush1.bf16.msra.mxu0 %v1316
        %1622 = vmatprep.subr.bf16.mxu0 %v1325
        %1623 = vmatpush1.bf16.msra.mxu0 %v1324
        %1624 = vmatprep.subr.bf16.mxu0 %v1333
        %1625 = vmatpush1.bf16.msra.mxu0 %v1332
        %1626 = vmatprep.subr.bf16.mxu0 %v1341
        %1627 = vmatpush1.bf16.msra.mxu0 %v1340
        %1628 = vmatprep.subr.bf16.mxu0 %v1349
        %1629 = vmatpush1.bf16.msra.mxu0 %v1348
        %1630 = vmatprep.subr.bf16.mxu0 %v1357
        %1631 = vmatpush1.bf16.msra.mxu0 %v1356
        %1632 = vmatprep.subr.bf16.mxu0 %v1365
        %1633 = vmatpush1.bf16.msra.mxu0 %v1364
        %1634 = vmatprep.subr.bf16.mxu0 %v1373
        %1635 = vmatpush1.bf16.msra.mxu0 %v1372
        %1636 = vmatprep.subr.bf16.mxu0 %v1381
        %1637 = vmatpush1.bf16.msra.mxu0 %v1380
        %1638 = vmatprep.mubr.bf16.mxu0 %v1521
        %1639 = vmatmul.mubr.bf16.gmra.mrb[0].mxu0 %v1520
        %v1640 = vpop.f32.mrb[0].mxu0
        %v1641 = vadd.f32 %v1600, %v1640
        %v1642 = vpop.f32.mrb[0].mxu0
        %v1643 = vadd.f32 %v1602, %v1642
        %v1644 = vpop.f32.mrb[0].mxu0
        %v1645 = vpop.f32.mrb[0].mxu0
        %1646 = vdwg.mxu0
        %1647 = vmatprep.subr.bf16.mxu0 %v1389
        %1648 = vmatpush1.bf16.msra.mxu0 %v1388
        %1649 = vmatprep.subr.bf16.mxu0 %v1397
        %1650 = vmatpush1.bf16.msra.mxu0 %v1396
        %1651 = vmatprep.subr.bf16.mxu0 %v1405
        %1652 = vmatpush1.bf16.msra.mxu0 %v1404
        %1653 = vmatprep.subr.bf16.mxu0 %v1413
        %1654 = vmatpush1.bf16.msra.mxu0 %v1412
        %1655 = vmatprep.subr.bf16.mxu0 %v1421
        %1656 = vmatpush1.bf16.msra.mxu0 %v1420
        %1657 = vmatprep.subr.bf16.mxu0 %v1429
        %1658 = vmatpush1.bf16.msra.mxu0 %v1428
        %1659 = vmatprep.subr.bf16.mxu0 %v1437
        %1660 = vmatpush1.bf16.msra.mxu0 %v1436
        %1661 = vmatprep.subr.bf16.mxu0 %v1445
        %1662 = vmatpush1.bf16.msra.mxu0 %v1444
        %1663 = vmatprep.subr.bf16.mxu0 %v1453
        %1664 = vmatpush1.bf16.msra.mxu0 %v1452
        %1665 = vmatprep.subr.bf16.mxu0 %v1461
        %1666 = vmatpush1.bf16.msra.mxu0 %v1460
        %1667 = vmatprep.subr.bf16.mxu0 %v1469
        %1668 = vmatpush1.bf16.msra.mxu0 %v1468
        %1669 = vmatprep.subr.bf16.mxu0 %v1477
        %1670 = vmatpush1.bf16.msra.mxu0 %v1476
        %1671 = vmatprep.subr.bf16.mxu0 %v1485
        %1672 = vmatpush1.bf16.msra.mxu0 %v1484
        %1673 = vmatprep.subr.bf16.mxu0 %v1493
        %1674 = vmatpush1.bf16.msra.mxu0 %v1492
        %1675 = vmatprep.subr.bf16.mxu0 %v1501
        %1676 = vmatpush1.bf16.msra.mxu0 %v1500
        %1677 = vmatprep.subr.bf16.mxu0 %v1509
        %1678 = vmatpush1.bf16.msra.mxu0 %v1508
        %1679 = vmatprep.mubr.bf16.mxu0 %v1523
        %1680 = vmatmul.mubr.bf16.gmra.mrb[0].mxu0 %v1522
        %v1681 = vpop.f32.mrb[0].mxu0
        %v1682 = vadd.f32 %v1641, %v1681
        %v1683 = vpop.f32.mrb[0].mxu0
        %v1684 = vadd.f32 %v1643, %v1683
        %v1685 = vpop.f32.mrb[0].mxu0
        %v1686 = vpop.f32.mrb[0].mxu0
        %1687 = vdwg.mxu0
        %1688 = vmatprep.subr.bf16.mxu0 %v1007
        %1689 = vmatpush1.bf16.msra.mxu0 %v1006
        %1690 = vmatprep.subr.bf16.mxu0 %v1015
        %1691 = vmatpush1.bf16.msra.mxu0 %v1014
        %1692 = vmatprep.subr.bf16.mxu0 %v1023
        %1693 = vmatpush1.bf16.msra.mxu0 %v1022
        %1694 = vmatprep.subr.bf16.mxu0 %v1031
        %1695 = vmatpush1.bf16.msra.mxu0 %v1030
        %1696 = vmatprep.subr.bf16.mxu0 %v1039
        %1697 = vmatpush1.bf16.msra.mxu0 %v1038
        %1698 = vmatprep.subr.bf16.mxu0 %v1047
        %1699 = vmatpush1.bf16.msra.mxu0 %v1046
        %1700 = vmatprep.subr.bf16.mxu0 %v1055
        %1701 = vmatpush1.bf16.msra.mxu0 %v1054
        %1702 = vmatprep.subr.bf16.mxu0 %v1063
        %1703 = vmatpush1.bf16.msra.mxu0 %v1062
        %1704 = vmatprep.subr.bf16.mxu0 %v1071
        %1705 = vmatpush1.bf16.msra.mxu0 %v1070
        %1706 = vmatprep.subr.bf16.mxu0 %v1079
        %1707 = vmatpush1.bf16.msra.mxu0 %v1078
        %1708 = vmatprep.subr.bf16.mxu0 %v1087
        %1709 = vmatpush1.bf16.msra.mxu0 %v1086
        %1710 = vmatprep.subr.bf16.mxu0 %v1095
        %1711 = vmatpush1.bf16.msra.mxu0 %v1094
        %1712 = vmatprep.subr.bf16.mxu0 %v1103
        %1713 = vmatpush1.bf16.msra.mxu0 %v1102
        %1714 = vmatprep.subr.bf16.mxu0 %v1111
        %1715 = vmatpush1.bf16.msra.mxu0 %v1110
        %1716 = vmatprep.subr.bf16.mxu0 %v1119
        %1717 = vmatpush1.bf16.msra.mxu0 %v1118
        %1718 = vmatprep.subr.bf16.mxu0 %v1127
        %1719 = vmatpush1.bf16.msra.mxu0 %v1126
        %1720 = vmatprep.mubr.bf16.mxu0 %v1517
        %1721 = vmatmul.mubr.bf16.gmra.mrb[0].mxu0 %v1516
        %v1722 = vpop.f32.mrb[0].mxu0
        %v1723 = vadd.f32 0.0, %v1722
        %v1724 = vpop.f32.mrb[0].mxu0
        %v1725 = vadd.f32 0.0, %v1724
        %v1726 = vpop.f32.mrb[0].mxu0
        %v1727 = vpop.f32.mrb[0].mxu0
        %1728 = vdwg.mxu0
        %1729 = vmatprep.subr.bf16.mxu0 %v1135
        %1730 = vmatpush1.bf16.msra.mxu0 %v1134
        %1731 = vmatprep.subr.bf16.mxu0 %v1143
        %1732 = vmatpush1.bf16.msra.mxu0 %v1142
        %1733 = vmatprep.subr.bf16.mxu0 %v1151
        %1734 = vmatpush1.bf16.msra.mxu0 %v1150
        %1735 = vmatprep.subr.bf16.mxu0 %v1159
        %1736 = vmatpush1.bf16.msra.mxu0 %v1158
        %1737 = vmatprep.subr.bf16.mxu0 %v1167
        %1738 = vmatpush1.bf16.msra.mxu0 %v1166
        %1739 = vmatprep.subr.bf16.mxu0 %v1175
        %1740 = vmatpush1.bf16.msra.mxu0 %v1174
        %1741 = vmatprep.subr.bf16.mxu0 %v1183
        %1742 = vmatpush1.bf16.msra.mxu0 %v1182
        %1743 = vmatprep.subr.bf16.mxu0 %v1191
        %1744 = vmatpush1.bf16.msra.mxu0 %v1190
        %1745 = vmatprep.subr.bf16.mxu0 %v1199
        %1746 = vmatpush1.bf16.msra.mxu0 %v1198
        %1747 = vmatprep.subr.bf16.mxu0 %v1207
        %1748 = vmatpush1.bf16.msra.mxu0 %v1206
        %1749 = vmatprep.subr.bf16.mxu0 %v1215
        %1750 = vmatpush1.bf16.msra.mxu0 %v1214
        %1751 = vmatprep.subr.bf16.mxu0 %v1223
        %1752 = vmatpush1.bf16.msra.mxu0 %v1222
        %1753 = vmatprep.subr.bf16.mxu0 %v1231
        %1754 = vmatpush1.bf16.msra.mxu0 %v1230
        %1755 = vmatprep.subr.bf16.mxu0 %v1239
        %1756 = vmatpush1.bf16.msra.mxu0 %v1238
        %1757 = vmatprep.subr.bf16.mxu0 %v1247
        %1758 = vmatpush1.bf16.msra.mxu0 %v1246
        %1759 = vmatprep.subr.bf16.mxu0 %v1255
        %1760 = vmatpush1.bf16.msra.mxu0 %v1254
        %1761 = vmatprep.mubr.bf16.mxu0 %v1519
        %1762 = vmatmul.mubr.bf16.gmra.mrb[0].mxu0 %v1518
        %v1763 = vpop.f32.mrb[0].mxu0
        %v1764 = vadd.f32 %v1723, %v1763
        %v1765 = vpop.f32.mrb[0].mxu0
        %v1766 = vadd.f32 %v1725, %v1765
        %v1767 = vpop.f32.mrb[0].mxu0
        %v1768 = vpop.f32.mrb[0].mxu0
        %1769 = vdwg.mxu0
        %1770 = vmatprep.subr.bf16.mxu0 %v1263
        %1771 = vmatpush1.bf16.msra.mxu0 %v1262
        %1772 = vmatprep.subr.bf16.mxu0 %v1271
        %1773 = vmatpush1.bf16.msra.mxu0 %v1270
        %1774 = vmatprep.subr.bf16.mxu0 %v1279
        %1775 = vmatpush1.bf16.msra.mxu0 %v1278
        %1776 = vmatprep.subr.bf16.mxu0 %v1287
        %1777 = vmatpush1.bf16.msra.mxu0 %v1286
        %1778 = vmatprep.subr.bf16.mxu0 %v1295
        %1779 = vmatpush1.bf16.msra.mxu0 %v1294
        %1780 = vmatprep.subr.bf16.mxu0 %v1303
        %1781 = vmatpush1.bf16.msra.mxu0 %v1302
        %1782 = vmatprep.subr.bf16.mxu0 %v1311
        %1783 = vmatpush1.bf16.msra.mxu0 %v1310
        %1784 = vmatprep.subr.bf16.mxu0 %v1319
        %1785 = vmatpush1.bf16.msra.mxu0 %v1318
        %1786 = vmatprep.subr.bf16.mxu0 %v1327
        %1787 = vmatpush1.bf16.msra.mxu0 %v1326
        %1788 = vmatprep.subr.bf16.mxu0 %v1335
        %1789 = vmatpush1.bf16.msra.mxu0 %v1334
        %1790 = vmatprep.subr.bf16.mxu0 %v1343
        %1791 = vmatpush1.bf16.msra.mxu0 %v1342
        %1792 = vmatprep.subr.bf16.mxu0 %v1351
        %1793 = vmatpush1.bf16.msra.mxu0 %v1350
        %1794 = vmatprep.subr.bf16.mxu0 %v1359
        %1795 = vmatpush1.bf16.msra.mxu0 %v1358
        %1796 = vmatprep.subr.bf16.mxu0 %v1367
        %1797 = vmatpush1.bf16.msra.mxu0 %v1366
        %1798 = vmatprep.subr.bf16.mxu0 %v1375
        %1799 = vmatpush1.bf16.msra.mxu0 %v1374
        %1800 = vmatprep.subr.bf16.mxu0 %v1383
        %1801 = vmatpush1.bf16.msra.mxu0 %v1382
        %1802 = vmatprep.mubr.bf16.mxu0 %v1521
        %1803 = vmatmul.mubr.bf16.gmra.mrb[0].mxu0 %v1520
        %v1804 = vpop.f32.mrb[0].mxu0
        %v1805 = vadd.f32 %v1764, %v1804
        %v1806 = vpop.f32.mrb[0].mxu0
        %v1807 = vadd.f32 %v1766, %v1806
        %v1808 = vpop.f32.mrb[0].mxu0
        %v1809 = vpop.f32.mrb[0].mxu0
        %1810 = vdwg.mxu0
        %1811 = vmatprep.subr.bf16.mxu0 %v1391
        %1812 = vmatpush1.bf16.msra.mxu0 %v1390
        %1813 = vmatprep.subr.bf16.mxu0 %v1399
        %1814 = vmatpush1.bf16.msra.mxu0 %v1398
        %1815 = vmatprep.subr.bf16.mxu0 %v1407
        %1816 = vmatpush1.bf16.msra.mxu0 %v1406
        %1817 = vmatprep.subr.bf16.mxu0 %v1415
        %1818 = vmatpush1.bf16.msra.mxu0 %v1414
        %1819 = vmatprep.subr.bf16.mxu0 %v1423
        %1820 = vmatpush1.bf16.msra.mxu0 %v1422
        %1821 = vmatprep.subr.bf16.mxu0 %v1431
        %1822 = vmatpush1.bf16.msra.mxu0 %v1430
        %1823 = vmatprep.subr.bf16.mxu0 %v1439
        %1824 = vmatpush1.bf16.msra.mxu0 %v1438
        %1825 = vmatprep.subr.bf16.mxu0 %v1447
        %1826 = vmatpush1.bf16.msra.mxu0 %v1446
        %1827 = vmatprep.subr.bf16.mxu0 %v1455
        %1828 = vmatpush1.bf16.msra.mxu0 %v1454
        %1829 = vmatprep.subr.bf16.mxu0 %v1463
        %1830 = vmatpush1.bf16.msra.mxu0 %v1462
        %1831 = vmatprep.subr.bf16.mxu0 %v1471
        %1832 = vmatpush1.bf16.msra.mxu0 %v1470
        %1833 = vmatprep.subr.bf16.mxu0 %v1479
        %1834 = vmatpush1.bf16.msra.mxu0 %v1478
        %1835 = vmatprep.subr.bf16.mxu0 %v1487
        %1836 = vmatpush1.bf16.msra.mxu0 %v1486
        %1837 = vmatprep.subr.bf16.mxu0 %v1495
        %1838 = vmatpush1.bf16.msra.mxu0 %v1494
        %1839 = vmatprep.subr.bf16.mxu0 %v1503
        %1840 = vmatpush1.bf16.msra.mxu0 %v1502
        %1841 = vmatprep.subr.bf16.mxu0 %v1511
        %1842 = vmatpush1.bf16.msra.mxu0 %v1510
        %1843 = vmatprep.mubr.bf16.mxu0 %v1523
        %1844 = vmatmul.mubr.bf16.gmra.mrb[0].mxu0 %v1522
        %v1845 = vpop.f32.mrb[0].mxu0
        %v1846 = vadd.f32 %v1805, %v1845
        %v1847 = vpop.f32.mrb[0].mxu0
        %v1848 = vadd.f32 %v1807, %v1847
        %v1849 = vpop.f32.mrb[0].mxu0
        %v1850 = vpop.f32.mrb[0].mxu0
        %1851 = vdwg.mxu0
        %1852 = vmatprep.subr.bf16.mxu0 %v1009
        %1853 = vmatpush1.bf16.msra.mxu0 %v1008
        %1854 = vmatprep.subr.bf16.mxu0 %v1017
        %1855 = vmatpush1.bf16.msra.mxu0 %v1016
        %1856 = vmatprep.subr.bf16.mxu0 %v1025
        %1857 = vmatpush1.bf16.msra.mxu0 %v1024
        %1858 = vmatprep.subr.bf16.mxu0 %v1033
        %1859 = vmatpush1.bf16.msra.mxu0 %v1032
        %1860 = vmatprep.subr.bf16.mxu0 %v1041
        %1861 = vmatpush1.bf16.msra.mxu0 %v1040
        %1862 = vmatprep.subr.bf16.mxu0 %v1049
        %1863 = vmatpush1.bf16.msra.mxu0 %v1048
        %1864 = vmatprep.subr.bf16.mxu0 %v1057
        %1865 = vmatpush1.bf16.msra.mxu0 %v1056
        %1866 = vmatprep.subr.bf16.mxu0 %v1065
        %1867 = vmatpush1.bf16.msra.mxu0 %v1064
        %1868 = vmatprep.subr.bf16.mxu0 %v1073
        %1869 = vmatpush1.bf16.msra.mxu0 %v1072
        %1870 = vmatprep.subr.bf16.mxu0 %v1081
        %1871 = vmatpush1.bf16.msra.mxu0 %v1080
        %1872 = vmatprep.subr.bf16.mxu0 %v1089
        %1873 = vmatpush1.bf16.msra.mxu0 %v1088
        %1874 = vmatprep.subr.bf16.mxu0 %v1097
        %1875 = vmatpush1.bf16.msra.mxu0 %v1096
        %1876 = vmatprep.subr.bf16.mxu0 %v1105
        %1877 = vmatpush1.bf16.msra.mxu0 %v1104
        %1878 = vmatprep.subr.bf16.mxu0 %v1113
        %1879 = vmatpush1.bf16.msra.mxu0 %v1112
        %1880 = vmatprep.subr.bf16.mxu0 %v1121
        %1881 = vmatpush1.bf16.msra.mxu0 %v1120
        %1882 = vmatprep.subr.bf16.mxu0 %v1129
        %1883 = vmatpush1.bf16.msra.mxu0 %v1128
        %1884 = vmatprep.mubr.bf16.mxu0 %v1517
        %1885 = vmatmul.mubr.bf16.gmra.mrb[0].mxu0 %v1516
        %v1886 = vpop.f32.mrb[0].mxu0
        %v1887 = vadd.f32 0.0, %v1886
        %v1888 = vpop.f32.mrb[0].mxu0
        %v1889 = vadd.f32 0.0, %v1888
        %v1890 = vpop.f32.mrb[0].mxu0
        %v1891 = vpop.f32.mrb[0].mxu0
        %1892 = vdwg.mxu0
        %1893 = vmatprep.subr.bf16.mxu0 %v1137
        %1894 = vmatpush1.bf16.msra.mxu0 %v1136
        %1895 = vmatprep.subr.bf16.mxu0 %v1145
        %1896 = vmatpush1.bf16.msra.mxu0 %v1144
        %1897 = vmatprep.subr.bf16.mxu0 %v1153
        %1898 = vmatpush1.bf16.msra.mxu0 %v1152
        %1899 = vmatprep.subr.bf16.mxu0 %v1161
        %1900 = vmatpush1.bf16.msra.mxu0 %v1160
        %1901 = vmatprep.subr.bf16.mxu0 %v1169
        %1902 = vmatpush1.bf16.msra.mxu0 %v1168
        %1903 = vmatprep.subr.bf16.mxu0 %v1177
        %1904 = vmatpush1.bf16.msra.mxu0 %v1176
        %1905 = vmatprep.subr.bf16.mxu0 %v1185
        %1906 = vmatpush1.bf16.msra.mxu0 %v1184
        %1907 = vmatprep.subr.bf16.mxu0 %v1193
        %1908 = vmatpush1.bf16.msra.mxu0 %v1192
        %1909 = vmatprep.subr.bf16.mxu0 %v1201
        %1910 = vmatpush1.bf16.msra.mxu0 %v1200
        %1911 = vmatprep.subr.bf16.mxu0 %v1209
        %1912 = vmatpush1.bf16.msra.mxu0 %v1208
        %1913 = vmatprep.subr.bf16.mxu0 %v1217
        %1914 = vmatpush1.bf16.msra.mxu0 %v1216
        %1915 = vmatprep.subr.bf16.mxu0 %v1225
        %1916 = vmatpush1.bf16.msra.mxu0 %v1224
        %1917 = vmatprep.subr.bf16.mxu0 %v1233
        %1918 = vmatpush1.bf16.msra.mxu0 %v1232
        %1919 = vmatprep.subr.bf16.mxu0 %v1241
        %1920 = vmatpush1.bf16.msra.mxu0 %v1240
        %1921 = vmatprep.subr.bf16.mxu0 %v1249
        %1922 = vmatpush1.bf16.msra.mxu0 %v1248
        %1923 = vmatprep.subr.bf16.mxu0 %v1257
        %1924 = vmatpush1.bf16.msra.mxu0 %v1256
        %1925 = vmatprep.mubr.bf16.mxu0 %v1519
        %1926 = vmatmul.mubr.bf16.gmra.mrb[0].mxu0 %v1518
        %v1927 = vpop.f32.mrb[0].mxu0
        %v1928 = vadd.f32 %v1887, %v1927
        %v1929 = vpop.f32.mrb[0].mxu0
        %v1930 = vadd.f32 %v1889, %v1929
        %v1931 = vpop.f32.mrb[0].mxu0
        %v1932 = vpop.f32.mrb[0].mxu0
        %1933 = vdwg.mxu0
        %1934 = vmatprep.subr.bf16.mxu0 %v1265
        %1935 = vmatpush1.bf16.msra.mxu0 %v1264
        %1936 = vmatprep.subr.bf16.mxu0 %v1273
        %1937 = vmatpush1.bf16.msra.mxu0 %v1272
        %1938 = vmatprep.subr.bf16.mxu0 %v1281
        %1939 = vmatpush1.bf16.msra.mxu0 %v1280
        %1940 = vmatprep.subr.bf16.mxu0 %v1289
        %1941 = vmatpush1.bf16.msra.mxu0 %v1288
        %1942 = vmatprep.subr.bf16.mxu0 %v1297
        %1943 = vmatpush1.bf16.msra.mxu0 %v1296
        %1944 = vmatprep.subr.bf16.mxu0 %v1305
        %1945 = vmatpush1.bf16.msra.mxu0 %v1304
        %1946 = vmatprep.subr.bf16.mxu0 %v1313
        %1947 = vmatpush1.bf16.msra.mxu0 %v1312
        %1948 = vmatprep.subr.bf16.mxu0 %v1321
        %1949 = vmatpush1.bf16.msra.mxu0 %v1320
        %1950 = vmatprep.subr.bf16.mxu0 %v1329
        %1951 = vmatpush1.bf16.msra.mxu0 %v1328
        %1952 = vmatprep.subr.bf16.mxu0 %v1337
        %1953 = vmatpush1.bf16.msra.mxu0 %v1336
        %1954 = vmatprep.subr.bf16.mxu0 %v1345
        %1955 = vmatpush1.bf16.msra.mxu0 %v1344
        %1956 = vmatprep.subr.bf16.mxu0 %v1353
        %1957 = vmatpush1.bf16.msra.mxu0 %v1352
        %1958 = vmatprep.subr.bf16.mxu0 %v1361
        %1959 = vmatpush1.bf16.msra.mxu0 %v1360
        %1960 = vmatprep.subr.bf16.mxu0 %v1369
        %1961 = vmatpush1.bf16.msra.mxu0 %v1368
        %1962 = vmatprep.subr.bf16.mxu0 %v1377
        %1963 = vmatpush1.bf16.msra.mxu0 %v1376
        %1964 = vmatprep.subr.bf16.mxu0 %v1385
        %1965 = vmatpush1.bf16.msra.mxu0 %v1384
        %1966 = vmatprep.mubr.bf16.mxu0 %v1521
        %1967 = vmatmul.mubr.bf16.gmra.mrb[0].mxu0 %v1520
        %v1968 = vpop.f32.mrb[0].mxu0
        %v1969 = vadd.f32 %v1928, %v1968
        %v1970 = vpop.f32.mrb[0].mxu0
        %v1971 = vadd.f32 %v1930, %v1970
        %v1972 = vpop.f32.mrb[0].mxu0
        %v1973 = vpop.f32.mrb[0].mxu0
        %1974 = vdwg.mxu0
        %1975 = vmatprep.subr.bf16.mxu0 %v1393
        %1976 = vmatpush1.bf16.msra.mxu0 %v1392
        %1977 = vmatprep.subr.bf16.mxu0 %v1401
        %1978 = vmatpush1.bf16.msra.mxu0 %v1400
        %1979 = vmatprep.subr.bf16.mxu0 %v1409
        %1980 = vmatpush1.bf16.msra.mxu0 %v1408
        %1981 = vmatprep.subr.bf16.mxu0 %v1417
        %1982 = vmatpush1.bf16.msra.mxu0 %v1416
        %1983 = vmatprep.subr.bf16.mxu0 %v1425
        %1984 = vmatpush1.bf16.msra.mxu0 %v1424
        %1985 = vmatprep.subr.bf16.mxu0 %v1433
        %1986 = vmatpush1.bf16.msra.mxu0 %v1432
        %1987 = vmatprep.subr.bf16.mxu0 %v1441
        %1988 = vmatpush1.bf16.msra.mxu0 %v1440
        %1989 = vmatprep.subr.bf16.mxu0 %v1449
        %1990 = vmatpush1.bf16.msra.mxu0 %v1448
        %1991 = vmatprep.subr.bf16.mxu0 %v1457
        %1992 = vmatpush1.bf16.msra.mxu0 %v1456
        %1993 = vmatprep.subr.bf16.mxu0 %v1465
        %1994 = vmatpush1.bf16.msra.mxu0 %v1464
        %1995 = vmatprep.subr.bf16.mxu0 %v1473
        %1996 = vmatpush1.bf16.msra.mxu0 %v1472
        %1997 = vmatprep.subr.bf16.mxu0 %v1481
        %1998 = vmatpush1.bf16.msra.mxu0 %v1480
        %1999 = vmatprep.subr.bf16.mxu0 %v1489
        %2000 = vmatpush1.bf16.msra.mxu0 %v1488
        %2001 = vmatprep.subr.bf16.mxu0 %v1497
        %2002 = vmatpush1.bf16.msra.mxu0 %v1496
        %2003 = vmatprep.subr.bf16.mxu0 %v1505
        %2004 = vmatpush1.bf16.msra.mxu0 %v1504
        %2005 = vmatprep.subr.bf16.mxu0 %v1513
        %2006 = vmatpush1.bf16.msra.mxu0 %v1512
        %2007 = vmatprep.mubr.bf16.mxu0 %v1523
        %2008 = vmatmul.mubr.bf16.gmra.mrb[0].mxu0 %v1522
        %v2009 = vpop.f32.mrb[0].mxu0
        %v2010 = vadd.f32 %v1969, %v2009
        %v2011 = vpop.f32.mrb[0].mxu0
        %v2012 = vadd.f32 %v1971, %v2011
        %v2013 = vpop.f32.mrb[0].mxu0
        %v2014 = vpop.f32.mrb[0].mxu0
        %2015 = vdwg.mxu0
        %2016 = vmatprep.subr.bf16.mxu0 %v1011
        %2017 = vmatpush1.bf16.msra.mxu0 %v1010
        %2018 = vmatprep.subr.bf16.mxu0 %v1019
        %2019 = vmatpush1.bf16.msra.mxu0 %v1018
        %2020 = vmatprep.subr.bf16.mxu0 %v1027
        %2021 = vmatpush1.bf16.msra.mxu0 %v1026
        %2022 = vmatprep.subr.bf16.mxu0 %v1035
        %2023 = vmatpush1.bf16.msra.mxu0 %v1034
        %2024 = vmatprep.subr.bf16.mxu0 %v1043
        %2025 = vmatpush1.bf16.msra.mxu0 %v1042
        %2026 = vmatprep.subr.bf16.mxu0 %v1051
        %2027 = vmatpush1.bf16.msra.mxu0 %v1050
        %2028 = vmatprep.subr.bf16.mxu0 %v1059
        %2029 = vmatpush1.bf16.msra.mxu0 %v1058
        %2030 = vmatprep.subr.bf16.mxu0 %v1067
        %2031 = vmatpush1.bf16.msra.mxu0 %v1066
        %2032 = vmatprep.subr.bf16.mxu0 %v1075
        %2033 = vmatpush1.bf16.msra.mxu0 %v1074
        %2034 = vmatprep.subr.bf16.mxu0 %v1083
        %2035 = vmatpush1.bf16.msra.mxu0 %v1082
        %2036 = vmatprep.subr.bf16.mxu0 %v1091
        %2037 = vmatpush1.bf16.msra.mxu0 %v1090
        %2038 = vmatprep.subr.bf16.mxu0 %v1099
        %2039 = vmatpush1.bf16.msra.mxu0 %v1098
        %2040 = vmatprep.subr.bf16.mxu0 %v1107
        %2041 = vmatpush1.bf16.msra.mxu0 %v1106
        %2042 = vmatprep.subr.bf16.mxu0 %v1115
        %2043 = vmatpush1.bf16.msra.mxu0 %v1114
        %2044 = vmatprep.subr.bf16.mxu0 %v1123
        %2045 = vmatpush1.bf16.msra.mxu0 %v1122
        %2046 = vmatprep.subr.bf16.mxu0 %v1131
        %2047 = vmatpush1.bf16.msra.mxu0 %v1130
        %2048 = vmatprep.mubr.bf16.mxu0 %v1517
        %2049 = vmatmul.mubr.bf16.gmra.mrb[0].mxu0 %v1516
        %v2050 = vpop.f32.mrb[0].mxu0
        %v2051 = vadd.f32 0.0, %v2050
        %v2052 = vpop.f32.mrb[0].mxu0
        %v2053 = vadd.f32 0.0, %v2052
        %v2054 = vpop.f32.mrb[0].mxu0
        %v2055 = vpop.f32.mrb[0].mxu0
        %2056 = vdwg.mxu0
        %2057 = vmatprep.subr.bf16.mxu0 %v1139
        %2058 = vmatpush1.bf16.msra.mxu0 %v1138
        %2059 = vmatprep.subr.bf16.mxu0 %v1147
        %2060 = vmatpush1.bf16.msra.mxu0 %v1146
        %2061 = vmatprep.subr.bf16.mxu0 %v1155
        %2062 = vmatpush1.bf16.msra.mxu0 %v1154
        %2063 = vmatprep.subr.bf16.mxu0 %v1163
        %2064 = vmatpush1.bf16.msra.mxu0 %v1162
        %2065 = vmatprep.subr.bf16.mxu0 %v1171
        %2066 = vmatpush1.bf16.msra.mxu0 %v1170
        %2067 = vmatprep.subr.bf16.mxu0 %v1179
        %2068 = vmatpush1.bf16.msra.mxu0 %v1178
        %2069 = vmatprep.subr.bf16.mxu0 %v1187
        %2070 = vmatpush1.bf16.msra.mxu0 %v1186
        %2071 = vmatprep.subr.bf16.mxu0 %v1195
        %2072 = vmatpush1.bf16.msra.mxu0 %v1194
        %2073 = vmatprep.subr.bf16.mxu0 %v1203
        %2074 = vmatpush1.bf16.msra.mxu0 %v1202
        %2075 = vmatprep.subr.bf16.mxu0 %v1211
        %2076 = vmatpush1.bf16.msra.mxu0 %v1210
        %2077 = vmatprep.subr.bf16.mxu0 %v1219
        %2078 = vmatpush1.bf16.msra.mxu0 %v1218
        %2079 = vmatprep.subr.bf16.mxu0 %v1227
        %2080 = vmatpush1.bf16.msra.mxu0 %v1226
        %2081 = vmatprep.subr.bf16.mxu0 %v1235
        %2082 = vmatpush1.bf16.msra.mxu0 %v1234
        %2083 = vmatprep.subr.bf16.mxu0 %v1243
        %2084 = vmatpush1.bf16.msra.mxu0 %v1242
        %2085 = vmatprep.subr.bf16.mxu0 %v1251
        %2086 = vmatpush1.bf16.msra.mxu0 %v1250
        %2087 = vmatprep.subr.bf16.mxu0 %v1259
        %2088 = vmatpush1.bf16.msra.mxu0 %v1258
        %2089 = vmatprep.mubr.bf16.mxu0 %v1519
        %2090 = vmatmul.mubr.bf16.gmra.mrb[0].mxu0 %v1518
        %v2091 = vpop.f32.mrb[0].mxu0
        %v2092 = vadd.f32 %v2051, %v2091
        %v2093 = vpop.f32.mrb[0].mxu0
        %v2094 = vadd.f32 %v2053, %v2093
        %v2095 = vpop.f32.mrb[0].mxu0
        %v2096 = vpop.f32.mrb[0].mxu0
        %2097 = vdwg.mxu0
        %2098 = vmatprep.subr.bf16.mxu0 %v1267
        %2099 = vmatpush1.bf16.msra.mxu0 %v1266
        %2100 = vmatprep.subr.bf16.mxu0 %v1275
        %2101 = vmatpush1.bf16.msra.mxu0 %v1274
        %2102 = vmatprep.subr.bf16.mxu0 %v1283
        %2103 = vmatpush1.bf16.msra.mxu0 %v1282
        %2104 = vmatprep.subr.bf16.mxu0 %v1291
        %2105 = vmatpush1.bf16.msra.mxu0 %v1290
        %2106 = vmatprep.subr.bf16.mxu0 %v1299
        %2107 = vmatpush1.bf16.msra.mxu0 %v1298
        %2108 = vmatprep.subr.bf16.mxu0 %v1307
        %2109 = vmatpush1.bf16.msra.mxu0 %v1306
        %2110 = vmatprep.subr.bf16.mxu0 %v1315
        %2111 = vmatpush1.bf16.msra.mxu0 %v1314
        %2112 = vmatprep.subr.bf16.mxu0 %v1323
        %2113 = vmatpush1.bf16.msra.mxu0 %v1322
        %2114 = vmatprep.subr.bf16.mxu0 %v1331
        %2115 = vmatpush1.bf16.msra.mxu0 %v1330
        %2116 = vmatprep.subr.bf16.mxu0 %v1339
        %2117 = vmatpush1.bf16.msra.mxu0 %v1338
        %2118 = vmatprep.subr.bf16.mxu0 %v1347
        %2119 = vmatpush1.bf16.msra.mxu0 %v1346
        %2120 = vmatprep.subr.bf16.mxu0 %v1355
        %2121 = vmatpush1.bf16.msra.mxu0 %v1354
        %2122 = vmatprep.subr.bf16.mxu0 %v1363
        %2123 = vmatpush1.bf16.msra.mxu0 %v1362
        %2124 = vmatprep.subr.bf16.mxu0 %v1371
        %2125 = vmatpush1.bf16.msra.mxu0 %v1370
        %2126 = vmatprep.subr.bf16.mxu0 %v1379
        %2127 = vmatpush1.bf16.msra.mxu0 %v1378
        %2128 = vmatprep.subr.bf16.mxu0 %v1387
        %2129 = vmatpush1.bf16.msra.mxu0 %v1386
        %2130 = vmatprep.mubr.bf16.mxu0 %v1521
        %2131 = vmatmul.mubr.bf16.gmra.mrb[0].mxu0 %v1520
        %v2132 = vpop.f32.mrb[0].mxu0
        %v2133 = vadd.f32 %v2092, %v2132
        %v2134 = vpop.f32.mrb[0].mxu0
        %v2135 = vadd.f32 %v2094, %v2134
        %v2136 = vpop.f32.mrb[0].mxu0
        %v2137 = vpop.f32.mrb[0].mxu0
        %2138 = vdwg.mxu0
        %2139 = vmatprep.subr.bf16.mxu0 %v1395
        %2140 = vmatpush1.bf16.msra.mxu0 %v1394
        %2141 = vmatprep.subr.bf16.mxu0 %v1403
        %2142 = vmatpush1.bf16.msra.mxu0 %v1402
        %2143 = vmatprep.subr.bf16.mxu0 %v1411
        %2144 = vmatpush1.bf16.msra.mxu0 %v1410
        %2145 = vmatprep.subr.bf16.mxu0 %v1419
        %2146 = vmatpush1.bf16.msra.mxu0 %v1418
        %2147 = vmatprep.subr.bf16.mxu0 %v1427
        %2148 = vmatpush1.bf16.msra.mxu0 %v1426
        %2149 = vmatprep.subr.bf16.mxu0 %v1435
        %2150 = vmatpush1.bf16.msra.mxu0 %v1434
        %2151 = vmatprep.subr.bf16.mxu0 %v1443
        %2152 = vmatpush1.bf16.msra.mxu0 %v1442
        %2153 = vmatprep.subr.bf16.mxu0 %v1451
        %2154 = vmatpush1.bf16.msra.mxu0 %v1450
        %2155 = vmatprep.subr.bf16.mxu0 %v1459
        %2156 = vmatpush1.bf16.msra.mxu0 %v1458
        %2157 = vmatprep.subr.bf16.mxu0 %v1467
        %2158 = vmatpush1.bf16.msra.mxu0 %v1466
        %2159 = vmatprep.subr.bf16.mxu0 %v1475
        %2160 = vmatpush1.bf16.msra.mxu0 %v1474
        %2161 = vmatprep.subr.bf16.mxu0 %v1483
        %2162 = vmatpush1.bf16.msra.mxu0 %v1482
        %2163 = vmatprep.subr.bf16.mxu0 %v1491
        %2164 = vmatpush1.bf16.msra.mxu0 %v1490
        %2165 = vmatprep.subr.bf16.mxu0 %v1499
        %2166 = vmatpush1.bf16.msra.mxu0 %v1498
        %2167 = vmatprep.subr.bf16.mxu0 %v1507
        %2168 = vmatpush1.bf16.msra.mxu0 %v1506
        %2169 = vmatprep.subr.bf16.mxu0 %v1515
        %2170 = vmatpush1.bf16.msra.mxu0 %v1514
        %2171 = vmatprep.mubr.bf16.mxu0 %v1523
        %2172 = vmatmul.mubr.bf16.gmra.mrb[0].mxu0 %v1522
        %v2173 = vpop.f32.mrb[0].mxu0
        %v2174 = vadd.f32 %v2133, %v2173
        %v2175 = vpop.f32.mrb[0].mxu0
        %v2176 = vadd.f32 %v2135, %v2175
        %v2177 = vpop.f32.mrb[0].mxu0
        %v2178 = vpop.f32.mrb[0].mxu0
        %2179 = vdwg.mxu0
        %s2180 = smul.u32 %s411, 8
        %s2181 = scalar_lea.vmem [#allocation11], %s2180
        %v2182 = vld [vmem:[%s2181] sm:$0xff]
        %v2184 = vlaneseq
        %v2185 = vshrl.u32 %v2184, 7
        %v2186 = vsub.s32 0, %v2185
        %v2187 = vrot.slane %v2182, %v2186
        %v2188 = vlaneseq
        %v2189 = vshrl.u32 %v2188, 7
        %v2190 = vsub.s32 1, %v2189
        %v2191 = vrot.slane %v2182, %v2190
        %v2192 = vlaneseq
        %v2193 = vshrl.u32 %v2192, 7
        %v2194 = vsub.s32 2, %v2193
        %v2195 = vrot.slane %v2182, %v2194
        %v2196 = vlaneseq
        %v2197 = vshrl.u32 %v2196, 7
        %v2198 = vsub.s32 3, %v2197
        %v2199 = vrot.slane %v2182, %v2198
        %v2200 = vlaneseq
        %v2201 = vshrl.u32 %v2200, 7
        %v2202 = vsub.s32 4, %v2201
        %v2203 = vrot.slane %v2182, %v2202
        %v2204 = vlaneseq
        %v2205 = vshrl.u32 %v2204, 7
        %v2206 = vsub.s32 5, %v2205
        %v2207 = vrot.slane %v2182, %v2206
        %v2208 = vlaneseq
        %v2209 = vshrl.u32 %v2208, 7
        %v2210 = vsub.s32 6, %v2209
        %v2211 = vrot.slane %v2182, %v2210
        %v2212 = vlaneseq
        %v2213 = vshrl.u32 %v2212, 7
        %v2214 = vsub.s32 7, %v2213
        %v2215 = vrot.slane %v2182, %v2214
        %v2224 = vmul.f32 %v1682, %v2187
        %v2225 = vmul.f32 %v1684, %v2191
        %v2226 = vmul.f32 %v1846, %v2195
        %v2227 = vmul.f32 %v1848, %v2199
        %v2228 = vmul.f32 %v2010, %v2203
        %v2229 = vmul.f32 %v2012, %v2207
        %v2230 = vmul.f32 %v2174, %v2211
        %v2231 = vmul.f32 %v2176, %v2215
        %s2232 = scalar_lea.vmem [#allocation12], %s2180
        %v2233 = vld [vmem:[%s2232] sm:$0xff]
        %v2235 = vlaneseq
        %v2236 = vshrl.u32 %v2235, 7
        %v2237 = vsub.s32 0, %v2236
        %v2238 = vrot.slane %v2233, %v2237
        %v2239 = vlaneseq
        %v2240 = vshrl.u32 %v2239, 7
        %v2241 = vsub.s32 1, %v2240
        %v2242 = vrot.slane %v2233, %v2241
        %v2243 = vlaneseq
        %v2244 = vshrl.u32 %v2243, 7
        %v2245 = vsub.s32 2, %v2244
        %v2246 = vrot.slane %v2233, %v2245
        %v2247 = vlaneseq
        %v2248 = vshrl.u32 %v2247, 7
        %v2249 = vsub.s32 3, %v2248
        %v2250 = vrot.slane %v2233, %v2249
        %v2251 = vlaneseq
        %v2252 = vshrl.u32 %v2251, 7
        %v2253 = vsub.s32 4, %v2252
        %v2254 = vrot.slane %v2233, %v2253
        %v2255 = vlaneseq
        %v2256 = vshrl.u32 %v2255, 7
        %v2257 = vsub.s32 5, %v2256
        %v2258 = vrot.slane %v2233, %v2257
        %v2259 = vlaneseq
        %v2260 = vshrl.u32 %v2259, 7
        %v2261 = vsub.s32 6, %v2260
        %v2262 = vrot.slane %v2233, %v2261
        %v2263 = vlaneseq
        %v2264 = vshrl.u32 %v2263, 7
        %v2265 = vsub.s32 7, %v2264
        %v2266 = vrot.slane %v2233, %v2265
        %v2275 = vadd.f32 %v2224, %v2238
        %v2276 = vadd.f32 %v2225, %v2242
        %v2277 = vadd.f32 %v2226, %v2246
        %v2278 = vadd.f32 %v2227, %v2250
        %v2279 = vadd.f32 %v2228, %v2254
        %v2280 = vadd.f32 %v2229, %v2258
        %v2281 = vadd.f32 %v2230, %v2262
        %v2282 = vadd.f32 %v2231, %v2266
        %v2283 = vmax.f32 %v2275, 0.0
        %v2284 = vmax.f32 %v2276, 0.0
        %v2285 = vmax.f32 %v2277, 0.0
        %v2286 = vmax.f32 %v2278, 0.0
        %v2287 = vmax.f32 %v2279, 0.0
        %v2288 = vmax.f32 %v2280, 0.0
        %v2289 = vmax.f32 %v2281, 0.0
        %v2290 = vmax.f32 %v2282, 0.0
        %s2291 = scalar_lea.vmem %s365, 2048 [#allocation9]
        %v2292 = vld [vmem:[%s2291] sm:$0xff]
        %v2293 = vld [vmem:[%s2291 + $0x8] sm:$0xff]
        %v2294 = vld [vmem:[%s2291 + $0x10] sm:$0xff]
        %v2295 = vld [vmem:[%s2291 + $0x18] sm:$0xff]
        %v2296 = vld [vmem:[%s2291 + $0x20] sm:$0xff]
        %v2297 = vld [vmem:[%s2291 + $0x28] sm:$0xff]
        %v2298 = vld [vmem:[%s2291 + $0x30] sm:$0xff]
        %v2299 = vld [vmem:[%s2291 + $0x38] sm:$0xff]
        %v2300 = vld [vmem:[%s2291 + $0x40] sm:$0xff]
        %v2301 = vld [vmem:[%s2291 + $0x48] sm:$0xff]
        %v2302 = vld [vmem:[%s2291 + $0x50] sm:$0xff]
        %v2303 = vld [vmem:[%s2291 + $0x58] sm:$0xff]
        %v2304 = vld [vmem:[%s2291 + $0x60] sm:$0xff]
        %v2305 = vld [vmem:[%s2291 + $0x68] sm:$0xff]
        %v2306 = vld [vmem:[%s2291 + $0x70] sm:$0xff]
        %v2307 = vld [vmem:[%s2291 + $0x78] sm:$0xff]
        %v2308 = vld [vmem:[%s2291 + $0x80] sm:$0xff]
        %v2309 = vld [vmem:[%s2291 + $0x88] sm:$0xff]
        %v2310 = vld [vmem:[%s2291 + $0x90] sm:$0xff]
        %v2311 = vld [vmem:[%s2291 + $0x98] sm:$0xff]
        %v2312 = vld [vmem:[%s2291 + $0xa0] sm:$0xff]
        %v2313 = vld [vmem:[%s2291 + $0xa8] sm:$0xff]
        %v2314 = vld [vmem:[%s2291 + $0xb0] sm:$0xff]
        %v2315 = vld [vmem:[%s2291 + $0xb8] sm:$0xff]
        %v2316 = vld [vmem:[%s2291 + $0xc0] sm:$0xff]
        %v2317 = vld [vmem:[%s2291 + $0xc8] sm:$0xff]
        %v2318 = vld [vmem:[%s2291 + $0xd0] sm:$0xff]
        %v2319 = vld [vmem:[%s2291 + $0xd8] sm:$0xff]
        %v2320 = vld [vmem:[%s2291 + $0xe0] sm:$0xff]
        %v2321 = vld [vmem:[%s2291 + $0xe8] sm:$0xff]
        %v2322 = vld [vmem:[%s2291 + $0xf0] sm:$0xff]
        %v2323 = vld [vmem:[%s2291 + $0xf8] sm:$0xff]
        %v2324 = vld [vmem:[%s2291 + $0x100] sm:$0xff]
        %v2325 = vld [vmem:[%s2291 + $0x108] sm:$0xff]
        %v2326 = vld [vmem:[%s2291 + $0x110] sm:$0xff]
        %v2327 = vld [vmem:[%s2291 + $0x118] sm:$0xff]
        %v2328 = vld [vmem:[%s2291 + $0x120] sm:$0xff]
        %v2329 = vld [vmem:[%s2291 + $0x128] sm:$0xff]
        %v2330 = vld [vmem:[%s2291 + $0x130] sm:$0xff]
        %v2331 = vld [vmem:[%s2291 + $0x138] sm:$0xff]
        %v2332 = vld [vmem:[%s2291 + $0x140] sm:$0xff]
        %v2333 = vld [vmem:[%s2291 + $0x148] sm:$0xff]
        %v2334 = vld [vmem:[%s2291 + $0x150] sm:$0xff]
        %v2335 = vld [vmem:[%s2291 + $0x158] sm:$0xff]
        %v2336 = vld [vmem:[%s2291 + $0x160] sm:$0xff]
        %v2337 = vld [vmem:[%s2291 + $0x168] sm:$0xff]
        %v2338 = vld [vmem:[%s2291 + $0x170] sm:$0xff]
        %v2339 = vld [vmem:[%s2291 + $0x178] sm:$0xff]
        %v2340 = vld [vmem:[%s2291 + $0x180] sm:$0xff]
        %v2341 = vld [vmem:[%s2291 + $0x188] sm:$0xff]
        %v2342 = vld [vmem:[%s2291 + $0x190] sm:$0xff]
        %v2343 = vld [vmem:[%s2291 + $0x198] sm:$0xff]
        %v2344 = vld [vmem:[%s2291 + $0x1a0] sm:$0xff]
        %v2345 = vld [vmem:[%s2291 + $0x1a8] sm:$0xff]
        %v2346 = vld [vmem:[%s2291 + $0x1b0] sm:$0xff]
        %v2347 = vld [vmem:[%s2291 + $0x1b8] sm:$0xff]
        %v2348 = vld [vmem:[%s2291 + $0x1c0] sm:$0xff]
        %v2349 = vld [vmem:[%s2291 + $0x1c8] sm:$0xff]
        %v2350 = vld [vmem:[%s2291 + $0x1d0] sm:$0xff]
        %v2351 = vld [vmem:[%s2291 + $0x1d8] sm:$0xff]
        %v2352 = vld [vmem:[%s2291 + $0x1e0] sm:$0xff]
        %v2353 = vld [vmem:[%s2291 + $0x1e8] sm:$0xff]
        %v2354 = vld [vmem:[%s2291 + $0x1f0] sm:$0xff]
        %v2355 = vld [vmem:[%s2291 + $0x1f8] sm:$0xff]
        %v2356 = vld [vmem:[%s2291 + $0x200] sm:$0xff]
        %v2357 = vld [vmem:[%s2291 + $0x208] sm:$0xff]
        %v2358 = vld [vmem:[%s2291 + $0x210] sm:$0xff]
        %v2359 = vld [vmem:[%s2291 + $0x218] sm:$0xff]
        %v2360 = vld [vmem:[%s2291 + $0x220] sm:$0xff]
        %v2361 = vld [vmem:[%s2291 + $0x228] sm:$0xff]
        %v2362 = vld [vmem:[%s2291 + $0x230] sm:$0xff]
        %v2363 = vld [vmem:[%s2291 + $0x238] sm:$0xff]
        %v2364 = vld [vmem:[%s2291 + $0x240] sm:$0xff]
        %v2365 = vld [vmem:[%s2291 + $0x248] sm:$0xff]
        %v2366 = vld [vmem:[%s2291 + $0x250] sm:$0xff]
        %v2367 = vld [vmem:[%s2291 + $0x258] sm:$0xff]
        %v2368 = vld [vmem:[%s2291 + $0x260] sm:$0xff]
        %v2369 = vld [vmem:[%s2291 + $0x268] sm:$0xff]
        %v2370 = vld [vmem:[%s2291 + $0x270] sm:$0xff]
        %v2371 = vld [vmem:[%s2291 + $0x278] sm:$0xff]
        %v2372 = vld [vmem:[%s2291 + $0x280] sm:$0xff]
        %v2373 = vld [vmem:[%s2291 + $0x288] sm:$0xff]
        %v2374 = vld [vmem:[%s2291 + $0x290] sm:$0xff]
        %v2375 = vld [vmem:[%s2291 + $0x298] sm:$0xff]
        %v2376 = vld [vmem:[%s2291 + $0x2a0] sm:$0xff]
        %v2377 = vld [vmem:[%s2291 + $0x2a8] sm:$0xff]
        %v2378 = vld [vmem:[%s2291 + $0x2b0] sm:$0xff]
        %v2379 = vld [vmem:[%s2291 + $0x2b8] sm:$0xff]
        %v2380 = vld [vmem:[%s2291 + $0x2c0] sm:$0xff]
        %v2381 = vld [vmem:[%s2291 + $0x2c8] sm:$0xff]
        %v2382 = vld [vmem:[%s2291 + $0x2d0] sm:$0xff]
        %v2383 = vld [vmem:[%s2291 + $0x2d8] sm:$0xff]
        %v2384 = vld [vmem:[%s2291 + $0x2e0] sm:$0xff]
        %v2385 = vld [vmem:[%s2291 + $0x2e8] sm:$0xff]
        %v2386 = vld [vmem:[%s2291 + $0x2f0] sm:$0xff]
        %v2387 = vld [vmem:[%s2291 + $0x2f8] sm:$0xff]
        %v2388 = vld [vmem:[%s2291 + $0x300] sm:$0xff]
        %v2389 = vld [vmem:[%s2291 + $0x308] sm:$0xff]
        %v2390 = vld [vmem:[%s2291 + $0x310] sm:$0xff]
        %v2391 = vld [vmem:[%s2291 + $0x318] sm:$0xff]
        %v2392 = vld [vmem:[%s2291 + $0x320] sm:$0xff]
        %v2393 = vld [vmem:[%s2291 + $0x328] sm:$0xff]
        %v2394 = vld [vmem:[%s2291 + $0x330] sm:$0xff]
        %v2395 = vld [vmem:[%s2291 + $0x338] sm:$0xff]
        %v2396 = vld [vmem:[%s2291 + $0x340] sm:$0xff]
        %v2397 = vld [vmem:[%s2291 + $0x348] sm:$0xff]
        %v2398 = vld [vmem:[%s2291 + $0x350] sm:$0xff]
        %v2399 = vld [vmem:[%s2291 + $0x358] sm:$0xff]
        %v2400 = vld [vmem:[%s2291 + $0x360] sm:$0xff]
        %v2401 = vld [vmem:[%s2291 + $0x368] sm:$0xff]
        %v2402 = vld [vmem:[%s2291 + $0x370] sm:$0xff]
        %v2403 = vld [vmem:[%s2291 + $0x378] sm:$0xff]
        %v2404 = vld [vmem:[%s2291 + $0x380] sm:$0xff]
        %v2405 = vld [vmem:[%s2291 + $0x388] sm:$0xff]
        %v2406 = vld [vmem:[%s2291 + $0x390] sm:$0xff]
        %v2407 = vld [vmem:[%s2291 + $0x398] sm:$0xff]
        %v2408 = vld [vmem:[%s2291 + $0x3a0] sm:$0xff]
        %v2409 = vld [vmem:[%s2291 + $0x3a8] sm:$0xff]
        %v2410 = vld [vmem:[%s2291 + $0x3b0] sm:$0xff]
        %v2411 = vld [vmem:[%s2291 + $0x3b8] sm:$0xff]
        %v2412 = vld [vmem:[%s2291 + $0x3c0] sm:$0xff]
        %v2413 = vld [vmem:[%s2291 + $0x3c8] sm:$0xff]
        %v2414 = vld [vmem:[%s2291 + $0x3d0] sm:$0xff]
        %v2415 = vld [vmem:[%s2291 + $0x3d8] sm:$0xff]
        %v2416 = vld [vmem:[%s2291 + $0x3e0] sm:$0xff]
        %v2417 = vld [vmem:[%s2291 + $0x3e8] sm:$0xff]
        %v2418 = vld [vmem:[%s2291 + $0x3f0] sm:$0xff]
        %v2419 = vld [vmem:[%s2291 + $0x3f8] sm:$0xff]
        %v2420 = vld [vmem:[%s2291 + $0x400] sm:$0xff]
        %v2421 = vld [vmem:[%s2291 + $0x408] sm:$0xff]
        %v2422 = vld [vmem:[%s2291 + $0x410] sm:$0xff]
        %v2423 = vld [vmem:[%s2291 + $0x418] sm:$0xff]
        %v2424 = vld [vmem:[%s2291 + $0x420] sm:$0xff]
        %v2425 = vld [vmem:[%s2291 + $0x428] sm:$0xff]
        %v2426 = vld [vmem:[%s2291 + $0x430] sm:$0xff]
        %v2427 = vld [vmem:[%s2291 + $0x438] sm:$0xff]
        %v2428 = vld [vmem:[%s2291 + $0x440] sm:$0xff]
        %v2429 = vld [vmem:[%s2291 + $0x448] sm:$0xff]
        %v2430 = vld [vmem:[%s2291 + $0x450] sm:$0xff]
        %v2431 = vld [vmem:[%s2291 + $0x458] sm:$0xff]
        %v2432 = vld [vmem:[%s2291 + $0x460] sm:$0xff]
        %v2433 = vld [vmem:[%s2291 + $0x468] sm:$0xff]
        %v2434 = vld [vmem:[%s2291 + $0x470] sm:$0xff]
        %v2435 = vld [vmem:[%s2291 + $0x478] sm:$0xff]
        %v2436 = vld [vmem:[%s2291 + $0x480] sm:$0xff]
        %v2437 = vld [vmem:[%s2291 + $0x488] sm:$0xff]
        %v2438 = vld [vmem:[%s2291 + $0x490] sm:$0xff]
        %v2439 = vld [vmem:[%s2291 + $0x498] sm:$0xff]
        %v2440 = vld [vmem:[%s2291 + $0x4a0] sm:$0xff]
        %v2441 = vld [vmem:[%s2291 + $0x4a8] sm:$0xff]
        %v2442 = vld [vmem:[%s2291 + $0x4b0] sm:$0xff]
        %v2443 = vld [vmem:[%s2291 + $0x4b8] sm:$0xff]
        %v2444 = vld [vmem:[%s2291 + $0x4c0] sm:$0xff]
        %v2445 = vld [vmem:[%s2291 + $0x4c8] sm:$0xff]
        %v2446 = vld [vmem:[%s2291 + $0x4d0] sm:$0xff]
        %v2447 = vld [vmem:[%s2291 + $0x4d8] sm:$0xff]
        %v2448 = vld [vmem:[%s2291 + $0x4e0] sm:$0xff]
        %v2449 = vld [vmem:[%s2291 + $0x4e8] sm:$0xff]
        %v2450 = vld [vmem:[%s2291 + $0x4f0] sm:$0xff]
        %v2451 = vld [vmem:[%s2291 + $0x4f8] sm:$0xff]
        %v2452 = vld [vmem:[%s2291 + $0x500] sm:$0xff]
        %v2453 = vld [vmem:[%s2291 + $0x508] sm:$0xff]
        %v2454 = vld [vmem:[%s2291 + $0x510] sm:$0xff]
        %v2455 = vld [vmem:[%s2291 + $0x518] sm:$0xff]
        %v2456 = vld [vmem:[%s2291 + $0x520] sm:$0xff]
        %v2457 = vld [vmem:[%s2291 + $0x528] sm:$0xff]
        %v2458 = vld [vmem:[%s2291 + $0x530] sm:$0xff]
        %v2459 = vld [vmem:[%s2291 + $0x538] sm:$0xff]
        %v2460 = vld [vmem:[%s2291 + $0x540] sm:$0xff]
        %v2461 = vld [vmem:[%s2291 + $0x548] sm:$0xff]
        %v2462 = vld [vmem:[%s2291 + $0x550] sm:$0xff]
        %v2463 = vld [vmem:[%s2291 + $0x558] sm:$0xff]
        %v2464 = vld [vmem:[%s2291 + $0x560] sm:$0xff]
        %v2465 = vld [vmem:[%s2291 + $0x568] sm:$0xff]
        %v2466 = vld [vmem:[%s2291 + $0x570] sm:$0xff]
        %v2467 = vld [vmem:[%s2291 + $0x578] sm:$0xff]
        %v2468 = vld [vmem:[%s2291 + $0x580] sm:$0xff]
        %v2469 = vld [vmem:[%s2291 + $0x588] sm:$0xff]
        %v2470 = vld [vmem:[%s2291 + $0x590] sm:$0xff]
        %v2471 = vld [vmem:[%s2291 + $0x598] sm:$0xff]
        %v2472 = vld [vmem:[%s2291 + $0x5a0] sm:$0xff]
        %v2473 = vld [vmem:[%s2291 + $0x5a8] sm:$0xff]
        %v2474 = vld [vmem:[%s2291 + $0x5b0] sm:$0xff]
        %v2475 = vld [vmem:[%s2291 + $0x5b8] sm:$0xff]
        %v2476 = vld [vmem:[%s2291 + $0x5c0] sm:$0xff]
        %v2477 = vld [vmem:[%s2291 + $0x5c8] sm:$0xff]
        %v2478 = vld [vmem:[%s2291 + $0x5d0] sm:$0xff]
        %v2479 = vld [vmem:[%s2291 + $0x5d8] sm:$0xff]
        %v2480 = vld [vmem:[%s2291 + $0x5e0] sm:$0xff]
        %v2481 = vld [vmem:[%s2291 + $0x5e8] sm:$0xff]
        %v2482 = vld [vmem:[%s2291 + $0x5f0] sm:$0xff]
        %v2483 = vld [vmem:[%s2291 + $0x5f8] sm:$0xff]
        %v2484 = vld [vmem:[%s2291 + $0x600] sm:$0xff]
        %v2485 = vld [vmem:[%s2291 + $0x608] sm:$0xff]
        %v2486 = vld [vmem:[%s2291 + $0x610] sm:$0xff]
        %v2487 = vld [vmem:[%s2291 + $0x618] sm:$0xff]
        %v2488 = vld [vmem:[%s2291 + $0x620] sm:$0xff]
        %v2489 = vld [vmem:[%s2291 + $0x628] sm:$0xff]
        %v2490 = vld [vmem:[%s2291 + $0x630] sm:$0xff]
        %v2491 = vld [vmem:[%s2291 + $0x638] sm:$0xff]
        %v2492 = vld [vmem:[%s2291 + $0x640] sm:$0xff]
        %v2493 = vld [vmem:[%s2291 + $0x648] sm:$0xff]
        %v2494 = vld [vmem:[%s2291 + $0x650] sm:$0xff]
        %v2495 = vld [vmem:[%s2291 + $0x658] sm:$0xff]
        %v2496 = vld [vmem:[%s2291 + $0x660] sm:$0xff]
        %v2497 = vld [vmem:[%s2291 + $0x668] sm:$0xff]
        %v2498 = vld [vmem:[%s2291 + $0x670] sm:$0xff]
        %v2499 = vld [vmem:[%s2291 + $0x678] sm:$0xff]
        %v2500 = vld [vmem:[%s2291 + $0x680] sm:$0xff]
        %v2501 = vld [vmem:[%s2291 + $0x688] sm:$0xff]
        %v2502 = vld [vmem:[%s2291 + $0x690] sm:$0xff]
        %v2503 = vld [vmem:[%s2291 + $0x698] sm:$0xff]
        %v2504 = vld [vmem:[%s2291 + $0x6a0] sm:$0xff]
        %v2505 = vld [vmem:[%s2291 + $0x6a8] sm:$0xff]
        %v2506 = vld [vmem:[%s2291 + $0x6b0] sm:$0xff]
        %v2507 = vld [vmem:[%s2291 + $0x6b8] sm:$0xff]
        %v2508 = vld [vmem:[%s2291 + $0x6c0] sm:$0xff]
        %v2509 = vld [vmem:[%s2291 + $0x6c8] sm:$0xff]
        %v2510 = vld [vmem:[%s2291 + $0x6d0] sm:$0xff]
        %v2511 = vld [vmem:[%s2291 + $0x6d8] sm:$0xff]
        %v2512 = vld [vmem:[%s2291 + $0x6e0] sm:$0xff]
        %v2513 = vld [vmem:[%s2291 + $0x6e8] sm:$0xff]
        %v2514 = vld [vmem:[%s2291 + $0x6f0] sm:$0xff]
        %v2515 = vld [vmem:[%s2291 + $0x6f8] sm:$0xff]
        %v2516 = vld [vmem:[%s2291 + $0x700] sm:$0xff]
        %v2517 = vld [vmem:[%s2291 + $0x708] sm:$0xff]
        %v2518 = vld [vmem:[%s2291 + $0x710] sm:$0xff]
        %v2519 = vld [vmem:[%s2291 + $0x718] sm:$0xff]
        %v2520 = vld [vmem:[%s2291 + $0x720] sm:$0xff]
        %v2521 = vld [vmem:[%s2291 + $0x728] sm:$0xff]
        %v2522 = vld [vmem:[%s2291 + $0x730] sm:$0xff]
        %v2523 = vld [vmem:[%s2291 + $0x738] sm:$0xff]
        %v2524 = vld [vmem:[%s2291 + $0x740] sm:$0xff]
        %v2525 = vld [vmem:[%s2291 + $0x748] sm:$0xff]
        %v2526 = vld [vmem:[%s2291 + $0x750] sm:$0xff]
        %v2527 = vld [vmem:[%s2291 + $0x758] sm:$0xff]
        %v2528 = vld [vmem:[%s2291 + $0x760] sm:$0xff]
        %v2529 = vld [vmem:[%s2291 + $0x768] sm:$0xff]
        %v2530 = vld [vmem:[%s2291 + $0x770] sm:$0xff]
        %v2531 = vld [vmem:[%s2291 + $0x778] sm:$0xff]
        %v2532 = vld [vmem:[%s2291 + $0x780] sm:$0xff]
        %v2533 = vld [vmem:[%s2291 + $0x788] sm:$0xff]
        %v2534 = vld [vmem:[%s2291 + $0x790] sm:$0xff]
        %v2535 = vld [vmem:[%s2291 + $0x798] sm:$0xff]
        %v2536 = vld [vmem:[%s2291 + $0x7a0] sm:$0xff]
        %v2537 = vld [vmem:[%s2291 + $0x7a8] sm:$0xff]
        %v2538 = vld [vmem:[%s2291 + $0x7b0] sm:$0xff]
        %v2539 = vld [vmem:[%s2291 + $0x7b8] sm:$0xff]
        %v2540 = vld [vmem:[%s2291 + $0x7c0] sm:$0xff]
        %v2541 = vld [vmem:[%s2291 + $0x7c8] sm:$0xff]
        %v2542 = vld [vmem:[%s2291 + $0x7d0] sm:$0xff]
        %v2543 = vld [vmem:[%s2291 + $0x7d8] sm:$0xff]
        %v2544 = vld [vmem:[%s2291 + $0x7e0] sm:$0xff]
        %v2545 = vld [vmem:[%s2291 + $0x7e8] sm:$0xff]
        %v2546 = vld [vmem:[%s2291 + $0x7f0] sm:$0xff]
        %v2547 = vld [vmem:[%s2291 + $0x7f8] sm:$0xff]
        %v2548 = vunpack.c.l.s8.bf16 %v2292
        %v2549 = vunpack.c.l.s8.bf16 %v2293
        %v2550 = vunpack.c.l.s8.bf16 %v2294
        %v2551 = vunpack.c.l.s8.bf16 %v2295
        %v2552 = vunpack.c.l.s8.bf16 %v2296
        %v2553 = vunpack.c.l.s8.bf16 %v2297
        %v2554 = vunpack.c.l.s8.bf16 %v2298
        %v2555 = vunpack.c.l.s8.bf16 %v2299
        %v2556 = vunpack.c.h.s8.bf16 %v2292
        %v2557 = vunpack.c.h.s8.bf16 %v2293
        %v2558 = vunpack.c.h.s8.bf16 %v2294
        %v2559 = vunpack.c.h.s8.bf16 %v2295
        %v2560 = vunpack.c.h.s8.bf16 %v2296
        %v2561 = vunpack.c.h.s8.bf16 %v2297
        %v2562 = vunpack.c.h.s8.bf16 %v2298
        %v2563 = vunpack.c.h.s8.bf16 %v2299
        %v2564 = vunpack.c.l.s8.bf16 %v2300
        %v2565 = vunpack.c.l.s8.bf16 %v2301
        %v2566 = vunpack.c.l.s8.bf16 %v2302
        %v2567 = vunpack.c.l.s8.bf16 %v2303
        %v2568 = vunpack.c.l.s8.bf16 %v2304
        %v2569 = vunpack.c.l.s8.bf16 %v2305
        %v2570 = vunpack.c.l.s8.bf16 %v2306
        %v2571 = vunpack.c.l.s8.bf16 %v2307
        %v2572 = vunpack.c.h.s8.bf16 %v2300
        %v2573 = vunpack.c.h.s8.bf16 %v2301
        %v2574 = vunpack.c.h.s8.bf16 %v2302
        %v2575 = vunpack.c.h.s8.bf16 %v2303
        %v2576 = vunpack.c.h.s8.bf16 %v2304
        %v2577 = vunpack.c.h.s8.bf16 %v2305
        %v2578 = vunpack.c.h.s8.bf16 %v2306
        %v2579 = vunpack.c.h.s8.bf16 %v2307
        %v2580 = vunpack.c.l.s8.bf16 %v2308
        %v2581 = vunpack.c.l.s8.bf16 %v2309
        %v2582 = vunpack.c.l.s8.bf16 %v2310
        %v2583 = vunpack.c.l.s8.bf16 %v2311
        %v2584 = vunpack.c.l.s8.bf16 %v2312
        %v2585 = vunpack.c.l.s8.bf16 %v2313
        %v2586 = vunpack.c.l.s8.bf16 %v2314
        %v2587 = vunpack.c.l.s8.bf16 %v2315
        %v2588 = vunpack.c.h.s8.bf16 %v2308
        %v2589 = vunpack.c.h.s8.bf16 %v2309
        %v2590 = vunpack.c.h.s8.bf16 %v2310
        %v2591 = vunpack.c.h.s8.bf16 %v2311
        %v2592 = vunpack.c.h.s8.bf16 %v2312
        %v2593 = vunpack.c.h.s8.bf16 %v2313
        %v2594 = vunpack.c.h.s8.bf16 %v2314
        %v2595 = vunpack.c.h.s8.bf16 %v2315
        %v2596 = vunpack.c.l.s8.bf16 %v2316
        %v2597 = vunpack.c.l.s8.bf16 %v2317
        %v2598 = vunpack.c.l.s8.bf16 %v2318
        %v2599 = vunpack.c.l.s8.bf16 %v2319
        %v2600 = vunpack.c.l.s8.bf16 %v2320
        %v2601 = vunpack.c.l.s8.bf16 %v2321
        %v2602 = vunpack.c.l.s8.bf16 %v2322
        %v2603 = vunpack.c.l.s8.bf16 %v2323
        %v2604 = vunpack.c.h.s8.bf16 %v2316
        %v2605 = vunpack.c.h.s8.bf16 %v2317
        %v2606 = vunpack.c.h.s8.bf16 %v2318
        %v2607 = vunpack.c.h.s8.bf16 %v2319
        %v2608 = vunpack.c.h.s8.bf16 %v2320
        %v2609 = vunpack.c.h.s8.bf16 %v2321
        %v2610 = vunpack.c.h.s8.bf16 %v2322
        %v2611 = vunpack.c.h.s8.bf16 %v2323
        %v2612 = vunpack.c.l.s8.bf16 %v2324
        %v2613 = vunpack.c.l.s8.bf16 %v2325
        %v2614 = vunpack.c.l.s8.bf16 %v2326
        %v2615 = vunpack.c.l.s8.bf16 %v2327
        %v2616 = vunpack.c.l.s8.bf16 %v2328
        %v2617 = vunpack.c.l.s8.bf16 %v2329
        %v2618 = vunpack.c.l.s8.bf16 %v2330
        %v2619 = vunpack.c.l.s8.bf16 %v2331
        %v2620 = vunpack.c.h.s8.bf16 %v2324
        %v2621 = vunpack.c.h.s8.bf16 %v2325
        %v2622 = vunpack.c.h.s8.bf16 %v2326
        %v2623 = vunpack.c.h.s8.bf16 %v2327
        %v2624 = vunpack.c.h.s8.bf16 %v2328
        %v2625 = vunpack.c.h.s8.bf16 %v2329
        %v2626 = vunpack.c.h.s8.bf16 %v2330
        %v2627 = vunpack.c.h.s8.bf16 %v2331
        %v2628 = vunpack.c.l.s8.bf16 %v2332
        %v2629 = vunpack.c.l.s8.bf16 %v2333
        %v2630 = vunpack.c.l.s8.bf16 %v2334
        %v2631 = vunpack.c.l.s8.bf16 %v2335
        %v2632 = vunpack.c.l.s8.bf16 %v2336
        %v2633 = vunpack.c.l.s8.bf16 %v2337
        %v2634 = vunpack.c.l.s8.bf16 %v2338
        %v2635 = vunpack.c.l.s8.bf16 %v2339
        %v2636 = vunpack.c.h.s8.bf16 %v2332
        %v2637 = vunpack.c.h.s8.bf16 %v2333
        %v2638 = vunpack.c.h.s8.bf16 %v2334
        %v2639 = vunpack.c.h.s8.bf16 %v2335
        %v2640 = vunpack.c.h.s8.bf16 %v2336
        %v2641 = vunpack.c.h.s8.bf16 %v2337
        %v2642 = vunpack.c.h.s8.bf16 %v2338
        %v2643 = vunpack.c.h.s8.bf16 %v2339
        %v2644 = vunpack.c.l.s8.bf16 %v2340
        %v2645 = vunpack.c.l.s8.bf16 %v2341
        %v2646 = vunpack.c.l.s8.bf16 %v2342
        %v2647 = vunpack.c.l.s8.bf16 %v2343
        %v2648 = vunpack.c.l.s8.bf16 %v2344
        %v2649 = vunpack.c.l.s8.bf16 %v2345
        %v2650 = vunpack.c.l.s8.bf16 %v2346
        %v2651 = vunpack.c.l.s8.bf16 %v2347
        %v2652 = vunpack.c.h.s8.bf16 %v2340
        %v2653 = vunpack.c.h.s8.bf16 %v2341
        %v2654 = vunpack.c.h.s8.bf16 %v2342
        %v2655 = vunpack.c.h.s8.bf16 %v2343
        %v2656 = vunpack.c.h.s8.bf16 %v2344
        %v2657 = vunpack.c.h.s8.bf16 %v2345
        %v2658 = vunpack.c.h.s8.bf16 %v2346
        %v2659 = vunpack.c.h.s8.bf16 %v2347
        %v2660 = vunpack.c.l.s8.bf16 %v2348
        %v2661 = vunpack.c.l.s8.bf16 %v2349
        %v2662 = vunpack.c.l.s8.bf16 %v2350
        %v2663 = vunpack.c.l.s8.bf16 %v2351
        %v2664 = vunpack.c.l.s8.bf16 %v2352
        %v2665 = vunpack.c.l.s8.bf16 %v2353
        %v2666 = vunpack.c.l.s8.bf16 %v2354
        %v2667 = vunpack.c.l.s8.bf16 %v2355
        %v2668 = vunpack.c.h.s8.bf16 %v2348
        %v2669 = vunpack.c.h.s8.bf16 %v2349
        %v2670 = vunpack.c.h.s8.bf16 %v2350
        %v2671 = vunpack.c.h.s8.bf16 %v2351
        %v2672 = vunpack.c.h.s8.bf16 %v2352
        %v2673 = vunpack.c.h.s8.bf16 %v2353
        %v2674 = vunpack.c.h.s8.bf16 %v2354
        %v2675 = vunpack.c.h.s8.bf16 %v2355
        %v2676 = vunpack.c.l.s8.bf16 %v2356
        %v2677 = vunpack.c.l.s8.bf16 %v2357
        %v2678 = vunpack.c.l.s8.bf16 %v2358
        %v2679 = vunpack.c.l.s8.bf16 %v2359
        %v2680 = vunpack.c.l.s8.bf16 %v2360
        %v2681 = vunpack.c.l.s8.bf16 %v2361
        %v2682 = vunpack.c.l.s8.bf16 %v2362
        %v2683 = vunpack.c.l.s8.bf16 %v2363
        %v2684 = vunpack.c.h.s8.bf16 %v2356
        %v2685 = vunpack.c.h.s8.bf16 %v2357
        %v2686 = vunpack.c.h.s8.bf16 %v2358
        %v2687 = vunpack.c.h.s8.bf16 %v2359
        %v2688 = vunpack.c.h.s8.bf16 %v2360
        %v2689 = vunpack.c.h.s8.bf16 %v2361
        %v2690 = vunpack.c.h.s8.bf16 %v2362
        %v2691 = vunpack.c.h.s8.bf16 %v2363
        %v2692 = vunpack.c.l.s8.bf16 %v2364
        %v2693 = vunpack.c.l.s8.bf16 %v2365
        %v2694 = vunpack.c.l.s8.bf16 %v2366
        %v2695 = vunpack.c.l.s8.bf16 %v2367
        %v2696 = vunpack.c.l.s8.bf16 %v2368
        %v2697 = vunpack.c.l.s8.bf16 %v2369
        %v2698 = vunpack.c.l.s8.bf16 %v2370
        %v2699 = vunpack.c.l.s8.bf16 %v2371
        %v2700 = vunpack.c.h.s8.bf16 %v2364
        %v2701 = vunpack.c.h.s8.bf16 %v2365
        %v2702 = vunpack.c.h.s8.bf16 %v2366
        %v2703 = vunpack.c.h.s8.bf16 %v2367
        %v2704 = vunpack.c.h.s8.bf16 %v2368
        %v2705 = vunpack.c.h.s8.bf16 %v2369
        %v2706 = vunpack.c.h.s8.bf16 %v2370
        %v2707 = vunpack.c.h.s8.bf16 %v2371
        %v2708 = vunpack.c.l.s8.bf16 %v2372
        %v2709 = vunpack.c.l.s8.bf16 %v2373
        %v2710 = vunpack.c.l.s8.bf16 %v2374
        %v2711 = vunpack.c.l.s8.bf16 %v2375
        %v2712 = vunpack.c.l.s8.bf16 %v2376
        %v2713 = vunpack.c.l.s8.bf16 %v2377
        %v2714 = vunpack.c.l.s8.bf16 %v2378
        %v2715 = vunpack.c.l.s8.bf16 %v2379
        %v2716 = vunpack.c.h.s8.bf16 %v2372
        %v2717 = vunpack.c.h.s8.bf16 %v2373
        %v2718 = vunpack.c.h.s8.bf16 %v2374
        %v2719 = vunpack.c.h.s8.bf16 %v2375
        %v2720 = vunpack.c.h.s8.bf16 %v2376
        %v2721 = vunpack.c.h.s8.bf16 %v2377
        %v2722 = vunpack.c.h.s8.bf16 %v2378
        %v2723 = vunpack.c.h.s8.bf16 %v2379
        %v2724 = vunpack.c.l.s8.bf16 %v2380
        %v2725 = vunpack.c.l.s8.bf16 %v2381
        %v2726 = vunpack.c.l.s8.bf16 %v2382
        %v2727 = vunpack.c.l.s8.bf16 %v2383
        %v2728 = vunpack.c.l.s8.bf16 %v2384
        %v2729 = vunpack.c.l.s8.bf16 %v2385
        %v2730 = vunpack.c.l.s8.bf16 %v2386
        %v2731 = vunpack.c.l.s8.bf16 %v2387
        %v2732 = vunpack.c.h.s8.bf16 %v2380
        %v2733 = vunpack.c.h.s8.bf16 %v2381
        %v2734 = vunpack.c.h.s8.bf16 %v2382
        %v2735 = vunpack.c.h.s8.bf16 %v2383
        %v2736 = vunpack.c.h.s8.bf16 %v2384
        %v2737 = vunpack.c.h.s8.bf16 %v2385
        %v2738 = vunpack.c.h.s8.bf16 %v2386
        %v2739 = vunpack.c.h.s8.bf16 %v2387
        %v2740 = vunpack.c.l.s8.bf16 %v2388
        %v2741 = vunpack.c.l.s8.bf16 %v2389
        %v2742 = vunpack.c.l.s8.bf16 %v2390
        %v2743 = vunpack.c.l.s8.bf16 %v2391
        %v2744 = vunpack.c.l.s8.bf16 %v2392
        %v2745 = vunpack.c.l.s8.bf16 %v2393
        %v2746 = vunpack.c.l.s8.bf16 %v2394
        %v2747 = vunpack.c.l.s8.bf16 %v2395
        %v2748 = vunpack.c.h.s8.bf16 %v2388
        %v2749 = vunpack.c.h.s8.bf16 %v2389
        %v2750 = vunpack.c.h.s8.bf16 %v2390
        %v2751 = vunpack.c.h.s8.bf16 %v2391
        %v2752 = vunpack.c.h.s8.bf16 %v2392
        %v2753 = vunpack.c.h.s8.bf16 %v2393
        %v2754 = vunpack.c.h.s8.bf16 %v2394
        %v2755 = vunpack.c.h.s8.bf16 %v2395
        %v2756 = vunpack.c.l.s8.bf16 %v2396
        %v2757 = vunpack.c.l.s8.bf16 %v2397
        %v2758 = vunpack.c.l.s8.bf16 %v2398
        %v2759 = vunpack.c.l.s8.bf16 %v2399
        %v2760 = vunpack.c.l.s8.bf16 %v2400
        %v2761 = vunpack.c.l.s8.bf16 %v2401
        %v2762 = vunpack.c.l.s8.bf16 %v2402
        %v2763 = vunpack.c.l.s8.bf16 %v2403
        %v2764 = vunpack.c.h.s8.bf16 %v2396
        %v2765 = vunpack.c.h.s8.bf16 %v2397
        %v2766 = vunpack.c.h.s8.bf16 %v2398
        %v2767 = vunpack.c.h.s8.bf16 %v2399
        %v2768 = vunpack.c.h.s8.bf16 %v2400
        %v2769 = vunpack.c.h.s8.bf16 %v2401
        %v2770 = vunpack.c.h.s8.bf16 %v2402
        %v2771 = vunpack.c.h.s8.bf16 %v2403
        %v2772 = vunpack.c.l.s8.bf16 %v2404
        %v2773 = vunpack.c.l.s8.bf16 %v2405
        %v2774 = vunpack.c.l.s8.bf16 %v2406
        %v2775 = vunpack.c.l.s8.bf16 %v2407
        %v2776 = vunpack.c.l.s8.bf16 %v2408
        %v2777 = vunpack.c.l.s8.bf16 %v2409
        %v2778 = vunpack.c.l.s8.bf16 %v2410
        %v2779 = vunpack.c.l.s8.bf16 %v2411
        %v2780 = vunpack.c.h.s8.bf16 %v2404
        %v2781 = vunpack.c.h.s8.bf16 %v2405
        %v2782 = vunpack.c.h.s8.bf16 %v2406
        %v2783 = vunpack.c.h.s8.bf16 %v2407
        %v2784 = vunpack.c.h.s8.bf16 %v2408
        %v2785 = vunpack.c.h.s8.bf16 %v2409
        %v2786 = vunpack.c.h.s8.bf16 %v2410
        %v2787 = vunpack.c.h.s8.bf16 %v2411
        %v2788 = vunpack.c.l.s8.bf16 %v2412
        %v2789 = vunpack.c.l.s8.bf16 %v2413
        %v2790 = vunpack.c.l.s8.bf16 %v2414
        %v2791 = vunpack.c.l.s8.bf16 %v2415
        %v2792 = vunpack.c.l.s8.bf16 %v2416
        %v2793 = vunpack.c.l.s8.bf16 %v2417
        %v2794 = vunpack.c.l.s8.bf16 %v2418
        %v2795 = vunpack.c.l.s8.bf16 %v2419
        %v2796 = vunpack.c.h.s8.bf16 %v2412
        %v2797 = vunpack.c.h.s8.bf16 %v2413
        %v2798 = vunpack.c.h.s8.bf16 %v2414
        %v2799 = vunpack.c.h.s8.bf16 %v2415
        %v2800 = vunpack.c.h.s8.bf16 %v2416
        %v2801 = vunpack.c.h.s8.bf16 %v2417
        %v2802 = vunpack.c.h.s8.bf16 %v2418
        %v2803 = vunpack.c.h.s8.bf16 %v2419
        %v2804 = vunpack.c.l.s8.bf16 %v2420
        %v2805 = vunpack.c.l.s8.bf16 %v2421
        %v2806 = vunpack.c.l.s8.bf16 %v2422
        %v2807 = vunpack.c.l.s8.bf16 %v2423
        %v2808 = vunpack.c.l.s8.bf16 %v2424
        %v2809 = vunpack.c.l.s8.bf16 %v2425
        %v2810 = vunpack.c.l.s8.bf16 %v2426
        %v2811 = vunpack.c.l.s8.bf16 %v2427
        %v2812 = vunpack.c.h.s8.bf16 %v2420
        %v2813 = vunpack.c.h.s8.bf16 %v2421
        %v2814 = vunpack.c.h.s8.bf16 %v2422
        %v2815 = vunpack.c.h.s8.bf16 %v2423
        %v2816 = vunpack.c.h.s8.bf16 %v2424
        %v2817 = vunpack.c.h.s8.bf16 %v2425
        %v2818 = vunpack.c.h.s8.bf16 %v2426
        %v2819 = vunpack.c.h.s8.bf16 %v2427
        %v2820 = vunpack.c.l.s8.bf16 %v2428
        %v2821 = vunpack.c.l.s8.bf16 %v2429
        %v2822 = vunpack.c.l.s8.bf16 %v2430
        %v2823 = vunpack.c.l.s8.bf16 %v2431
        %v2824 = vunpack.c.l.s8.bf16 %v2432
        %v2825 = vunpack.c.l.s8.bf16 %v2433
        %v2826 = vunpack.c.l.s8.bf16 %v2434
        %v2827 = vunpack.c.l.s8.bf16 %v2435
        %v2828 = vunpack.c.h.s8.bf16 %v2428
        %v2829 = vunpack.c.h.s8.bf16 %v2429
        %v2830 = vunpack.c.h.s8.bf16 %v2430
        %v2831 = vunpack.c.h.s8.bf16 %v2431
        %v2832 = vunpack.c.h.s8.bf16 %v2432
        %v2833 = vunpack.c.h.s8.bf16 %v2433
        %v2834 = vunpack.c.h.s8.bf16 %v2434
        %v2835 = vunpack.c.h.s8.bf16 %v2435
        %v2836 = vunpack.c.l.s8.bf16 %v2436
        %v2837 = vunpack.c.l.s8.bf16 %v2437
        %v2838 = vunpack.c.l.s8.bf16 %v2438
        %v2839 = vunpack.c.l.s8.bf16 %v2439
        %v2840 = vunpack.c.l.s8.bf16 %v2440
        %v2841 = vunpack.c.l.s8.bf16 %v2441
        %v2842 = vunpack.c.l.s8.bf16 %v2442
        %v2843 = vunpack.c.l.s8.bf16 %v2443
        %v2844 = vunpack.c.h.s8.bf16 %v2436
        %v2845 = vunpack.c.h.s8.bf16 %v2437
        %v2846 = vunpack.c.h.s8.bf16 %v2438
        %v2847 = vunpack.c.h.s8.bf16 %v2439
        %v2848 = vunpack.c.h.s8.bf16 %v2440
        %v2849 = vunpack.c.h.s8.bf16 %v2441
        %v2850 = vunpack.c.h.s8.bf16 %v2442
        %v2851 = vunpack.c.h.s8.bf16 %v2443
        %v2852 = vunpack.c.l.s8.bf16 %v2444
        %v2853 = vunpack.c.l.s8.bf16 %v2445
        %v2854 = vunpack.c.l.s8.bf16 %v2446
        %v2855 = vunpack.c.l.s8.bf16 %v2447
        %v2856 = vunpack.c.l.s8.bf16 %v2448
        %v2857 = vunpack.c.l.s8.bf16 %v2449
        %v2858 = vunpack.c.l.s8.bf16 %v2450
        %v2859 = vunpack.c.l.s8.bf16 %v2451
        %v2860 = vunpack.c.h.s8.bf16 %v2444
        %v2861 = vunpack.c.h.s8.bf16 %v2445
        %v2862 = vunpack.c.h.s8.bf16 %v2446
        %v2863 = vunpack.c.h.s8.bf16 %v2447
        %v2864 = vunpack.c.h.s8.bf16 %v2448
        %v2865 = vunpack.c.h.s8.bf16 %v2449
        %v2866 = vunpack.c.h.s8.bf16 %v2450
        %v2867 = vunpack.c.h.s8.bf16 %v2451
        %v2868 = vunpack.c.l.s8.bf16 %v2452
        %v2869 = vunpack.c.l.s8.bf16 %v2453
        %v2870 = vunpack.c.l.s8.bf16 %v2454
        %v2871 = vunpack.c.l.s8.bf16 %v2455
        %v2872 = vunpack.c.l.s8.bf16 %v2456
        %v2873 = vunpack.c.l.s8.bf16 %v2457
        %v2874 = vunpack.c.l.s8.bf16 %v2458
        %v2875 = vunpack.c.l.s8.bf16 %v2459
        %v2876 = vunpack.c.h.s8.bf16 %v2452
        %v2877 = vunpack.c.h.s8.bf16 %v2453
        %v2878 = vunpack.c.h.s8.bf16 %v2454
        %v2879 = vunpack.c.h.s8.bf16 %v2455
        %v2880 = vunpack.c.h.s8.bf16 %v2456
        %v2881 = vunpack.c.h.s8.bf16 %v2457
        %v2882 = vunpack.c.h.s8.bf16 %v2458
        %v2883 = vunpack.c.h.s8.bf16 %v2459
        %v2884 = vunpack.c.l.s8.bf16 %v2460
        %v2885 = vunpack.c.l.s8.bf16 %v2461
        %v2886 = vunpack.c.l.s8.bf16 %v2462
        %v2887 = vunpack.c.l.s8.bf16 %v2463
        %v2888 = vunpack.c.l.s8.bf16 %v2464
        %v2889 = vunpack.c.l.s8.bf16 %v2465
        %v2890 = vunpack.c.l.s8.bf16 %v2466
        %v2891 = vunpack.c.l.s8.bf16 %v2467
        %v2892 = vunpack.c.h.s8.bf16 %v2460
        %v2893 = vunpack.c.h.s8.bf16 %v2461
        %v2894 = vunpack.c.h.s8.bf16 %v2462
        %v2895 = vunpack.c.h.s8.bf16 %v2463
        %v2896 = vunpack.c.h.s8.bf16 %v2464
        %v2897 = vunpack.c.h.s8.bf16 %v2465
        %v2898 = vunpack.c.h.s8.bf16 %v2466
        %v2899 = vunpack.c.h.s8.bf16 %v2467
        %v2900 = vunpack.c.l.s8.bf16 %v2468
        %v2901 = vunpack.c.l.s8.bf16 %v2469
        %v2902 = vunpack.c.l.s8.bf16 %v2470
        %v2903 = vunpack.c.l.s8.bf16 %v2471
        %v2904 = vunpack.c.l.s8.bf16 %v2472
        %v2905 = vunpack.c.l.s8.bf16 %v2473
        %v2906 = vunpack.c.l.s8.bf16 %v2474
        %v2907 = vunpack.c.l.s8.bf16 %v2475
        %v2908 = vunpack.c.h.s8.bf16 %v2468
        %v2909 = vunpack.c.h.s8.bf16 %v2469
        %v2910 = vunpack.c.h.s8.bf16 %v2470
        %v2911 = vunpack.c.h.s8.bf16 %v2471
        %v2912 = vunpack.c.h.s8.bf16 %v2472
        %v2913 = vunpack.c.h.s8.bf16 %v2473
        %v2914 = vunpack.c.h.s8.bf16 %v2474
        %v2915 = vunpack.c.h.s8.bf16 %v2475
        %v2916 = vunpack.c.l.s8.bf16 %v2476
        %v2917 = vunpack.c.l.s8.bf16 %v2477
        %v2918 = vunpack.c.l.s8.bf16 %v2478
        %v2919 = vunpack.c.l.s8.bf16 %v2479
        %v2920 = vunpack.c.l.s8.bf16 %v2480
        %v2921 = vunpack.c.l.s8.bf16 %v2481
        %v2922 = vunpack.c.l.s8.bf16 %v2482
        %v2923 = vunpack.c.l.s8.bf16 %v2483
        %v2924 = vunpack.c.h.s8.bf16 %v2476
        %v2925 = vunpack.c.h.s8.bf16 %v2477
        %v2926 = vunpack.c.h.s8.bf16 %v2478
        %v2927 = vunpack.c.h.s8.bf16 %v2479
        %v2928 = vunpack.c.h.s8.bf16 %v2480
        %v2929 = vunpack.c.h.s8.bf16 %v2481
        %v2930 = vunpack.c.h.s8.bf16 %v2482
        %v2931 = vunpack.c.h.s8.bf16 %v2483
        %v2932 = vunpack.c.l.s8.bf16 %v2484
        %v2933 = vunpack.c.l.s8.bf16 %v2485
        %v2934 = vunpack.c.l.s8.bf16 %v2486
        %v2935 = vunpack.c.l.s8.bf16 %v2487
        %v2936 = vunpack.c.l.s8.bf16 %v2488
        %v2937 = vunpack.c.l.s8.bf16 %v2489
        %v2938 = vunpack.c.l.s8.bf16 %v2490
        %v2939 = vunpack.c.l.s8.bf16 %v2491
        %v2940 = vunpack.c.h.s8.bf16 %v2484
        %v2941 = vunpack.c.h.s8.bf16 %v2485
        %v2942 = vunpack.c.h.s8.bf16 %v2486
        %v2943 = vunpack.c.h.s8.bf16 %v2487
        %v2944 = vunpack.c.h.s8.bf16 %v2488
        %v2945 = vunpack.c.h.s8.bf16 %v2489
        %v2946 = vunpack.c.h.s8.bf16 %v2490
        %v2947 = vunpack.c.h.s8.bf16 %v2491
        %v2948 = vunpack.c.l.s8.bf16 %v2492
        %v2949 = vunpack.c.l.s8.bf16 %v2493
        %v2950 = vunpack.c.l.s8.bf16 %v2494
        %v2951 = vunpack.c.l.s8.bf16 %v2495
        %v2952 = vunpack.c.l.s8.bf16 %v2496
        %v2953 = vunpack.c.l.s8.bf16 %v2497
        %v2954 = vunpack.c.l.s8.bf16 %v2498
        %v2955 = vunpack.c.l.s8.bf16 %v2499
        %v2956 = vunpack.c.h.s8.bf16 %v2492
        %v2957 = vunpack.c.h.s8.bf16 %v2493
        %v2958 = vunpack.c.h.s8.bf16 %v2494
        %v2959 = vunpack.c.h.s8.bf16 %v2495
        %v2960 = vunpack.c.h.s8.bf16 %v2496
        %v2961 = vunpack.c.h.s8.bf16 %v2497
        %v2962 = vunpack.c.h.s8.bf16 %v2498
        %v2963 = vunpack.c.h.s8.bf16 %v2499
        %v2964 = vunpack.c.l.s8.bf16 %v2500
        %v2965 = vunpack.c.l.s8.bf16 %v2501
        %v2966 = vunpack.c.l.s8.bf16 %v2502
        %v2967 = vunpack.c.l.s8.bf16 %v2503
        %v2968 = vunpack.c.l.s8.bf16 %v2504
        %v2969 = vunpack.c.l.s8.bf16 %v2505
        %v2970 = vunpack.c.l.s8.bf16 %v2506
        %v2971 = vunpack.c.l.s8.bf16 %v2507
        %v2972 = vunpack.c.h.s8.bf16 %v2500
        %v2973 = vunpack.c.h.s8.bf16 %v2501
        %v2974 = vunpack.c.h.s8.bf16 %v2502
        %v2975 = vunpack.c.h.s8.bf16 %v2503
        %v2976 = vunpack.c.h.s8.bf16 %v2504
        %v2977 = vunpack.c.h.s8.bf16 %v2505
        %v2978 = vunpack.c.h.s8.bf16 %v2506
        %v2979 = vunpack.c.h.s8.bf16 %v2507
        %v2980 = vunpack.c.l.s8.bf16 %v2508
        %v2981 = vunpack.c.l.s8.bf16 %v2509
        %v2982 = vunpack.c.l.s8.bf16 %v2510
        %v2983 = vunpack.c.l.s8.bf16 %v2511
        %v2984 = vunpack.c.l.s8.bf16 %v2512
        %v2985 = vunpack.c.l.s8.bf16 %v2513
        %v2986 = vunpack.c.l.s8.bf16 %v2514
        %v2987 = vunpack.c.l.s8.bf16 %v2515
        %v2988 = vunpack.c.h.s8.bf16 %v2508
        %v2989 = vunpack.c.h.s8.bf16 %v2509
        %v2990 = vunpack.c.h.s8.bf16 %v2510
        %v2991 = vunpack.c.h.s8.bf16 %v2511
        %v2992 = vunpack.c.h.s8.bf16 %v2512
        %v2993 = vunpack.c.h.s8.bf16 %v2513
        %v2994 = vunpack.c.h.s8.bf16 %v2514
        %v2995 = vunpack.c.h.s8.bf16 %v2515
        %v2996 = vunpack.c.l.s8.bf16 %v2516
        %v2997 = vunpack.c.l.s8.bf16 %v2517
        %v2998 = vunpack.c.l.s8.bf16 %v2518
        %v2999 = vunpack.c.l.s8.bf16 %v2519
        %v3000 = vunpack.c.l.s8.bf16 %v2520
        %v3001 = vunpack.c.l.s8.bf16 %v2521
        %v3002 = vunpack.c.l.s8.bf16 %v2522
        %v3003 = vunpack.c.l.s8.bf16 %v2523
        %v3004 = vunpack.c.h.s8.bf16 %v2516
        %v3005 = vunpack.c.h.s8.bf16 %v2517
        %v3006 = vunpack.c.h.s8.bf16 %v2518
        %v3007 = vunpack.c.h.s8.bf16 %v2519
        %v3008 = vunpack.c.h.s8.bf16 %v2520
        %v3009 = vunpack.c.h.s8.bf16 %v2521
        %v3010 = vunpack.c.h.s8.bf16 %v2522
        %v3011 = vunpack.c.h.s8.bf16 %v2523
        %v3012 = vunpack.c.l.s8.bf16 %v2524
        %v3013 = vunpack.c.l.s8.bf16 %v2525
        %v3014 = vunpack.c.l.s8.bf16 %v2526
        %v3015 = vunpack.c.l.s8.bf16 %v2527
        %v3016 = vunpack.c.l.s8.bf16 %v2528
        %v3017 = vunpack.c.l.s8.bf16 %v2529
        %v3018 = vunpack.c.l.s8.bf16 %v2530
        %v3019 = vunpack.c.l.s8.bf16 %v2531
        %v3020 = vunpack.c.h.s8.bf16 %v2524
        %v3021 = vunpack.c.h.s8.bf16 %v2525
        %v3022 = vunpack.c.h.s8.bf16 %v2526
        %v3023 = vunpack.c.h.s8.bf16 %v2527
        %v3024 = vunpack.c.h.s8.bf16 %v2528
        %v3025 = vunpack.c.h.s8.bf16 %v2529
        %v3026 = vunpack.c.h.s8.bf16 %v2530
        %v3027 = vunpack.c.h.s8.bf16 %v2531
        %v3028 = vunpack.c.l.s8.bf16 %v2532
        %v3029 = vunpack.c.l.s8.bf16 %v2533
        %v3030 = vunpack.c.l.s8.bf16 %v2534
        %v3031 = vunpack.c.l.s8.bf16 %v2535
        %v3032 = vunpack.c.l.s8.bf16 %v2536
        %v3033 = vunpack.c.l.s8.bf16 %v2537
        %v3034 = vunpack.c.l.s8.bf16 %v2538
        %v3035 = vunpack.c.l.s8.bf16 %v2539
        %v3036 = vunpack.c.h.s8.bf16 %v2532
        %v3037 = vunpack.c.h.s8.bf16 %v2533
        %v3038 = vunpack.c.h.s8.bf16 %v2534
        %v3039 = vunpack.c.h.s8.bf16 %v2535
        %v3040 = vunpack.c.h.s8.bf16 %v2536
        %v3041 = vunpack.c.h.s8.bf16 %v2537
        %v3042 = vunpack.c.h.s8.bf16 %v2538
        %v3043 = vunpack.c.h.s8.bf16 %v2539
        %v3044 = vunpack.c.l.s8.bf16 %v2540
        %v3045 = vunpack.c.l.s8.bf16 %v2541
        %v3046 = vunpack.c.l.s8.bf16 %v2542
        %v3047 = vunpack.c.l.s8.bf16 %v2543
        %v3048 = vunpack.c.l.s8.bf16 %v2544
        %v3049 = vunpack.c.l.s8.bf16 %v2545
        %v3050 = vunpack.c.l.s8.bf16 %v2546
        %v3051 = vunpack.c.l.s8.bf16 %v2547
        %v3052 = vunpack.c.h.s8.bf16 %v2540
        %v3053 = vunpack.c.h.s8.bf16 %v2541
        %v3054 = vunpack.c.h.s8.bf16 %v2542
        %v3055 = vunpack.c.h.s8.bf16 %v2543
        %v3056 = vunpack.c.h.s8.bf16 %v2544
        %v3057 = vunpack.c.h.s8.bf16 %v2545
        %v3058 = vunpack.c.h.s8.bf16 %v2546
        %v3059 = vunpack.c.h.s8.bf16 %v2547
        %v3060 = vpack.c.bf16 %v2283, %v2283
        %v3061 = vpack.c.bf16 %v2284, %v2284
        %v3062 = vpack.c.bf16 %v2285, %v2285
        %v3063 = vpack.c.bf16 %v2286, %v2286
        %v3064 = vpack.c.bf16 %v2287, %v2287
        %v3065 = vpack.c.bf16 %v2288, %v2288
        %v3066 = vpack.c.bf16 %v2289, %v2289
        %v3067 = vpack.c.bf16 %v2290, %v2290
        %3068 = vmatprep.subr.bf16.mxu0 %v2549
        %3069 = vmatpush1.bf16.msra.mxu0 %v2548
        %3070 = vmatprep.subr.bf16.mxu0 %v2557
        %3071 = vmatpush1.bf16.msra.mxu0 %v2556
        %3072 = vmatprep.subr.bf16.mxu0 %v2565
        %3073 = vmatpush1.bf16.msra.mxu0 %v2564
        %3074 = vmatprep.subr.bf16.mxu0 %v2573
        %3075 = vmatpush1.bf16.msra.mxu0 %v2572
        %3076 = vmatprep.subr.bf16.mxu0 %v2581
        %3077 = vmatpush1.bf16.msra.mxu0 %v2580
        %3078 = vmatprep.subr.bf16.mxu0 %v2589
        %3079 = vmatpush1.bf16.msra.mxu0 %v2588
        %3080 = vmatprep.subr.bf16.mxu0 %v2597
        %3081 = vmatpush1.bf16.msra.mxu0 %v2596
        %3082 = vmatprep.subr.bf16.mxu0 %v2605
        %3083 = vmatpush1.bf16.msra.mxu0 %v2604
        %3084 = vmatprep.subr.bf16.mxu0 %v2613
        %3085 = vmatpush1.bf16.msra.mxu0 %v2612
        %3086 = vmatprep.subr.bf16.mxu0 %v2621
        %3087 = vmatpush1.bf16.msra.mxu0 %v2620
        %3088 = vmatprep.subr.bf16.mxu0 %v2629
        %3089 = vmatpush1.bf16.msra.mxu0 %v2628
        %3090 = vmatprep.subr.bf16.mxu0 %v2637
        %3091 = vmatpush1.bf16.msra.mxu0 %v2636
        %3092 = vmatprep.subr.bf16.mxu0 %v2645
        %3093 = vmatpush1.bf16.msra.mxu0 %v2644
        %3094 = vmatprep.subr.bf16.mxu0 %v2653
        %3095 = vmatpush1.bf16.msra.mxu0 %v2652
        %3096 = vmatprep.subr.bf16.mxu0 %v2661
        %3097 = vmatpush1.bf16.msra.mxu0 %v2660
        %3098 = vmatprep.subr.bf16.mxu0 %v2669
        %3099 = vmatpush1.bf16.msra.mxu0 %v2668
        %3100 = vmatprep.mubr.bf16.mxu0 %v3061
        %3101 = vmatmul.mubr.bf16.gmra.mrb[0].mxu0 %v3060
        %v3102 = vpop.f32.mrb[0].mxu0
        %v3103 = vadd.f32 0.0, %v3102
        %v3104 = vpop.f32.mrb[0].mxu0
        %v3105 = vadd.f32 0.0, %v3104
        %v3106 = vpop.f32.mrb[0].mxu0
        %v3107 = vpop.f32.mrb[0].mxu0
        %3108 = vdwg.mxu0
        %3109 = vmatprep.subr.bf16.mxu0 %v2677
        %3110 = vmatpush1.bf16.msra.mxu0 %v2676
        %3111 = vmatprep.subr.bf16.mxu0 %v2685
        %3112 = vmatpush1.bf16.msra.mxu0 %v2684
        %3113 = vmatprep.subr.bf16.mxu0 %v2693
        %3114 = vmatpush1.bf16.msra.mxu0 %v2692
        %3115 = vmatprep.subr.bf16.mxu0 %v2701
        %3116 = vmatpush1.bf16.msra.mxu0 %v2700
        %3117 = vmatprep.subr.bf16.mxu0 %v2709
        %3118 = vmatpush1.bf16.msra.mxu0 %v2708
        %3119 = vmatprep.subr.bf16.mxu0 %v2717
        %3120 = vmatpush1.bf16.msra.mxu0 %v2716
        %3121 = vmatprep.subr.bf16.mxu0 %v2725
        %3122 = vmatpush1.bf16.msra.mxu0 %v2724
        %3123 = vmatprep.subr.bf16.mxu0 %v2733
        %3124 = vmatpush1.bf16.msra.mxu0 %v2732
        %3125 = vmatprep.subr.bf16.mxu0 %v2741
        %3126 = vmatpush1.bf16.msra.mxu0 %v2740
        %3127 = vmatprep.subr.bf16.mxu0 %v2749
        %3128 = vmatpush1.bf16.msra.mxu0 %v2748
        %3129 = vmatprep.subr.bf16.mxu0 %v2757
        %3130 = vmatpush1.bf16.msra.mxu0 %v2756
        %3131 = vmatprep.subr.bf16.mxu0 %v2765
        %3132 = vmatpush1.bf16.msra.mxu0 %v2764
        %3133 = vmatprep.subr.bf16.mxu0 %v2773
        %3134 = vmatpush1.bf16.msra.mxu0 %v2772
        %3135 = vmatprep.subr.bf16.mxu0 %v2781
        %3136 = vmatpush1.bf16.msra.mxu0 %v2780
        %3137 = vmatprep.subr.bf16.mxu0 %v2789
        %3138 = vmatpush1.bf16.msra.mxu0 %v2788
        %3139 = vmatprep.subr.bf16.mxu0 %v2797
        %3140 = vmatpush1.bf16.msra.mxu0 %v2796
        %3141 = vmatprep.mubr.bf16.mxu0 %v3063
        %3142 = vmatmul.mubr.bf16.gmra.mrb[0].mxu0 %v3062
        %v3143 = vpop.f32.mrb[0].mxu0
        %v3144 = vadd.f32 %v3103, %v3143
        %v3145 = vpop.f32.mrb[0].mxu0
        %v3146 = vadd.f32 %v3105, %v3145
        %v3147 = vpop.f32.mrb[0].mxu0
        %v3148 = vpop.f32.mrb[0].mxu0
        %3149 = vdwg.mxu0
        %3150 = vmatprep.subr.bf16.mxu0 %v2805
        %3151 = vmatpush1.bf16.msra.mxu0 %v2804
        %3152 = vmatprep.subr.bf16.mxu0 %v2813
        %3153 = vmatpush1.bf16.msra.mxu0 %v2812
        %3154 = vmatprep.subr.bf16.mxu0 %v2821
        %3155 = vmatpush1.bf16.msra.mxu0 %v2820
        %3156 = vmatprep.subr.bf16.mxu0 %v2829
        %3157 = vmatpush1.bf16.msra.mxu0 %v2828
        %3158 = vmatprep.subr.bf16.mxu0 %v2837
        %3159 = vmatpush1.bf16.msra.mxu0 %v2836
        %3160 = vmatprep.subr.bf16.mxu0 %v2845
        %3161 = vmatpush1.bf16.msra.mxu0 %v2844
        %3162 = vmatprep.subr.bf16.mxu0 %v2853
        %3163 = vmatpush1.bf16.msra.mxu0 %v2852
        %3164 = vmatprep.subr.bf16.mxu0 %v2861
        %3165 = vmatpush1.bf16.msra.mxu0 %v2860
        %3166 = vmatprep.subr.bf16.mxu0 %v2869
        %3167 = vmatpush1.bf16.msra.mxu0 %v2868
        %3168 = vmatprep.subr.bf16.mxu0 %v2877
        %3169 = vmatpush1.bf16.msra.mxu0 %v2876
        %3170 = vmatprep.subr.bf16.mxu0 %v2885
        %3171 = vmatpush1.bf16.msra.mxu0 %v2884
        %3172 = vmatprep.subr.bf16.mxu0 %v2893
        %3173 = vmatpush1.bf16.msra.mxu0 %v2892
        %3174 = vmatprep.subr.bf16.mxu0 %v2901
        %3175 = vmatpush1.bf16.msra.mxu0 %v2900
        %3176 = vmatprep.subr.bf16.mxu0 %v2909
        %3177 = vmatpush1.bf16.msra.mxu0 %v2908
        %3178 = vmatprep.subr.bf16.mxu0 %v2917
        %3179 = vmatpush1.bf16.msra.mxu0 %v2916
        %3180 = vmatprep.subr.bf16.mxu0 %v2925
        %3181 = vmatpush1.bf16.msra.mxu0 %v2924
        %3182 = vmatprep.mubr.bf16.mxu0 %v3065
        %3183 = vmatmul.mubr.bf16.gmra.mrb[0].mxu0 %v3064
        %v3184 = vpop.f32.mrb[0].mxu0
        %v3185 = vadd.f32 %v3144, %v3184
        %v3186 = vpop.f32.mrb[0].mxu0
        %v3187 = vadd.f32 %v3146, %v3186
        %v3188 = vpop.f32.mrb[0].mxu0
        %v3189 = vpop.f32.mrb[0].mxu0
        %3190 = vdwg.mxu0
        %3191 = vmatprep.subr.bf16.mxu0 %v2933
        %3192 = vmatpush1.bf16.msra.mxu0 %v2932
        %3193 = vmatprep.subr.bf16.mxu0 %v2941
        %3194 = vmatpush1.bf16.msra.mxu0 %v2940
        %3195 = vmatprep.subr.bf16.mxu0 %v2949
        %3196 = vmatpush1.bf16.msra.mxu0 %v2948
        %3197 = vmatprep.subr.bf16.mxu0 %v2957
        %3198 = vmatpush1.bf16.msra.mxu0 %v2956
        %3199 = vmatprep.subr.bf16.mxu0 %v2965
        %3200 = vmatpush1.bf16.msra.mxu0 %v2964
        %3201 = vmatprep.subr.bf16.mxu0 %v2973
        %3202 = vmatpush1.bf16.msra.mxu0 %v2972
        %3203 = vmatprep.subr.bf16.mxu0 %v2981
        %3204 = vmatpush1.bf16.msra.mxu0 %v2980
        %3205 = vmatprep.subr.bf16.mxu0 %v2989
        %3206 = vmatpush1.bf16.msra.mxu0 %v2988
        %3207 = vmatprep.subr.bf16.mxu0 %v2997
        %3208 = vmatpush1.bf16.msra.mxu0 %v2996
        %3209 = vmatprep.subr.bf16.mxu0 %v3005
        %3210 = vmatpush1.bf16.msra.mxu0 %v3004
        %3211 = vmatprep.subr.bf16.mxu0 %v3013
        %3212 = vmatpush1.bf16.msra.mxu0 %v3012
        %3213 = vmatprep.subr.bf16.mxu0 %v3021
        %3214 = vmatpush1.bf16.msra.mxu0 %v3020
        %3215 = vmatprep.subr.bf16.mxu0 %v3029
        %3216 = vmatpush1.bf16.msra.mxu0 %v3028
        %3217 = vmatprep.subr.bf16.mxu0 %v3037
        %3218 = vmatpush1.bf16.msra.mxu0 %v3036
        %3219 = vmatprep.subr.bf16.mxu0 %v3045
        %3220 = vmatpush1.bf16.msra.mxu0 %v3044
        %3221 = vmatprep.subr.bf16.mxu0 %v3053
        %3222 = vmatpush1.bf16.msra.mxu0 %v3052
        %3223 = vmatprep.mubr.bf16.mxu0 %v3067
        %3224 = vmatmul.mubr.bf16.gmra.mrb[0].mxu0 %v3066
        %v3225 = vpop.f32.mrb[0].mxu0
        %v3226 = vadd.f32 %v3185, %v3225
        %v3227 = vpop.f32.mrb[0].mxu0
        %v3228 = vadd.f32 %v3187, %v3227
        %v3229 = vpop.f32.mrb[0].mxu0
        %v3230 = vpop.f32.mrb[0].mxu0
        %3231 = vdwg.mxu0
        %3232 = vmatprep.subr.bf16.mxu0 %v2551
        %3233 = vmatpush1.bf16.msra.mxu0 %v2550
        %3234 = vmatprep.subr.bf16.mxu0 %v2559
        %3235 = vmatpush1.bf16.msra.mxu0 %v2558
        %3236 = vmatprep.subr.bf16.mxu0 %v2567
        %3237 = vmatpush1.bf16.msra.mxu0 %v2566
        %3238 = vmatprep.subr.bf16.mxu0 %v2575
        %3239 = vmatpush1.bf16.msra.mxu0 %v2574
        %3240 = vmatprep.subr.bf16.mxu0 %v2583
        %3241 = vmatpush1.bf16.msra.mxu0 %v2582
        %3242 = vmatprep.subr.bf16.mxu0 %v2591
        %3243 = vmatpush1.bf16.msra.mxu0 %v2590
        %3244 = vmatprep.subr.bf16.mxu0 %v2599
        %3245 = vmatpush1.bf16.msra.mxu0 %v2598
        %3246 = vmatprep.subr.bf16.mxu0 %v2607
        %3247 = vmatpush1.bf16.msra.mxu0 %v2606
        %3248 = vmatprep.subr.bf16.mxu0 %v2615
        %3249 = vmatpush1.bf16.msra.mxu0 %v2614
        %3250 = vmatprep.subr.bf16.mxu0 %v2623
        %3251 = vmatpush1.bf16.msra.mxu0 %v2622
        %3252 = vmatprep.subr.bf16.mxu0 %v2631
        %3253 = vmatpush1.bf16.msra.mxu0 %v2630
        %3254 = vmatprep.subr.bf16.mxu0 %v2639
        %3255 = vmatpush1.bf16.msra.mxu0 %v2638
        %3256 = vmatprep.subr.bf16.mxu0 %v2647
        %3257 = vmatpush1.bf16.msra.mxu0 %v2646
        %3258 = vmatprep.subr.bf16.mxu0 %v2655
        %3259 = vmatpush1.bf16.msra.mxu0 %v2654
        %3260 = vmatprep.subr.bf16.mxu0 %v2663
        %3261 = vmatpush1.bf16.msra.mxu0 %v2662
        %3262 = vmatprep.subr.bf16.mxu0 %v2671
        %3263 = vmatpush1.bf16.msra.mxu0 %v2670
        %3264 = vmatprep.mubr.bf16.mxu0 %v3061
        %3265 = vmatmul.mubr.bf16.gmra.mrb[0].mxu0 %v3060
        %v3266 = vpop.f32.mrb[0].mxu0
        %v3267 = vadd.f32 0.0, %v3266
        %v3268 = vpop.f32.mrb[0].mxu0
        %v3269 = vadd.f32 0.0, %v3268
        %v3270 = vpop.f32.mrb[0].mxu0
        %v3271 = vpop.f32.mrb[0].mxu0
        %3272 = vdwg.mxu0
        %3273 = vmatprep.subr.bf16.mxu0 %v2679
        %3274 = vmatpush1.bf16.msra.mxu0 %v2678
        %3275 = vmatprep.subr.bf16.mxu0 %v2687
        %3276 = vmatpush1.bf16.msra.mxu0 %v2686
        %3277 = vmatprep.subr.bf16.mxu0 %v2695
        %3278 = vmatpush1.bf16.msra.mxu0 %v2694
        %3279 = vmatprep.subr.bf16.mxu0 %v2703
        %3280 = vmatpush1.bf16.msra.mxu0 %v2702
        %3281 = vmatprep.subr.bf16.mxu0 %v2711
        %3282 = vmatpush1.bf16.msra.mxu0 %v2710
        %3283 = vmatprep.subr.bf16.mxu0 %v2719
        %3284 = vmatpush1.bf16.msra.mxu0 %v2718
        %3285 = vmatprep.subr.bf16.mxu0 %v2727
        %3286 = vmatpush1.bf16.msra.mxu0 %v2726
        %3287 = vmatprep.subr.bf16.mxu0 %v2735
        %3288 = vmatpush1.bf16.msra.mxu0 %v2734
        %3289 = vmatprep.subr.bf16.mxu0 %v2743
        %3290 = vmatpush1.bf16.msra.mxu0 %v2742
        %3291 = vmatprep.subr.bf16.mxu0 %v2751
        %3292 = vmatpush1.bf16.msra.mxu0 %v2750
        %3293 = vmatprep.subr.bf16.mxu0 %v2759
        %3294 = vmatpush1.bf16.msra.mxu0 %v2758
        %3295 = vmatprep.subr.bf16.mxu0 %v2767
        %3296 = vmatpush1.bf16.msra.mxu0 %v2766
        %3297 = vmatprep.subr.bf16.mxu0 %v2775
        %3298 = vmatpush1.bf16.msra.mxu0 %v2774
        %3299 = vmatprep.subr.bf16.mxu0 %v2783
        %3300 = vmatpush1.bf16.msra.mxu0 %v2782
        %3301 = vmatprep.subr.bf16.mxu0 %v2791
        %3302 = vmatpush1.bf16.msra.mxu0 %v2790
        %3303 = vmatprep.subr.bf16.mxu0 %v2799
        %3304 = vmatpush1.bf16.msra.mxu0 %v2798
        %3305 = vmatprep.mubr.bf16.mxu0 %v3063
        %3306 = vmatmul.mubr.bf16.gmra.mrb[0].mxu0 %v3062
        %v3307 = vpop.f32.mrb[0].mxu0
        %v3308 = vadd.f32 %v3267, %v3307
        %v3309 = vpop.f32.mrb[0].mxu0
        %v3310 = vadd.f32 %v3269, %v3309
        %v3311 = vpop.f32.mrb[0].mxu0
        %v3312 = vpop.f32.mrb[0].mxu0
        %3313 = vdwg.mxu0
        %3314 = vmatprep.subr.bf16.mxu0 %v2807
        %3315 = vmatpush1.bf16.msra.mxu0 %v2806
        %3316 = vmatprep.subr.bf16.mxu0 %v2815
        %3317 = vmatpush1.bf16.msra.mxu0 %v2814
        %3318 = vmatprep.subr.bf16.mxu0 %v2823
        %3319 = vmatpush1.bf16.msra.mxu0 %v2822
        %3320 = vmatprep.subr.bf16.mxu0 %v2831
        %3321 = vmatpush1.bf16.msra.mxu0 %v2830
        %3322 = vmatprep.subr.bf16.mxu0 %v2839
        %3323 = vmatpush1.bf16.msra.mxu0 %v2838
        %3324 = vmatprep.subr.bf16.mxu0 %v2847
        %3325 = vmatpush1.bf16.msra.mxu0 %v2846
        %3326 = vmatprep.subr.bf16.mxu0 %v2855
        %3327 = vmatpush1.bf16.msra.mxu0 %v2854
        %3328 = vmatprep.subr.bf16.mxu0 %v2863
        %3329 = vmatpush1.bf16.msra.mxu0 %v2862
        %3330 = vmatprep.subr.bf16.mxu0 %v2871
        %3331 = vmatpush1.bf16.msra.mxu0 %v2870
        %3332 = vmatprep.subr.bf16.mxu0 %v2879
        %3333 = vmatpush1.bf16.msra.mxu0 %v2878
        %3334 = vmatprep.subr.bf16.mxu0 %v2887
        %3335 = vmatpush1.bf16.msra.mxu0 %v2886
        %3336 = vmatprep.subr.bf16.mxu0 %v2895
        %3337 = vmatpush1.bf16.msra.mxu0 %v2894
        %3338 = vmatprep.subr.bf16.mxu0 %v2903
        %3339 = vmatpush1.bf16.msra.mxu0 %v2902
        %3340 = vmatprep.subr.bf16.mxu0 %v2911
        %3341 = vmatpush1.bf16.msra.mxu0 %v2910
        %3342 = vmatprep.subr.bf16.mxu0 %v2919
        %3343 = vmatpush1.bf16.msra.mxu0 %v2918
        %3344 = vmatprep.subr.bf16.mxu0 %v2927
        %3345 = vmatpush1.bf16.msra.mxu0 %v2926
        %3346 = vmatprep.mubr.bf16.mxu0 %v3065
        %3347 = vmatmul.mubr.bf16.gmra.mrb[0].mxu0 %v3064
        %v3348 = vpop.f32.mrb[0].mxu0
        %v3349 = vadd.f32 %v3308, %v3348
        %v3350 = vpop.f32.mrb[0].mxu0
        %v3351 = vadd.f32 %v3310, %v3350
        %v3352 = vpop.f32.mrb[0].mxu0
        %v3353 = vpop.f32.mrb[0].mxu0
        %3354 = vdwg.mxu0
        %3355 = vmatprep.subr.bf16.mxu0 %v2935
        %3356 = vmatpush1.bf16.msra.mxu0 %v2934
        %3357 = vmatprep.subr.bf16.mxu0 %v2943
        %3358 = vmatpush1.bf16.msra.mxu0 %v2942
        %3359 = vmatprep.subr.bf16.mxu0 %v2951
        %3360 = vmatpush1.bf16.msra.mxu0 %v2950
        %3361 = vmatprep.subr.bf16.mxu0 %v2959
        %3362 = vmatpush1.bf16.msra.mxu0 %v2958
        %3363 = vmatprep.subr.bf16.mxu0 %v2967
        %3364 = vmatpush1.bf16.msra.mxu0 %v2966
        %3365 = vmatprep.subr.bf16.mxu0 %v2975
        %3366 = vmatpush1.bf16.msra.mxu0 %v2974
        %3367 = vmatprep.subr.bf16.mxu0 %v2983
        %3368 = vmatpush1.bf16.msra.mxu0 %v2982
        %3369 = vmatprep.subr.bf16.mxu0 %v2991
        %3370 = vmatpush1.bf16.msra.mxu0 %v2990
        %3371 = vmatprep.subr.bf16.mxu0 %v2999
        %3372 = vmatpush1.bf16.msra.mxu0 %v2998
        %3373 = vmatprep.subr.bf16.mxu0 %v3007
        %3374 = vmatpush1.bf16.msra.mxu0 %v3006
        %3375 = vmatprep.subr.bf16.mxu0 %v3015
        %3376 = vmatpush1.bf16.msra.mxu0 %v3014
        %3377 = vmatprep.subr.bf16.mxu0 %v3023
        %3378 = vmatpush1.bf16.msra.mxu0 %v3022
        %3379 = vmatprep.subr.bf16.mxu0 %v3031
        %3380 = vmatpush1.bf16.msra.mxu0 %v3030
        %3381 = vmatprep.subr.bf16.mxu0 %v3039
        %3382 = vmatpush1.bf16.msra.mxu0 %v3038
        %3383 = vmatprep.subr.bf16.mxu0 %v3047
        %3384 = vmatpush1.bf16.msra.mxu0 %v3046
        %3385 = vmatprep.subr.bf16.mxu0 %v3055
        %3386 = vmatpush1.bf16.msra.mxu0 %v3054
        %3387 = vmatprep.mubr.bf16.mxu0 %v3067
        %3388 = vmatmul.mubr.bf16.gmra.mrb[0].mxu0 %v3066
        %v3389 = vpop.f32.mrb[0].mxu0
        %v3390 = vadd.f32 %v3349, %v3389
        %v3391 = vpop.f32.mrb[0].mxu0
        %v3392 = vadd.f32 %v3351, %v3391
        %v3393 = vpop.f32.mrb[0].mxu0
        %v3394 = vpop.f32.mrb[0].mxu0
        %3395 = vdwg.mxu0
        %3396 = vmatprep.subr.bf16.mxu0 %v2553
        %3397 = vmatpush1.bf16.msra.mxu0 %v2552
        %3398 = vmatprep.subr.bf16.mxu0 %v2561
        %3399 = vmatpush1.bf16.msra.mxu0 %v2560
        %3400 = vmatprep.subr.bf16.mxu0 %v2569
        %3401 = vmatpush1.bf16.msra.mxu0 %v2568
        %3402 = vmatprep.subr.bf16.mxu0 %v2577
        %3403 = vmatpush1.bf16.msra.mxu0 %v2576
        %3404 = vmatprep.subr.bf16.mxu0 %v2585
        %3405 = vmatpush1.bf16.msra.mxu0 %v2584
        %3406 = vmatprep.subr.bf16.mxu0 %v2593
        %3407 = vmatpush1.bf16.msra.mxu0 %v2592
        %3408 = vmatprep.subr.bf16.mxu0 %v2601
        %3409 = vmatpush1.bf16.msra.mxu0 %v2600
        %3410 = vmatprep.subr.bf16.mxu0 %v2609
        %3411 = vmatpush1.bf16.msra.mxu0 %v2608
        %3412 = vmatprep.subr.bf16.mxu0 %v2617
        %3413 = vmatpush1.bf16.msra.mxu0 %v2616
        %3414 = vmatprep.subr.bf16.mxu0 %v2625
        %3415 = vmatpush1.bf16.msra.mxu0 %v2624
        %3416 = vmatprep.subr.bf16.mxu0 %v2633
        %3417 = vmatpush1.bf16.msra.mxu0 %v2632
        %3418 = vmatprep.subr.bf16.mxu0 %v2641
        %3419 = vmatpush1.bf16.msra.mxu0 %v2640
        %3420 = vmatprep.subr.bf16.mxu0 %v2649
        %3421 = vmatpush1.bf16.msra.mxu0 %v2648
        %3422 = vmatprep.subr.bf16.mxu0 %v2657
        %3423 = vmatpush1.bf16.msra.mxu0 %v2656
        %3424 = vmatprep.subr.bf16.mxu0 %v2665
        %3425 = vmatpush1.bf16.msra.mxu0 %v2664
        %3426 = vmatprep.subr.bf16.mxu0 %v2673
        %3427 = vmatpush1.bf16.msra.mxu0 %v2672
        %3428 = vmatprep.mubr.bf16.mxu0 %v3061
        %3429 = vmatmul.mubr.bf16.gmra.mrb[0].mxu0 %v3060
        %v3430 = vpop.f32.mrb[0].mxu0
        %v3431 = vadd.f32 0.0, %v3430
        %v3432 = vpop.f32.mrb[0].mxu0
        %v3433 = vadd.f32 0.0, %v3432
        %v3434 = vpop.f32.mrb[0].mxu0
        %v3435 = vpop.f32.mrb[0].mxu0
        %3436 = vdwg.mxu0
        %3437 = vmatprep.subr.bf16.mxu0 %v2681
        %3438 = vmatpush1.bf16.msra.mxu0 %v2680
        %3439 = vmatprep.subr.bf16.mxu0 %v2689
        %3440 = vmatpush1.bf16.msra.mxu0 %v2688
        %3441 = vmatprep.subr.bf16.mxu0 %v2697
        %3442 = vmatpush1.bf16.msra.mxu0 %v2696
        %3443 = vmatprep.subr.bf16.mxu0 %v2705
        %3444 = vmatpush1.bf16.msra.mxu0 %v2704
        %3445 = vmatprep.subr.bf16.mxu0 %v2713
        %3446 = vmatpush1.bf16.msra.mxu0 %v2712
        %3447 = vmatprep.subr.bf16.mxu0 %v2721
        %3448 = vmatpush1.bf16.msra.mxu0 %v2720
        %3449 = vmatprep.subr.bf16.mxu0 %v2729
        %3450 = vmatpush1.bf16.msra.mxu0 %v2728
        %3451 = vmatprep.subr.bf16.mxu0 %v2737
        %3452 = vmatpush1.bf16.msra.mxu0 %v2736
        %3453 = vmatprep.subr.bf16.mxu0 %v2745
        %3454 = vmatpush1.bf16.msra.mxu0 %v2744
        %3455 = vmatprep.subr.bf16.mxu0 %v2753
        %3456 = vmatpush1.bf16.msra.mxu0 %v2752
        %3457 = vmatprep.subr.bf16.mxu0 %v2761
        %3458 = vmatpush1.bf16.msra.mxu0 %v2760
        %3459 = vmatprep.subr.bf16.mxu0 %v2769
        %3460 = vmatpush1.bf16.msra.mxu0 %v2768
        %3461 = vmatprep.subr.bf16.mxu0 %v2777
        %3462 = vmatpush1.bf16.msra.mxu0 %v2776
        %3463 = vmatprep.subr.bf16.mxu0 %v2785
        %3464 = vmatpush1.bf16.msra.mxu0 %v2784
        %3465 = vmatprep.subr.bf16.mxu0 %v2793
        %3466 = vmatpush1.bf16.msra.mxu0 %v2792
        %3467 = vmatprep.subr.bf16.mxu0 %v2801
        %3468 = vmatpush1.bf16.msra.mxu0 %v2800
        %3469 = vmatprep.mubr.bf16.mxu0 %v3063
        %3470 = vmatmul.mubr.bf16.gmra.mrb[0].mxu0 %v3062
        %v3471 = vpop.f32.mrb[0].mxu0
        %v3472 = vadd.f32 %v3431, %v3471
        %v3473 = vpop.f32.mrb[0].mxu0
        %v3474 = vadd.f32 %v3433, %v3473
        %v3475 = vpop.f32.mrb[0].mxu0
        %v3476 = vpop.f32.mrb[0].mxu0
        %3477 = vdwg.mxu0
        %3478 = vmatprep.subr.bf16.mxu0 %v2809
        %3479 = vmatpush1.bf16.msra.mxu0 %v2808
        %3480 = vmatprep.subr.bf16.mxu0 %v2817
        %3481 = vmatpush1.bf16.msra.mxu0 %v2816
        %3482 = vmatprep.subr.bf16.mxu0 %v2825
        %3483 = vmatpush1.bf16.msra.mxu0 %v2824
        %3484 = vmatprep.subr.bf16.mxu0 %v2833
        %3485 = vmatpush1.bf16.msra.mxu0 %v2832
        %3486 = vmatprep.subr.bf16.mxu0 %v2841
        %3487 = vmatpush1.bf16.msra.mxu0 %v2840
        %3488 = vmatprep.subr.bf16.mxu0 %v2849
        %3489 = vmatpush1.bf16.msra.mxu0 %v2848
        %3490 = vmatprep.subr.bf16.mxu0 %v2857
        %3491 = vmatpush1.bf16.msra.mxu0 %v2856
        %3492 = vmatprep.subr.bf16.mxu0 %v2865
        %3493 = vmatpush1.bf16.msra.mxu0 %v2864
        %3494 = vmatprep.subr.bf16.mxu0 %v2873
        %3495 = vmatpush1.bf16.msra.mxu0 %v2872
        %3496 = vmatprep.subr.bf16.mxu0 %v2881
        %3497 = vmatpush1.bf16.msra.mxu0 %v2880
        %3498 = vmatprep.subr.bf16.mxu0 %v2889
        %3499 = vmatpush1.bf16.msra.mxu0 %v2888
        %3500 = vmatprep.subr.bf16.mxu0 %v2897
        %3501 = vmatpush1.bf16.msra.mxu0 %v2896
        %3502 = vmatprep.subr.bf16.mxu0 %v2905
        %3503 = vmatpush1.bf16.msra.mxu0 %v2904
        %3504 = vmatprep.subr.bf16.mxu0 %v2913
        %3505 = vmatpush1.bf16.msra.mxu0 %v2912
        %3506 = vmatprep.subr.bf16.mxu0 %v2921
        %3507 = vmatpush1.bf16.msra.mxu0 %v2920
        %3508 = vmatprep.subr.bf16.mxu0 %v2929
        %3509 = vmatpush1.bf16.msra.mxu0 %v2928
        %3510 = vmatprep.mubr.bf16.mxu0 %v3065
        %3511 = vmatmul.mubr.bf16.gmra.mrb[0].mxu0 %v3064
        %v3512 = vpop.f32.mrb[0].mxu0
        %v3513 = vadd.f32 %v3472, %v3512
        %v3514 = vpop.f32.mrb[0].mxu0
        %v3515 = vadd.f32 %v3474, %v3514
        %v3516 = vpop.f32.mrb[0].mxu0
        %v3517 = vpop.f32.mrb[0].mxu0
        %3518 = vdwg.mxu0
        %3519 = vmatprep.subr.bf16.mxu0 %v2937
        %3520 = vmatpush1.bf16.msra.mxu0 %v2936
        %3521 = vmatprep.subr.bf16.mxu0 %v2945
        %3522 = vmatpush1.bf16.msra.mxu0 %v2944
        %3523 = vmatprep.subr.bf16.mxu0 %v2953
        %3524 = vmatpush1.bf16.msra.mxu0 %v2952
        %3525 = vmatprep.subr.bf16.mxu0 %v2961
        %3526 = vmatpush1.bf16.msra.mxu0 %v2960
        %3527 = vmatprep.subr.bf16.mxu0 %v2969
        %3528 = vmatpush1.bf16.msra.mxu0 %v2968
        %3529 = vmatprep.subr.bf16.mxu0 %v2977
        %3530 = vmatpush1.bf16.msra.mxu0 %v2976
        %3531 = vmatprep.subr.bf16.mxu0 %v2985
        %3532 = vmatpush1.bf16.msra.mxu0 %v2984
        %3533 = vmatprep.subr.bf16.mxu0 %v2993
        %3534 = vmatpush1.bf16.msra.mxu0 %v2992
        %3535 = vmatprep.subr.bf16.mxu0 %v3001
        %3536 = vmatpush1.bf16.msra.mxu0 %v3000
        %3537 = vmatprep.subr.bf16.mxu0 %v3009
        %3538 = vmatpush1.bf16.msra.mxu0 %v3008
        %3539 = vmatprep.subr.bf16.mxu0 %v3017
        %3540 = vmatpush1.bf16.msra.mxu0 %v3016
        %3541 = vmatprep.subr.bf16.mxu0 %v3025
        %3542 = vmatpush1.bf16.msra.mxu0 %v3024
        %3543 = vmatprep.subr.bf16.mxu0 %v3033
        %3544 = vmatpush1.bf16.msra.mxu0 %v3032
        %3545 = vmatprep.subr.bf16.mxu0 %v3041
        %3546 = vmatpush1.bf16.msra.mxu0 %v3040
        %3547 = vmatprep.subr.bf16.mxu0 %v3049
        %3548 = vmatpush1.bf16.msra.mxu0 %v3048
        %3549 = vmatprep.subr.bf16.mxu0 %v3057
        %3550 = vmatpush1.bf16.msra.mxu0 %v3056
        %3551 = vmatprep.mubr.bf16.mxu0 %v3067
        %3552 = vmatmul.mubr.bf16.gmra.mrb[0].mxu0 %v3066
        %v3553 = vpop.f32.mrb[0].mxu0
        %v3554 = vadd.f32 %v3513, %v3553
        %v3555 = vpop.f32.mrb[0].mxu0
        %v3556 = vadd.f32 %v3515, %v3555
        %v3557 = vpop.f32.mrb[0].mxu0
        %v3558 = vpop.f32.mrb[0].mxu0
        %3559 = vdwg.mxu0
        %3560 = vmatprep.subr.bf16.mxu0 %v2555
        %3561 = vmatpush1.bf16.msra.mxu0 %v2554
        %3562 = vmatprep.subr.bf16.mxu0 %v2563
        %3563 = vmatpush1.bf16.msra.mxu0 %v2562
        %3564 = vmatprep.subr.bf16.mxu0 %v2571
        %3565 = vmatpush1.bf16.msra.mxu0 %v2570
        %3566 = vmatprep.subr.bf16.mxu0 %v2579
        %3567 = vmatpush1.bf16.msra.mxu0 %v2578
        %3568 = vmatprep.subr.bf16.mxu0 %v2587
        %3569 = vmatpush1.bf16.msra.mxu0 %v2586
        %3570 = vmatprep.subr.bf16.mxu0 %v2595
        %3571 = vmatpush1.bf16.msra.mxu0 %v2594
        %3572 = vmatprep.subr.bf16.mxu0 %v2603
        %3573 = vmatpush1.bf16.msra.mxu0 %v2602
        %3574 = vmatprep.subr.bf16.mxu0 %v2611
        %3575 = vmatpush1.bf16.msra.mxu0 %v2610
        %3576 = vmatprep.subr.bf16.mxu0 %v2619
        %3577 = vmatpush1.bf16.msra.mxu0 %v2618
        %3578 = vmatprep.subr.bf16.mxu0 %v2627
        %3579 = vmatpush1.bf16.msra.mxu0 %v2626
        %3580 = vmatprep.subr.bf16.mxu0 %v2635
        %3581 = vmatpush1.bf16.msra.mxu0 %v2634
        %3582 = vmatprep.subr.bf16.mxu0 %v2643
        %3583 = vmatpush1.bf16.msra.mxu0 %v2642
        %3584 = vmatprep.subr.bf16.mxu0 %v2651
        %3585 = vmatpush1.bf16.msra.mxu0 %v2650
        %3586 = vmatprep.subr.bf16.mxu0 %v2659
        %3587 = vmatpush1.bf16.msra.mxu0 %v2658
        %3588 = vmatprep.subr.bf16.mxu0 %v2667
        %3589 = vmatpush1.bf16.msra.mxu0 %v2666
        %3590 = vmatprep.subr.bf16.mxu0 %v2675
        %3591 = vmatpush1.bf16.msra.mxu0 %v2674
        %3592 = vmatprep.mubr.bf16.mxu0 %v3061
        %3593 = vmatmul.mubr.bf16.gmra.mrb[0].mxu0 %v3060
        %v3594 = vpop.f32.mrb[0].mxu0
        %v3595 = vadd.f32 0.0, %v3594
        %v3596 = vpop.f32.mrb[0].mxu0
        %v3597 = vadd.f32 0.0, %v3596
        %v3598 = vpop.f32.mrb[0].mxu0
        %v3599 = vpop.f32.mrb[0].mxu0
        %3600 = vdwg.mxu0
        %3601 = vmatprep.subr.bf16.mxu0 %v2683
        %3602 = vmatpush1.bf16.msra.mxu0 %v2682
        %3603 = vmatprep.subr.bf16.mxu0 %v2691
        %3604 = vmatpush1.bf16.msra.mxu0 %v2690
        %3605 = vmatprep.subr.bf16.mxu0 %v2699
        %3606 = vmatpush1.bf16.msra.mxu0 %v2698
        %3607 = vmatprep.subr.bf16.mxu0 %v2707
        %3608 = vmatpush1.bf16.msra.mxu0 %v2706
        %3609 = vmatprep.subr.bf16.mxu0 %v2715
        %3610 = vmatpush1.bf16.msra.mxu0 %v2714
        %3611 = vmatprep.subr.bf16.mxu0 %v2723
        %3612 = vmatpush1.bf16.msra.mxu0 %v2722
        %3613 = vmatprep.subr.bf16.mxu0 %v2731
        %3614 = vmatpush1.bf16.msra.mxu0 %v2730
        %3615 = vmatprep.subr.bf16.mxu0 %v2739
        %3616 = vmatpush1.bf16.msra.mxu0 %v2738
        %3617 = vmatprep.subr.bf16.mxu0 %v2747
        %3618 = vmatpush1.bf16.msra.mxu0 %v2746
        %3619 = vmatprep.subr.bf16.mxu0 %v2755
        %3620 = vmatpush1.bf16.msra.mxu0 %v2754
        %3621 = vmatprep.subr.bf16.mxu0 %v2763
        %3622 = vmatpush1.bf16.msra.mxu0 %v2762
        %3623 = vmatprep.subr.bf16.mxu0 %v2771
        %3624 = vmatpush1.bf16.msra.mxu0 %v2770
        %3625 = vmatprep.subr.bf16.mxu0 %v2779
        %3626 = vmatpush1.bf16.msra.mxu0 %v2778
        %3627 = vmatprep.subr.bf16.mxu0 %v2787
        %3628 = vmatpush1.bf16.msra.mxu0 %v2786
        %3629 = vmatprep.subr.bf16.mxu0 %v2795
        %3630 = vmatpush1.bf16.msra.mxu0 %v2794
        %3631 = vmatprep.subr.bf16.mxu0 %v2803
        %3632 = vmatpush1.bf16.msra.mxu0 %v2802
        %3633 = vmatprep.mubr.bf16.mxu0 %v3063
        %3634 = vmatmul.mubr.bf16.gmra.mrb[0].mxu0 %v3062
        %v3635 = vpop.f32.mrb[0].mxu0
        %v3636 = vadd.f32 %v3595, %v3635
        %v3637 = vpop.f32.mrb[0].mxu0
        %v3638 = vadd.f32 %v3597, %v3637
        %v3639 = vpop.f32.mrb[0].mxu0
        %v3640 = vpop.f32.mrb[0].mxu0
        %3641 = vdwg.mxu0
        %3642 = vmatprep.subr.bf16.mxu0 %v2811
        %3643 = vmatpush1.bf16.msra.mxu0 %v2810
        %3644 = vmatprep.subr.bf16.mxu0 %v2819
        %3645 = vmatpush1.bf16.msra.mxu0 %v2818
        %3646 = vmatprep.subr.bf16.mxu0 %v2827
        %3647 = vmatpush1.bf16.msra.mxu0 %v2826
        %3648 = vmatprep.subr.bf16.mxu0 %v2835
        %3649 = vmatpush1.bf16.msra.mxu0 %v2834
        %3650 = vmatprep.subr.bf16.mxu0 %v2843
        %3651 = vmatpush1.bf16.msra.mxu0 %v2842
        %3652 = vmatprep.subr.bf16.mxu0 %v2851
        %3653 = vmatpush1.bf16.msra.mxu0 %v2850
        %3654 = vmatprep.subr.bf16.mxu0 %v2859
        %3655 = vmatpush1.bf16.msra.mxu0 %v2858
        %3656 = vmatprep.subr.bf16.mxu0 %v2867
        %3657 = vmatpush1.bf16.msra.mxu0 %v2866
        %3658 = vmatprep.subr.bf16.mxu0 %v2875
        %3659 = vmatpush1.bf16.msra.mxu0 %v2874
        %3660 = vmatprep.subr.bf16.mxu0 %v2883
        %3661 = vmatpush1.bf16.msra.mxu0 %v2882
        %3662 = vmatprep.subr.bf16.mxu0 %v2891
        %3663 = vmatpush1.bf16.msra.mxu0 %v2890
        %3664 = vmatprep.subr.bf16.mxu0 %v2899
        %3665 = vmatpush1.bf16.msra.mxu0 %v2898
        %3666 = vmatprep.subr.bf16.mxu0 %v2907
        %3667 = vmatpush1.bf16.msra.mxu0 %v2906
        %3668 = vmatprep.subr.bf16.mxu0 %v2915
        %3669 = vmatpush1.bf16.msra.mxu0 %v2914
        %3670 = vmatprep.subr.bf16.mxu0 %v2923
        %3671 = vmatpush1.bf16.msra.mxu0 %v2922
        %3672 = vmatprep.subr.bf16.mxu0 %v2931
        %3673 = vmatpush1.bf16.msra.mxu0 %v2930
        %3674 = vmatprep.mubr.bf16.mxu0 %v3065
        %3675 = vmatmul.mubr.bf16.gmra.mrb[0].mxu0 %v3064
        %v3676 = vpop.f32.mrb[0].mxu0
        %v3677 = vadd.f32 %v3636, %v3676
        %v3678 = vpop.f32.mrb[0].mxu0
        %v3679 = vadd.f32 %v3638, %v3678
        %v3680 = vpop.f32.mrb[0].mxu0
        %v3681 = vpop.f32.mrb[0].mxu0
        %3682 = vdwg.mxu0
        %3683 = vmatprep.subr.bf16.mxu0 %v2939
        %3684 = vmatpush1.bf16.msra.mxu0 %v2938
        %3685 = vmatprep.subr.bf16.mxu0 %v2947
        %3686 = vmatpush1.bf16.msra.mxu0 %v2946
        %3687 = vmatprep.subr.bf16.mxu0 %v2955
        %3688 = vmatpush1.bf16.msra.mxu0 %v2954
        %3689 = vmatprep.subr.bf16.mxu0 %v2963
        %3690 = vmatpush1.bf16.msra.mxu0 %v2962
        %3691 = vmatprep.subr.bf16.mxu0 %v2971
        %3692 = vmatpush1.bf16.msra.mxu0 %v2970
        %3693 = vmatprep.subr.bf16.mxu0 %v2979
        %3694 = vmatpush1.bf16.msra.mxu0 %v2978
        %3695 = vmatprep.subr.bf16.mxu0 %v2987
        %3696 = vmatpush1.bf16.msra.mxu0 %v2986
        %3697 = vmatprep.subr.bf16.mxu0 %v2995
        %3698 = vmatpush1.bf16.msra.mxu0 %v2994
        %3699 = vmatprep.subr.bf16.mxu0 %v3003
        %3700 = vmatpush1.bf16.msra.mxu0 %v3002
        %3701 = vmatprep.subr.bf16.mxu0 %v3011
        %3702 = vmatpush1.bf16.msra.mxu0 %v3010
        %3703 = vmatprep.subr.bf16.mxu0 %v3019
        %3704 = vmatpush1.bf16.msra.mxu0 %v3018
        %3705 = vmatprep.subr.bf16.mxu0 %v3027
        %3706 = vmatpush1.bf16.msra.mxu0 %v3026
        %3707 = vmatprep.subr.bf16.mxu0 %v3035
        %3708 = vmatpush1.bf16.msra.mxu0 %v3034
        %3709 = vmatprep.subr.bf16.mxu0 %v3043
        %3710 = vmatpush1.bf16.msra.mxu0 %v3042
        %3711 = vmatprep.subr.bf16.mxu0 %v3051
        %3712 = vmatpush1.bf16.msra.mxu0 %v3050
        %3713 = vmatprep.subr.bf16.mxu0 %v3059
        %3714 = vmatpush1.bf16.msra.mxu0 %v3058
        %3715 = vmatprep.mubr.bf16.mxu0 %v3067
        %3716 = vmatmul.mubr.bf16.gmra.mrb[0].mxu0 %v3066
        %v3717 = vpop.f32.mrb[0].mxu0
        %v3718 = vadd.f32 %v3677, %v3717
        %v3719 = vpop.f32.mrb[0].mxu0
        %v3720 = vadd.f32 %v3679, %v3719
        %v3721 = vpop.f32.mrb[0].mxu0
        %v3722 = vpop.f32.mrb[0].mxu0
        %3723 = vdwg.mxu0
        %s3724 = sadd.s32 %s411, 1
        %s3725 = smul.u32 %s3724, 8
        %s3726 = scalar_lea.vmem [#allocation11], %s3725
        %v3727 = vld [vmem:[%s3726] sm:$0xff]
        %v3729 = vlaneseq
        %v3730 = vshrl.u32 %v3729, 7
        %v3731 = vsub.s32 0, %v3730
        %v3732 = vrot.slane %v3727, %v3731
        %v3733 = vlaneseq
        %v3734 = vshrl.u32 %v3733, 7
        %v3735 = vsub.s32 1, %v3734
        %v3736 = vrot.slane %v3727, %v3735
        %v3737 = vlaneseq
        %v3738 = vshrl.u32 %v3737, 7
        %v3739 = vsub.s32 2, %v3738
        %v3740 = vrot.slane %v3727, %v3739
        %v3741 = vlaneseq
        %v3742 = vshrl.u32 %v3741, 7
        %v3743 = vsub.s32 3, %v3742
        %v3744 = vrot.slane %v3727, %v3743
        %v3745 = vlaneseq
        %v3746 = vshrl.u32 %v3745, 7
        %v3747 = vsub.s32 4, %v3746
        %v3748 = vrot.slane %v3727, %v3747
        %v3749 = vlaneseq
        %v3750 = vshrl.u32 %v3749, 7
        %v3751 = vsub.s32 5, %v3750
        %v3752 = vrot.slane %v3727, %v3751
        %v3753 = vlaneseq
        %v3754 = vshrl.u32 %v3753, 7
        %v3755 = vsub.s32 6, %v3754
        %v3756 = vrot.slane %v3727, %v3755
        %v3757 = vlaneseq
        %v3758 = vshrl.u32 %v3757, 7
        %v3759 = vsub.s32 7, %v3758
        %v3760 = vrot.slane %v3727, %v3759
        %v3769 = vmul.f32 %v3226, %v3732
        %v3770 = vmul.f32 %v3228, %v3736
        %v3771 = vmul.f32 %v3390, %v3740
        %v3772 = vmul.f32 %v3392, %v3744
        %v3773 = vmul.f32 %v3554, %v3748
        %v3774 = vmul.f32 %v3556, %v3752
        %v3775 = vmul.f32 %v3718, %v3756
        %v3776 = vmul.f32 %v3720, %v3760
        %s3777 = scalar_lea.vmem [#allocation12], %s3725
        %v3778 = vld [vmem:[%s3777] sm:$0xff]
        %v3780 = vlaneseq
        %v3781 = vshrl.u32 %v3780, 7
        %v3782 = vsub.s32 0, %v3781
        %v3783 = vrot.slane %v3778, %v3782
        %v3784 = vlaneseq
        %v3785 = vshrl.u32 %v3784, 7
        %v3786 = vsub.s32 1, %v3785
        %v3787 = vrot.slane %v3778, %v3786
        %v3788 = vlaneseq
        %v3789 = vshrl.u32 %v3788, 7
        %v3790 = vsub.s32 2, %v3789
        %v3791 = vrot.slane %v3778, %v3790
        %v3792 = vlaneseq
        %v3793 = vshrl.u32 %v3792, 7
        %v3794 = vsub.s32 3, %v3793
        %v3795 = vrot.slane %v3778, %v3794
        %v3796 = vlaneseq
        %v3797 = vshrl.u32 %v3796, 7
        %v3798 = vsub.s32 4, %v3797
        %v3799 = vrot.slane %v3778, %v3798
        %v3800 = vlaneseq
        %v3801 = vshrl.u32 %v3800, 7
        %v3802 = vsub.s32 5, %v3801
        %v3803 = vrot.slane %v3778, %v3802
        %v3804 = vlaneseq
        %v3805 = vshrl.u32 %v3804, 7
        %v3806 = vsub.s32 6, %v3805
        %v3807 = vrot.slane %v3778, %v3806
        %v3808 = vlaneseq
        %v3809 = vshrl.u32 %v3808, 7
        %v3810 = vsub.s32 7, %v3809
        %v3811 = vrot.slane %v3778, %v3810
        %v3820 = vadd.f32 %v3769, %v3783
        %v3821 = vadd.f32 %v3770, %v3787
        %v3822 = vadd.f32 %v3771, %v3791
        %v3823 = vadd.f32 %v3772, %v3795
        %v3824 = vadd.f32 %v3773, %v3799
        %v3825 = vadd.f32 %v3774, %v3803
        %v3826 = vadd.f32 %v3775, %v3807
        %v3827 = vadd.f32 %v3776, %v3811
        %v3828 = vmax.f32 %v3820, 0.0
        %v3829 = vmax.f32 %v3821, 0.0
        %v3830 = vmax.f32 %v3822, 0.0
        %v3831 = vmax.f32 %v3823, 0.0
        %v3832 = vmax.f32 %v3824, 0.0
        %v3833 = vmax.f32 %v3825, 0.0
        %v3834 = vmax.f32 %v3826, 0.0
        %v3835 = vmax.f32 %v3827, 0.0
        %v3836 = vadd.f32 %v740, %v3828
        %v3837 = vadd.f32 %v741, %v3829
        %v3838 = vadd.f32 %v742, %v3830
        %v3839 = vadd.f32 %v743, %v3831
        %v3840 = vadd.f32 %v744, %v3832
        %v3841 = vadd.f32 %v745, %v3833
        %v3842 = vadd.f32 %v746, %v3834
        %v3843 = vadd.f32 %v747, %v3835
        %3844 = vst [vmem:[#allocation2] sm:$0xff] %v3836
        %3845 = vst [vmem:[#allocation2 + $0x8] sm:$0xff] %v3837
        %3846 = vst [vmem:[#allocation2 + $0x10] sm:$0xff] %v3838
        %3847 = vst [vmem:[#allocation2 + $0x18] sm:$0xff] %v3839
        %3848 = vst [vmem:[#allocation2 + $0x20] sm:$0xff] %v3840
        %3849 = vst [vmem:[#allocation2 + $0x28] sm:$0xff] %v3841
        %3850 = vst [vmem:[#allocation2 + $0x30] sm:$0xff] %v3842
        %3851 = vst [vmem:[#allocation2 + $0x38] sm:$0xff] %v3843
        %p3852 = scmp.eq.s32.totalorder %s27, 1
        // Predicated region
        $region89: #{model_forward.1} parent=51 // pred_check
          %p3853 = pneg %p3852
        $region90: #{model_forward.1} parent=51 // pred_check_branch
          %3855 = sbr.rel (%p3853) target = $region92
        $region91: #{model_forward.1} parent=51 // pred_region
          %v3856 = vpack.c.bf16 %v3836, %v3836
          %v3857 = vpack.c.bf16 %v3837, %v3837
          %v3858 = vpack.c.bf16 %v3838, %v3838
          %v3859 = vpack.c.bf16 %v3839, %v3839
          %v3860 = vpack.c.bf16 %v3840, %v3840
          %v3861 = vpack.c.bf16 %v3841, %v3841
          %v3862 = vpack.c.bf16 %v3842, %v3842
          %v3863 = vpack.c.bf16 %v3843, %v3843
          %v3864 = vld [vmem:[#allocation14] sm:$0xf]
          %v3865 = vld [vmem:[#allocation14 + $0x4] sm:$0xf]
          %v3866 = vld [vmem:[#allocation14 + $0x8] sm:$0xf]
          %v3867 = vld [vmem:[#allocation14 + $0xc] sm:$0xf]
          %v3868 = vld [vmem:[#allocation14 + $0x10] sm:$0xf]
          %v3869 = vld [vmem:[#allocation14 + $0x14] sm:$0xf]
          %v3870 = vld [vmem:[#allocation14 + $0x18] sm:$0xf]
          %v3871 = vld [vmem:[#allocation14 + $0x1c] sm:$0xf]
          %v3872 = vld [vmem:[#allocation14 + $0x20] sm:$0xf]
          %v3873 = vld [vmem:[#allocation14 + $0x24] sm:$0xf]
          %v3874 = vld [vmem:[#allocation14 + $0x28] sm:$0xf]
          %v3875 = vld [vmem:[#allocation14 + $0x2c] sm:$0xf]
          %v3876 = vld [vmem:[#allocation14 + $0x30] sm:$0xf]
          %v3877 = vld [vmem:[#allocation14 + $0x34] sm:$0xf]
          %v3878 = vld [vmem:[#allocation14 + $0x38] sm:$0xf]
          %v3879 = vld [vmem:[#allocation14 + $0x3c] sm:$0xf]
          %v3880 = vld [vmem:[#allocation14 + $0x40] sm:$0xf]
          %v3881 = vld [vmem:[#allocation14 + $0x44] sm:$0xf]
          %v3882 = vld [vmem:[#allocation14 + $0x48] sm:$0xf]
          %v3883 = vld [vmem:[#allocation14 + $0x4c] sm:$0xf]
          %v3884 = vld [vmem:[#allocation14 + $0x50] sm:$0xf]
          %v3885 = vld [vmem:[#allocation14 + $0x54] sm:$0xf]
          %v3886 = vld [vmem:[#allocation14 + $0x58] sm:$0xf]
          %v3887 = vld [vmem:[#allocation14 + $0x5c] sm:$0xf]
          %v3888 = vld [vmem:[#allocation14 + $0x60] sm:$0xf]
          %v3889 = vld [vmem:[#allocation14 + $0x64] sm:$0xf]
          %v3890 = vld [vmem:[#allocation14 + $0x68] sm:$0xf]
          %v3891 = vld [vmem:[#allocation14 + $0x6c] sm:$0xf]
          %v3892 = vld [vmem:[#allocation14 + $0x70] sm:$0xf]
          %v3893 = vld [vmem:[#allocation14 + $0x74] sm:$0xf]
          %v3894 = vld [vmem:[#allocation14 + $0x78] sm:$0xf]
          %v3895 = vld [vmem:[#allocation14 + $0x7c] sm:$0xf]
          %v3896 = vld [vmem:[#allocation14 + $0x80] sm:$0xf]
          %v3897 = vld [vmem:[#allocation14 + $0x84] sm:$0xf]
          %v3898 = vld [vmem:[#allocation14 + $0x88] sm:$0xf]
          %v3899 = vld [vmem:[#allocation14 + $0x8c] sm:$0xf]
          %v3900 = vld [vmem:[#allocation14 + $0x90] sm:$0xf]
          %v3901 = vld [vmem:[#allocation14 + $0x94] sm:$0xf]
          %v3902 = vld [vmem:[#allocation14 + $0x98] sm:$0xf]
          %v3903 = vld [vmem:[#allocation14 + $0x9c] sm:$0xf]
          %v3904 = vld [vmem:[#allocation14 + $0xa0] sm:$0xf]
          %v3905 = vld [vmem:[#allocation14 + $0xa4] sm:$0xf]
          %v3906 = vld [vmem:[#allocation14 + $0xa8] sm:$0xf]
          %v3907 = vld [vmem:[#allocation14 + $0xac] sm:$0xf]
          %v3908 = vld [vmem:[#allocation14 + $0xb0] sm:$0xf]
          %v3909 = vld [vmem:[#allocation14 + $0xb4] sm:$0xf]
          %v3910 = vld [vmem:[#allocation14 + $0xb8] sm:$0xf]
          %v3911 = vld [vmem:[#allocation14 + $0xbc] sm:$0xf]
          %v3912 = vld [vmem:[#allocation14 + $0xc0] sm:$0xf]
          %v3913 = vld [vmem:[#allocation14 + $0xc4] sm:$0xf]
          %v3914 = vld [vmem:[#allocation14 + $0xc8] sm:$0xf]
          %v3915 = vld [vmem:[#allocation14 + $0xcc] sm:$0xf]
          %v3916 = vld [vmem:[#allocation14 + $0xd0] sm:$0xf]
          %v3917 = vld [vmem:[#allocation14 + $0xd4] sm:$0xf]
          %v3918 = vld [vmem:[#allocation14 + $0xd8] sm:$0xf]
          %v3919 = vld [vmem:[#allocation14 + $0xdc] sm:$0xf]
          %v3920 = vld [vmem:[#allocation14 + $0xe0] sm:$0xf]
          %v3921 = vld [vmem:[#allocation14 + $0xe4] sm:$0xf]
          %v3922 = vld [vmem:[#allocation14 + $0xe8] sm:$0xf]
          %v3923 = vld [vmem:[#allocation14 + $0xec] sm:$0xf]
          %v3924 = vld [vmem:[#allocation14 + $0xf0] sm:$0xf]
          %v3925 = vld [vmem:[#allocation14 + $0xf4] sm:$0xf]
          %v3926 = vld [vmem:[#allocation14 + $0xf8] sm:$0xf]
          %v3927 = vld [vmem:[#allocation14 + $0xfc] sm:$0xf]
          %v3928 = vld [vmem:[#allocation14 + $0x100] sm:$0xf]
          %v3929 = vld [vmem:[#allocation14 + $0x104] sm:$0xf]
          %v3930 = vld [vmem:[#allocation14 + $0x108] sm:$0xf]
          %v3931 = vld [vmem:[#allocation14 + $0x10c] sm:$0xf]
          %v3932 = vld [vmem:[#allocation14 + $0x110] sm:$0xf]
          %v3933 = vld [vmem:[#allocation14 + $0x114] sm:$0xf]
          %v3934 = vld [vmem:[#allocation14 + $0x118] sm:$0xf]
          %v3935 = vld [vmem:[#allocation14 + $0x11c] sm:$0xf]
          %v3936 = vld [vmem:[#allocation14 + $0x120] sm:$0xf]
          %v3937 = vld [vmem:[#allocation14 + $0x124] sm:$0xf]
          %v3938 = vld [vmem:[#allocation14 + $0x128] sm:$0xf]
          %v3939 = vld [vmem:[#allocation14 + $0x12c] sm:$0xf]
          %v3940 = vld [vmem:[#allocation14 + $0x130] sm:$0xf]
          %v3941 = vld [vmem:[#allocation14 + $0x134] sm:$0xf]
          %v3942 = vld [vmem:[#allocation14 + $0x138] sm:$0xf]
          %v3943 = vld [vmem:[#allocation14 + $0x13c] sm:$0xf]
          %v3944 = vld [vmem:[#allocation14 + $0x140] sm:$0xf]
          %v3945 = vld [vmem:[#allocation14 + $0x144] sm:$0xf]
          %v3946 = vld [vmem:[#allocation14 + $0x148] sm:$0xf]
          %v3947 = vld [vmem:[#allocation14 + $0x14c] sm:$0xf]
          %v3948 = vld [vmem:[#allocation14 + $0x150] sm:$0xf]
          %v3949 = vld [vmem:[#allocation14 + $0x154] sm:$0xf]
          %v3950 = vld [vmem:[#allocation14 + $0x158] sm:$0xf]
          %v3951 = vld [vmem:[#allocation14 + $0x15c] sm:$0xf]
          %v3952 = vld [vmem:[#allocation14 + $0x160] sm:$0xf]
          %v3953 = vld [vmem:[#allocation14 + $0x164] sm:$0xf]
          %v3954 = vld [vmem:[#allocation14 + $0x168] sm:$0xf]
          %v3955 = vld [vmem:[#allocation14 + $0x16c] sm:$0xf]
          %v3956 = vld [vmem:[#allocation14 + $0x170] sm:$0xf]
          %v3957 = vld [vmem:[#allocation14 + $0x174] sm:$0xf]
          %v3958 = vld [vmem:[#allocation14 + $0x178] sm:$0xf]
          %v3959 = vld [vmem:[#allocation14 + $0x17c] sm:$0xf]
          %v3960 = vld [vmem:[#allocation14 + $0x180] sm:$0xf]
          %v3961 = vld [vmem:[#allocation14 + $0x184] sm:$0xf]
          %v3962 = vld [vmem:[#allocation14 + $0x188] sm:$0xf]
          %v3963 = vld [vmem:[#allocation14 + $0x18c] sm:$0xf]
          %v3964 = vld [vmem:[#allocation14 + $0x190] sm:$0xf]
          %v3965 = vld [vmem:[#allocation14 + $0x194] sm:$0xf]
          %v3966 = vld [vmem:[#allocation14 + $0x198] sm:$0xf]
          %v3967 = vld [vmem:[#allocation14 + $0x19c] sm:$0xf]
          %v3968 = vld [vmem:[#allocation14 + $0x1a0] sm:$0xf]
          %v3969 = vld [vmem:[#allocation14 + $0x1a4] sm:$0xf]
          %v3970 = vld [vmem:[#allocation14 + $0x1a8] sm:$0xf]
          %v3971 = vld [vmem:[#allocation14 + $0x1ac] sm:$0xf]
          %v3972 = vld [vmem:[#allocation14 + $0x1b0] sm:$0xf]
          %v3973 = vld [vmem:[#allocation14 + $0x1b4] sm:$0xf]
          %v3974 = vld [vmem:[#allocation14 + $0x1b8] sm:$0xf]
          %v3975 = vld [vmem:[#allocation14 + $0x1bc] sm:$0xf]
          %v3976 = vld [vmem:[#allocation14 + $0x1c0] sm:$0xf]
          %v3977 = vld [vmem:[#allocation14 + $0x1c4] sm:$0xf]
          %v3978 = vld [vmem:[#allocation14 + $0x1c8] sm:$0xf]
          %v3979 = vld [vmem:[#allocation14 + $0x1cc] sm:$0xf]
          %v3980 = vld [vmem:[#allocation14 + $0x1d0] sm:$0xf]
          %v3981 = vld [vmem:[#allocation14 + $0x1d4] sm:$0xf]
          %v3982 = vld [vmem:[#allocation14 + $0x1d8] sm:$0xf]
          %v3983 = vld [vmem:[#allocation14 + $0x1dc] sm:$0xf]
          %v3984 = vld [vmem:[#allocation14 + $0x1e0] sm:$0xf]
          %v3985 = vld [vmem:[#allocation14 + $0x1e4] sm:$0xf]
          %v3986 = vld [vmem:[#allocation14 + $0x1e8] sm:$0xf]
          %v3987 = vld [vmem:[#allocation14 + $0x1ec] sm:$0xf]
          %v3988 = vld [vmem:[#allocation14 + $0x1f0] sm:$0xf]
          %v3989 = vld [vmem:[#allocation14 + $0x1f4] sm:$0xf]
          %v3990 = vld [vmem:[#allocation14 + $0x1f8] sm:$0xf]
          %v3991 = vld [vmem:[#allocation14 + $0x1fc] sm:$0xf]
          %v3992 = vld [vmem:[#allocation15] sm:$0x1]
          %v3994 = vlaneseq
          %v3995 = vshrl.u32 %v3994, 7
          %v3996 = vsub.s32 0, %v3995
          %v3997 = vrot.slane %v3992, %v3996
          %v4127 = vunpack.c.l.b16 %v3864
          %v4128 = vunpack.c.l.b16 %v3865
          %v4129 = vunpack.c.l.b16 %v3866
          %v4130 = vunpack.c.l.b16 %v3867
          %v4131 = vunpack.c.l.b16 %v3868
          %v4132 = vunpack.c.l.b16 %v3869
          %v4133 = vunpack.c.l.b16 %v3870
          %v4134 = vunpack.c.l.b16 %v3871
          %v4135 = vunpack.c.l.b16 %v3872
          %v4136 = vunpack.c.l.b16 %v3873
          %v4137 = vunpack.c.l.b16 %v3874
          %v4138 = vunpack.c.l.b16 %v3875
          %v4139 = vunpack.c.l.b16 %v3876
          %v4140 = vunpack.c.l.b16 %v3877
          %v4141 = vunpack.c.l.b16 %v3878
          %v4142 = vunpack.c.l.b16 %v3879
          %v4143 = vunpack.c.l.b16 %v3880
          %v4144 = vunpack.c.l.b16 %v3881
          %v4145 = vunpack.c.l.b16 %v3882
          %v4146 = vunpack.c.l.b16 %v3883
          %v4147 = vunpack.c.l.b16 %v3884
          %v4148 = vunpack.c.l.b16 %v3885
          %v4149 = vunpack.c.l.b16 %v3886
          %v4150 = vunpack.c.l.b16 %v3887
          %v4151 = vunpack.c.l.b16 %v3888
          %v4152 = vunpack.c.l.b16 %v3889
          %v4153 = vunpack.c.l.b16 %v3890
          %v4154 = vunpack.c.l.b16 %v3891
          %v4155 = vunpack.c.l.b16 %v3892
          %v4156 = vunpack.c.l.b16 %v3893
          %v4157 = vunpack.c.l.b16 %v3894
          %v4158 = vunpack.c.l.b16 %v3895
          %v4159 = vunpack.c.l.b16 %v3896
          %v4160 = vunpack.c.l.b16 %v3897
          %v4161 = vunpack.c.l.b16 %v3898
          %v4162 = vunpack.c.l.b16 %v3899
          %v4163 = vunpack.c.l.b16 %v3900
          %v4164 = vunpack.c.l.b16 %v3901
          %v4165 = vunpack.c.l.b16 %v3902
          %v4166 = vunpack.c.l.b16 %v3903
          %v4167 = vunpack.c.l.b16 %v3904
          %v4168 = vunpack.c.l.b16 %v3905
          %v4169 = vunpack.c.l.b16 %v3906
          %v4170 = vunpack.c.l.b16 %v3907
          %v4171 = vunpack.c.l.b16 %v3908
          %v4172 = vunpack.c.l.b16 %v3909
          %v4173 = vunpack.c.l.b16 %v3910
          %v4174 = vunpack.c.l.b16 %v3911
          %v4175 = vunpack.c.l.b16 %v3912
          %v4176 = vunpack.c.l.b16 %v3913
          %v4177 = vunpack.c.l.b16 %v3914
          %v4178 = vunpack.c.l.b16 %v3915
          %v4179 = vunpack.c.l.b16 %v3916
          %v4180 = vunpack.c.l.b16 %v3917
          %v4181 = vunpack.c.l.b16 %v3918
          %v4182 = vunpack.c.l.b16 %v3919
          %v4183 = vunpack.c.l.b16 %v3920
          %v4184 = vunpack.c.l.b16 %v3921
          %v4185 = vunpack.c.l.b16 %v3922
          %v4186 = vunpack.c.l.b16 %v3923
          %v4187 = vunpack.c.l.b16 %v3924
          %v4188 = vunpack.c.l.b16 %v3925
          %v4189 = vunpack.c.l.b16 %v3926
          %v4190 = vunpack.c.l.b16 %v3927
          %v4191 = vunpack.c.l.b16 %v3928
          %v4192 = vunpack.c.l.b16 %v3929
          %v4193 = vunpack.c.l.b16 %v3930
          %v4194 = vunpack.c.l.b16 %v3931
          %v4195 = vunpack.c.l.b16 %v3932
          %v4196 = vunpack.c.l.b16 %v3933
          %v4197 = vunpack.c.l.b16 %v3934
          %v4198 = vunpack.c.l.b16 %v3935
          %v4199 = vunpack.c.l.b16 %v3936
          %v4200 = vunpack.c.l.b16 %v3937
          %v4201 = vunpack.c.l.b16 %v3938
          %v4202 = vunpack.c.l.b16 %v3939
          %v4203 = vunpack.c.l.b16 %v3940
          %v4204 = vunpack.c.l.b16 %v3941
          %v4205 = vunpack.c.l.b16 %v3942
          %v4206 = vunpack.c.l.b16 %v3943
          %v4207 = vunpack.c.l.b16 %v3944
          %v4208 = vunpack.c.l.b16 %v3945
          %v4209 = vunpack.c.l.b16 %v3946
          %v4210 = vunpack.c.l.b16 %v3947
          %v4211 = vunpack.c.l.b16 %v3948
          %v4212 = vunpack.c.l.b16 %v3949
          %v4213 = vunpack.c.l.b16 %v3950
          %v4214 = vunpack.c.l.b16 %v3951
          %v4215 = vunpack.c.l.b16 %v3952
          %v4216 = vunpack.c.l.b16 %v3953
          %v4217 = vunpack.c.l.b16 %v3954
          %v4218 = vunpack.c.l.b16 %v3955
          %v4219 = vunpack.c.l.b16 %v3956
          %v4220 = vunpack.c.l.b16 %v3957
          %v4221 = vunpack.c.l.b16 %v3958
          %v4222 = vunpack.c.l.b16 %v3959
          %v4223 = vunpack.c.l.b16 %v3960
          %v4224 = vunpack.c.l.b16 %v3961
          %v4225 = vunpack.c.l.b16 %v3962
          %v4226 = vunpack.c.l.b16 %v3963
          %v4227 = vunpack.c.l.b16 %v3964
          %v4228 = vunpack.c.l.b16 %v3965
          %v4229 = vunpack.c.l.b16 %v3966
          %v4230 = vunpack.c.l.b16 %v3967
          %v4231 = vunpack.c.l.b16 %v3968
          %v4232 = vunpack.c.l.b16 %v3969
          %v4233 = vunpack.c.l.b16 %v3970
          %v4234 = vunpack.c.l.b16 %v3971
          %v4235 = vunpack.c.l.b16 %v3972
          %v4236 = vunpack.c.l.b16 %v3973
          %v4237 = vunpack.c.l.b16 %v3974
          %v4238 = vunpack.c.l.b16 %v3975
          %v4239 = vunpack.c.l.b16 %v3976
          %v4240 = vunpack.c.l.b16 %v3977
          %v4241 = vunpack.c.l.b16 %v3978
          %v4242 = vunpack.c.l.b16 %v3979
          %v4243 = vunpack.c.l.b16 %v3980
          %v4244 = vunpack.c.l.b16 %v3981
          %v4245 = vunpack.c.l.b16 %v3982
          %v4246 = vunpack.c.l.b16 %v3983
          %v4247 = vunpack.c.l.b16 %v3984
          %v4248 = vunpack.c.l.b16 %v3985
          %v4249 = vunpack.c.l.b16 %v3986
          %v4250 = vunpack.c.l.b16 %v3987
          %v4251 = vunpack.c.l.b16 %v3988
          %v4252 = vunpack.c.l.b16 %v3989
          %v4253 = vunpack.c.l.b16 %v3990
          %v4254 = vunpack.c.l.b16 %v3991
          %v4255 = vpack.c.b16 %v4128, %v4127
          %v4256 = vpack.c.b16 %v4130, %v4129
          %v4257 = vpack.c.b16 %v4132, %v4131
          %v4258 = vpack.c.b16 %v4134, %v4133
          %v4259 = vpack.c.b16 %v4136, %v4135
          %v4260 = vpack.c.b16 %v4138, %v4137
          %v4261 = vpack.c.b16 %v4140, %v4139
          %v4262 = vpack.c.b16 %v4142, %v4141
          %v4263 = vpack.c.b16 %v4144, %v4143
          %v4264 = vpack.c.b16 %v4146, %v4145
          %v4265 = vpack.c.b16 %v4148, %v4147
          %v4266 = vpack.c.b16 %v4150, %v4149
          %v4267 = vpack.c.b16 %v4152, %v4151
          %v4268 = vpack.c.b16 %v4154, %v4153
          %v4269 = vpack.c.b16 %v4156, %v4155
          %v4270 = vpack.c.b16 %v4158, %v4157
          %v4271 = vpack.c.b16 %v4160, %v4159
          %v4272 = vpack.c.b16 %v4162, %v4161
          %v4273 = vpack.c.b16 %v4164, %v4163
          %v4274 = vpack.c.b16 %v4166, %v4165
          %v4275 = vpack.c.b16 %v4168, %v4167
          %v4276 = vpack.c.b16 %v4170, %v4169
          %v4277 = vpack.c.b16 %v4172, %v4171
          %v4278 = vpack.c.b16 %v4174, %v4173
          %v4279 = vpack.c.b16 %v4176, %v4175
          %v4280 = vpack.c.b16 %v4178, %v4177
          %v4281 = vpack.c.b16 %v4180, %v4179
          %v4282 = vpack.c.b16 %v4182, %v4181
          %v4283 = vpack.c.b16 %v4184, %v4183
          %v4284 = vpack.c.b16 %v4186, %v4185
          %v4285 = vpack.c.b16 %v4188, %v4187
          %v4286 = vpack.c.b16 %v4190, %v4189
          %v4287 = vpack.c.b16 %v4192, %v4191
          %v4288 = vpack.c.b16 %v4194, %v4193
          %v4289 = vpack.c.b16 %v4196, %v4195
          %v4290 = vpack.c.b16 %v4198, %v4197
          %v4291 = vpack.c.b16 %v4200, %v4199
          %v4292 = vpack.c.b16 %v4202, %v4201
          %v4293 = vpack.c.b16 %v4204, %v4203
          %v4294 = vpack.c.b16 %v4206, %v4205
          %v4295 = vpack.c.b16 %v4208, %v4207
          %v4296 = vpack.c.b16 %v4210, %v4209
          %v4297 = vpack.c.b16 %v4212, %v4211
          %v4298 = vpack.c.b16 %v4214, %v4213
          %v4299 = vpack.c.b16 %v4216, %v4215
          %v4300 = vpack.c.b16 %v4218, %v4217
          %v4301 = vpack.c.b16 %v4220, %v4219
          %v4302 = vpack.c.b16 %v4222, %v4221
          %v4303 = vpack.c.b16 %v4224, %v4223
          %v4304 = vpack.c.b16 %v4226, %v4225
          %v4305 = vpack.c.b16 %v4228, %v4227
          %v4306 = vpack.c.b16 %v4230, %v4229
          %v4307 = vpack.c.b16 %v4232, %v4231
          %v4308 = vpack.c.b16 %v4234, %v4233
          %v4309 = vpack.c.b16 %v4236, %v4235
          %v4310 = vpack.c.b16 %v4238, %v4237
          %v4311 = vpack.c.b16 %v4240, %v4239
          %v4312 = vpack.c.b16 %v4242, %v4241
          %v4313 = vpack.c.b16 %v4244, %v4243
          %v4314 = vpack.c.b16 %v4246, %v4245
          %v4315 = vpack.c.b16 %v4248, %v4247
          %v4316 = vpack.c.b16 %v4250, %v4249
          %v4317 = vpack.c.b16 %v4252, %v4251
          %v4318 = vpack.c.b16 %v4254, %v4253
          %4383 = vmatprep.subr.bf16.mxu0 0
          %4384 = vmatpush1.bf16.msra.mxu0 %v4255
          %4385 = vmatprep.subr.bf16.mxu0 0
          %4386 = vmatpush1.bf16.msra.mxu0 %v4256
          %4387 = vmatprep.subr.bf16.mxu0 0
          %4388 = vmatpush1.bf16.msra.mxu0 %v4257
          %4389 = vmatprep.subr.bf16.mxu0 0
          %4390 = vmatpush1.bf16.msra.mxu0 %v4258
          %4391 = vmatprep.subr.bf16.mxu0 0
          %4392 = vmatpush1.bf16.msra.mxu0 %v4259
          %4393 = vmatprep.subr.bf16.mxu0 0
          %4394 = vmatpush1.bf16.msra.mxu0 %v4260
          %4395 = vmatprep.subr.bf16.mxu0 0
          %4396 = vmatpush1.bf16.msra.mxu0 %v4261
          %4397 = vmatprep.subr.bf16.mxu0 0
          %4398 = vmatpush1.bf16.msra.mxu0 %v4262
          %4399 = vmatprep.subr.bf16.mxu0 0
          %4400 = vmatpush1.bf16.msra.mxu0 %v4263
          %4401 = vmatprep.subr.bf16.mxu0 0
          %4402 = vmatpush1.bf16.msra.mxu0 %v4264
          %4403 = vmatprep.subr.bf16.mxu0 0
          %4404 = vmatpush1.bf16.msra.mxu0 %v4265
          %4405 = vmatprep.subr.bf16.mxu0 0
          %4406 = vmatpush1.bf16.msra.mxu0 %v4266
          %4407 = vmatprep.subr.bf16.mxu0 0
          %4408 = vmatpush1.bf16.msra.mxu0 %v4267
          %4409 = vmatprep.subr.bf16.mxu0 0
          %4410 = vmatpush1.bf16.msra.mxu0 %v4268
          %4411 = vmatprep.subr.bf16.mxu0 0
          %4412 = vmatpush1.bf16.msra.mxu0 %v4269
          %4413 = vmatprep.subr.bf16.mxu0 0
          %4414 = vmatpush1.bf16.msra.mxu0 %v4270
          %4415 = vmatprep.mubr.bf16.mxu0 %v3857
          %4416 = vmatmul.mubr.bf16.gmra.mrb[0].mxu0 %v3856
          %v4417 = vpop.f32.mrb[0].mxu0
          %v4418 = vadd.f32 %v3997, %v4417
          %v4419 = vpop.f32.mrb[0].mxu0
          %v4420 = vpop.f32.mrb[0].mxu0
          %v4421 = vpop.f32.mrb[0].mxu0
          %4422 = vdwg.mxu0
          %4423 = vmatprep.subr.bf16.mxu0 0
          %4424 = vmatpush1.bf16.msra.mxu0 %v4271
          %4425 = vmatprep.subr.bf16.mxu0 0
          %4426 = vmatpush1.bf16.msra.mxu0 %v4272
          %4427 = vmatprep.subr.bf16.mxu0 0
          %4428 = vmatpush1.bf16.msra.mxu0 %v4273
          %4429 = vmatprep.subr.bf16.mxu0 0
          %4430 = vmatpush1.bf16.msra.mxu0 %v4274
          %4431 = vmatprep.subr.bf16.mxu0 0
          %4432 = vmatpush1.bf16.msra.mxu0 %v4275
          %4433 = vmatprep.subr.bf16.mxu0 0
          %4434 = vmatpush1.bf16.msra.mxu0 %v4276
          %4435 = vmatprep.subr.bf16.mxu0 0
          %4436 = vmatpush1.bf16.msra.mxu0 %v4277
          %4437 = vmatprep.subr.bf16.mxu0 0
          %4438 = vmatpush1.bf16.msra.mxu0 %v4278
          %4439 = vmatprep.subr.bf16.mxu0 0
          %4440 = vmatpush1.bf16.msra.mxu0 %v4279
          %4441 = vmatprep.subr.bf16.mxu0 0
          %4442 = vmatpush1.bf16.msra.mxu0 %v4280
          %4443 = vmatprep.subr.bf16.mxu0 0
          %4444 = vmatpush1.bf16.msra.mxu0 %v4281
          %4445 = vmatprep.subr.bf16.mxu0 0
          %4446 = vmatpush1.bf16.msra.mxu0 %v4282
          %4447 = vmatprep.subr.bf16.mxu0 0
          %4448 = vmatpush1.bf16.msra.mxu0 %v4283
          %4449 = vmatprep.subr.bf16.mxu0 0
          %4450 = vmatpush1.bf16.msra.mxu0 %v4284
          %4451 = vmatprep.subr.bf16.mxu0 0
          %4452 = vmatpush1.bf16.msra.mxu0 %v4285
          %4453 = vmatprep.subr.bf16.mxu0 0
          %4454 = vmatpush1.bf16.msra.mxu0 %v4286
          %4455 = vmatprep.mubr.bf16.mxu0 %v3859
          %4456 = vmatmul.mubr.bf16.gmra.mrb[0].mxu0 %v3858
          %v4457 = vpop.f32.mrb[0].mxu0
          %v4458 = vadd.f32 %v4418, %v4457
          %v4459 = vpop.f32.mrb[0].mxu0
          %v4460 = vpop.f32.mrb[0].mxu0
          %v4461 = vpop.f32.mrb[0].mxu0
          %4462 = vdwg.mxu0
          %4463 = vmatprep.subr.bf16.mxu0 0
          %4464 = vmatpush1.bf16.msra.mxu0 %v4287
          %4465 = vmatprep.subr.bf16.mxu0 0
          %4466 = vmatpush1.bf16.msra.mxu0 %v4288
          %4467 = vmatprep.subr.bf16.mxu0 0
          %4468 = vmatpush1.bf16.msra.mxu0 %v4289
          %4469 = vmatprep.subr.bf16.mxu0 0
          %4470 = vmatpush1.bf16.msra.mxu0 %v4290
          %4471 = vmatprep.subr.bf16.mxu0 0
          %4472 = vmatpush1.bf16.msra.mxu0 %v4291
          %4473 = vmatprep.subr.bf16.mxu0 0
          %4474 = vmatpush1.bf16.msra.mxu0 %v4292
          %4475 = vmatprep.subr.bf16.mxu0 0
          %4476 = vmatpush1.bf16.msra.mxu0 %v4293
          %4477 = vmatprep.subr.bf16.mxu0 0
          %4478 = vmatpush1.bf16.msra.mxu0 %v4294
          %4479 = vmatprep.subr.bf16.mxu0 0
          %4480 = vmatpush1.bf16.msra.mxu0 %v4295
          %4481 = vmatprep.subr.bf16.mxu0 0
          %4482 = vmatpush1.bf16.msra.mxu0 %v4296
          %4483 = vmatprep.subr.bf16.mxu0 0
          %4484 = vmatpush1.bf16.msra.mxu0 %v4297
          %4485 = vmatprep.subr.bf16.mxu0 0
          %4486 = vmatpush1.bf16.msra.mxu0 %v4298
          %4487 = vmatprep.subr.bf16.mxu0 0
          %4488 = vmatpush1.bf16.msra.mxu0 %v4299
          %4489 = vmatprep.subr.bf16.mxu0 0
          %4490 = vmatpush1.bf16.msra.mxu0 %v4300
          %4491 = vmatprep.subr.bf16.mxu0 0
          %4492 = vmatpush1.bf16.msra.mxu0 %v4301
          %4493 = vmatprep.subr.bf16.mxu0 0
          %4494 = vmatpush1.bf16.msra.mxu0 %v4302
          %4495 = vmatprep.mubr.bf16.mxu0 %v3861
          %4496 = vmatmul.mubr.bf16.gmra.mrb[0].mxu0 %v3860
          %v4497 = vpop.f32.mrb[0].mxu0
          %v4498 = vadd.f32 %v4458, %v4497
          %v4499 = vpop.f32.mrb[0].mxu0
          %v4500 = vpop.f32.mrb[0].mxu0
          %v4501 = vpop.f32.mrb[0].mxu0
          %4502 = vdwg.mxu0
          %4503 = vmatprep.subr.bf16.mxu0 0
          %4504 = vmatpush1.bf16.msra.mxu0 %v4303
          %4505 = vmatprep.subr.bf16.mxu0 0
          %4506 = vmatpush1.bf16.msra.mxu0 %v4304
          %4507 = vmatprep.subr.bf16.mxu0 0
          %4508 = vmatpush1.bf16.msra.mxu0 %v4305
          %4509 = vmatprep.subr.bf16.mxu0 0
          %4510 = vmatpush1.bf16.msra.mxu0 %v4306
          %4511 = vmatprep.subr.bf16.mxu0 0
          %4512 = vmatpush1.bf16.msra.mxu0 %v4307
          %4513 = vmatprep.subr.bf16.mxu0 0
          %4514 = vmatpush1.bf16.msra.mxu0 %v4308
          %4515 = vmatprep.subr.bf16.mxu0 0
          %4516 = vmatpush1.bf16.msra.mxu0 %v4309
          %4517 = vmatprep.subr.bf16.mxu0 0
          %4518 = vmatpush1.bf16.msra.mxu0 %v4310
          %4519 = vmatprep.subr.bf16.mxu0 0
          %4520 = vmatpush1.bf16.msra.mxu0 %v4311
          %4521 = vmatprep.subr.bf16.mxu0 0
          %4522 = vmatpush1.bf16.msra.mxu0 %v4312
          %4523 = vmatprep.subr.bf16.mxu0 0
          %4524 = vmatpush1.bf16.msra.mxu0 %v4313
          %4525 = vmatprep.subr.bf16.mxu0 0
          %4526 = vmatpush1.bf16.msra.mxu0 %v4314
          %4527 = vmatprep.subr.bf16.mxu0 0
          %4528 = vmatpush1.bf16.msra.mxu0 %v4315
          %4529 = vmatprep.subr.bf16.mxu0 0
          %4530 = vmatpush1.bf16.msra.mxu0 %v4316
          %4531 = vmatprep.subr.bf16.mxu0 0
          %4532 = vmatpush1.bf16.msra.mxu0 %v4317
          %4533 = vmatprep.subr.bf16.mxu0 0
          %4534 = vmatpush1.bf16.msra.mxu0 %v4318
          %4535 = vmatprep.mubr.bf16.mxu0 %v3863
          %4536 = vmatmul.mubr.bf16.gmra.mrb[0].mxu0 %v3862
          %v4537 = vpop.f32.mrb[0].mxu0
          %v4538 = vadd.f32 %v4498, %v4537
          %v4539 = vpop.f32.mrb[0].mxu0
          %v4540 = vpop.f32.mrb[0].mxu0
          %v4541 = vpop.f32.mrb[0].mxu0
          %4542 = vdwg.mxu0
          %4543 = vst [vmem:[#allocation17] sm:$0xff] %v4538
        $region92: #{model_forward.1} parent=51 // pred_fallthru
          _
        // Predicated region
        $region93: #{model_forward.1} parent=51 // pred_check
          %p4544 = pneg %p213
        $region94: #{model_forward.1} parent=51 // pred_check_branch
          %4546 = sbr.rel (%p4544) target = $region96
        $region95: #{model_forward.1} parent=51 // pred_region
          %s4548 = ssub.s32 128, 128
          %4549 = vsyncadd [#allocation5], %s4548
          %s4551 = sshll.u32 [#allocation17], 4
          %s4552 = int_to_ptr.vmem [resolvable:$true] %s4551
          %4554 = dma.vmem_to_hbm [thread:$0]  %s4552, 128, %s8, [#allocation5]
        $region96: #{model_forward.1} parent=51 // pred_fallthru
          _
        // Predicated region
        $region97: #{model_forward.1} parent=51 // pred_check
          %p4555 = pneg %p213
        $region98: #{model_forward.1} parent=51 // pred_check_branch
          %4557 = sbr.rel (%p4555) target = $region100
        $region99: #{model_forward.1} parent=51 // pred_region
          %4558 = dma.done [#allocation5], 128
        $region100: #{model_forward.1} parent=51 // pred_fallthru
          _
      $region52: #{model_forward.1} parent=5 // pred_fallthru
        _
      %p4559 = scmp.le.s32.totalorder 2, %s22
      // Predicated region
      $region101: #{model_forward.1} parent=5 // pred_check
        %p4560 = pneg %p4559
      $region102: #{model_forward.1} parent=5 // pred_check_branch
        %4562 = sbr.rel (%p4560) target = $region104
      $region103: #{model_forward.1} parent=5 // pred_region
        %s4563 = ssub.s32 %s22, 2
      $region104: #{model_forward.1} parent=5 // pred_fallthru
        _
    $region6: #{model_forward.1} parent=1 // loop_footer
      %s26 = sadd.s32 1, %s22
    $region7: #{model_forward.1} parent=1 // loop_footer_branch
      %21 = sbr.rel target = $region3
    $region8: #{model_forward.1} parent=1 // loop_exit
      _
    %4564 = vsyncpa [#allocation4], 1
    %s4565 = scalar_lea.sflag [#allocation4], 1
    %4566 = vsyncpa %s4565, 1
    %4567 = vsyncpa [#allocation7], 1
    %4568 = vsyncpa [#allocation10], 1
    %s4569 = scalar_lea.sflag [#allocation10], 1
    %4570 = vsyncpa %s4569, 1
    %4571 = vsyncpa [#allocation13], 1
    %4572 = vsyncpa [#allocation16], 1
    %4573 = vsyncpa [#allocation5], 1
    %s4574 = scalar_lea.sflag [#allocation5], 1
    %4575 = vsyncpa %s4574, 1

</llo_original>
